<compile_context>
chip_gen: v7x
topology: tpu7x:2x2x1
jax: 0.10.0
libtpu: 0.0.40
codegen_flags: <defaults>
</compile_context>

<pallas_src>
from functools import partial

import jax
import jax.numpy as jnp
from jax.experimental import pallas as pl
from jax.experimental.pallas import tpu as pltpu


def _hardswish(y):
    # x * hardtanh(x + 3, 0, 6) / 6   (PyTorch Hardswish in this repo)
    return y * jnp.clip(y + 3.0, 0.0, 6.0) * (1.0 / 6.0)


def _round_up(a, b):
    return (a + b - 1) // b * b


def _choose_tile_c2(c2):
    # Lane-dense tiles (multiple of 128) or the full dim; gives the second
    # grid axis >=2 steps for real SPP configs (c2 = 512/1024) and caps the
    # per-step w2 / output VMEM footprint.
    for t in (512, 384, 256, 128):
        if c2 > t and c2 % t == 0:
            return t
    return c2


# ---------------------------------------------------------------------------
# Fused kernel: cv1 (1x1 conv + bias + hswish)  ->  SPPF max-pool cascade
#               ->  cv2 (1x1 conv + bias + hswish), per (image, c2-tile).
# The 4*c_ concat is never materialized: each branch is contracted against
# its row-slice of w2 immediately.
# ---------------------------------------------------------------------------
def _spp_fused_kernel(x_ref, w1_ref, b1_ref, w2_ref, b2_ref, o_ref, zp_ref,
                      *, ks, cascade, w_valid, p_max):
    x = x_ref[0]                                   # (H, Wp, c1)
    H, Wp, c1 = x.shape
    c_ = w1_ref.shape[1]
    tc2 = o_ref.shape[-1]
    HW = H * Wp

    pool_dt = zp_ref.dtype
    neg = jnp.asarray(-jnp.inf, pool_dt)

    # --- cv1: 1x1 conv (BN scale pre-folded) + bias + hardswish -------------
    # Wp % 8 == 0 (wrapper pads), so this reshape is layout-free.
    y1 = jnp.dot(x.reshape(HW, c1), w1_ref[...],
                 preferred_element_type=jnp.float32)
    y1 = _hardswish(y1 + b1_ref[...].astype(jnp.float32))
    y1 = y1.reshape(H, Wp, c_).astype(pool_dt)

    # --- -inf border rows of the shared row-padding scratch (written once) --
    zp_ref[0:p_max] = jnp.full((p_max, Wp, c_), neg)
    zp_ref[p_max + H:p_max + H + p_max] = jnp.full((p_max, Wp, c_), neg)

    # --- direction-agnostic column (sublane) roll masks, (1, Wp, c_) only ---
    pool_sizes = (ks[0],) if cascade else tuple(sorted(set(ks)))
    idx = jax.lax.broadcasted_iota(jnp.int32, (1, Wp, c_), 1)
    masks_by_k = {}
    for k in pool_sizes:
        p = k // 2
        amts = sorted(({s % Wp for s in range(1, p + 1)}
                       | {(Wp - s) % Wp for s in range(1, p + 1)}) - {0})
        ms = []
        for a in amts:
            src = pltpu.roll(idx, a, axis=1)
            # Keep a rolled element only if its *source* column lies inside the
            # window AND inside the valid (un-padded) region -> correct no
            # matter which way pltpu.roll rotates; realizes 'same' padding.
            ms.append((a, (jnp.abs(src - idx) <= p) & (src < w_valid)))
        masks_by_k[k] = ms

    def pool(z, k):
        p = k // 2
        # Rows (major axis): write interior once into the persistent scratch,
        # take the running max over tile-aligned shifted slice loads.
        zp_ref[p_max:p_max + H] = z
        r = zp_ref[p_max - p:p_max - p + H]
        for d in range(1, k):
            r = jnp.maximum(r, zp_ref[p_max - p + d:p_max - p + d + H])
        # Cols (sublane axis): XLU rolls + (1, Wp, c_) validity masks, no
        # sublane-crossing VMEM copies.
        out = r
        for a, m in masks_by_k[k]:
            out = jnp.maximum(out, jnp.where(m, pltpu.roll(r, a, axis=1), neg))
        return out

    def contract(z, branch):
        # (H*Wp, c_) @ (c_, tile_c2) on the MXU, f32 accumulation.
        return jnp.dot(z.reshape(HW, c_), w2_ref[branch],
                       preferred_element_type=jnp.float32)

    acc = contract(y1, 0)                          # identity branch of concat
    prev = y1
    for i, k in enumerate(ks):
        # SPPF cascade: pool5 applied (i+1) times == pool of size ks[i].
        prev = pool(prev, ks[0]) if cascade else pool(y1, k)
        acc = acc + contract(prev, i + 1)

    y = _hardswish(acc + b2_ref[...].astype(jnp.float32))
    o_ref[0] = y.reshape(H, Wp, tc2).astype(o_ref.dtype)


def spp_fused(x_nhwc, params, ks=(5, 9, 13)):
    N, H, W, c1 = x_nhwc.shape
    w1, b1 = params["w1"], params["b1"]
    w2, b2 = params["w2"], params["b2"]
    c_ = w1.shape[1]
    n_branch, c_w, c2 = w2.shape
    assert n_branch == len(ks) + 1 and c_w == c_, (w2.shape, c_, ks)
    assert all(k % 2 == 1 for k in ks), ks
    assert jnp.issubdtype(x_nhwc.dtype, jnp.floating), x_nhwc.dtype
    # SPPF cascade is valid when ks[i] == (i+1)*(ks[0]-1)+1 (true for 5,9,13).
    cascade = all(ks[i] == (i + 1) * (ks[0] - 1) + 1 for i in range(len(ks)))
    p_max = (ks[0] // 2) if cascade else (max(ks) // 2)

    # Pad W (sublane axis) to a multiple of 8 so in-kernel reshapes are free.
    Wp = _round_up(W, 8)
    xp = (jnp.pad(x_nhwc, ((0, 0), (0, 0), (0, Wp - W), (0, 0)))
          if Wp != W else x_nhwc)
    if not cascade:
        assert Wp > 2 * p_max, (Wp, p_max)   # roll-mask dedup edge case

    dt = x_nhwc.dtype
    w1 = w1.astype(dt)
    w2 = w2.astype(dt)
    b1 = b1.astype(jnp.float32)
    b2 = b2.astype(jnp.float32)

    tile_c2 = _choose_tile_c2(c2)
    n_c2 = c2 // tile_c2

    # Explicit VMEM budget (v5e default scoped VMEM is only 16 MiB).
    isz = jnp.dtype(dt).itemsize
    blk = ((H * Wp * c1 + H * Wp * tile_c2 + n_branch * c_ * tile_c2
            + c1 * c_) * isz + (c_ + tile_c2) * 4)
    scratch_b = (H + 2 * p_max) * Wp * c_ * isz
    live = 5 * H * Wp * c_ * isz + H * Wp * tile_c2 * 4
    est = 2 * blk + scratch_b + live
    vmem_limit = int(min(64 * 2**20, max(2 * est, 32 * 2**20)))

    out = pl.pallas_call(
        partial(_spp_fused_kernel, ks=tuple(ks), cascade=cascade,
                w_valid=W, p_max=p_max),
        out_shape=jax.ShapeDtypeStruct((N, H, Wp, c2), dt),
        grid_spec=pltpu.PrefetchScalarGridSpec(
            num_scalar_prefetch=0,
            grid=(N, n_c2),
            in_specs=[
                pl.BlockSpec((1, H, Wp, c1), lambda n, j: (n, 0, 0, 0)),
                pl.BlockSpec((c1, c_), lambda n, j: (0, 0)),          # w1 resident
                pl.BlockSpec((1, c_), lambda n, j: (0, 0)),
                pl.BlockSpec((n_branch, c_, tile_c2), lambda n, j: (0, 0, j)),
                pl.BlockSpec((1, tile_c2), lambda n, j: (0, j)),
            ],
            out_specs=pl.BlockSpec((1, H, Wp, tile_c2),
                                   lambda n, j: (n, 0, 0, j)),
            scratch_shapes=[pltpu.VMEM((H + 2 * p_max, Wp, c_), dt)],
        ),
        compiler_params=pltpu.CompilerParams(
            dimension_semantics=("parallel", "parallel"),
            vmem_limit_bytes=vmem_limit),
    )(xp, w1, b1, w2, b2)

    if Wp != W:
        out = out[:, :, :W, :]
    return out


# ---------------------------------------------------------------------------
# Parameter construction (deterministic, matches PyTorch __init__ shapes);
# BatchNorm (eval mode, default stats) scale is folded into the weights.
# ---------------------------------------------------------------------------
def init_spp_params(key, c1, c2, ks=(5, 9, 13)):
    c_ = c1 // 2
    n_branch = len(ks) + 1
    c_cat = c_ * n_branch
    k1, k2 = jax.random.split(key)
    # PyTorch Conv2d weight shapes: (cout, cin, 1, 1), bias=False
    w1_t = jax.random.normal(k1, (c_, c1, 1, 1), jnp.float32) * 0.1
    w2_t = jax.random.normal(k2, (c2, c_cat, 1, 1), jnp.float32) * 0.1
    w1 = jnp.transpose(w1_t[:, :, 0, 0], (1, 0))       # (c1, c_)
    w2 = jnp.transpose(w2_t[:, :, 0, 0], (1, 0))       # (c_cat, c2)

    eps = 1e-5

    def bn_fold(cout):
        gamma = jnp.ones((cout,), jnp.float32)
        beta = jnp.zeros((cout,), jnp.float32)
        rmean = jnp.zeros((cout,), jnp.float32)
        rvar = jnp.ones((cout,), jnp.float32)
        scale = gamma / jnp.sqrt(rvar + eps)
        bias = beta - rmean * scale
        return scale, bias

    s1, b1 = bn_fold(c_)
    s2, b2 = bn_fold(c2)
    # Fold BN scale into weight columns so the kernel only adds a bias.
    w1 = w1 * s1[None, :]
    w2 = w2 * s2[None, :]
    # w2 grouped by concat branch [x, p5, p9, p13]: (n_branch, c_, c2)
    w2_stack = w2.reshape(n_branch, c_, c2)
    return {"w1": w1, "b1": b1.reshape(1, c_),
            "w2": w2_stack, "b2": b2.reshape(1, c2)}


# ---------------------------------------------------------------------------
# SPP forward (wrapper): NCHW in -> NCHW out
# ---------------------------------------------------------------------------
def spp_forward(x_nchw, params, ks=(5, 9, 13)):
    # NCHW -> NHWC boundary transpose (glue); call spp_fused with NHWC
    # directly to avoid it.
    x = jnp.transpose(x_nchw, (0, 2, 3, 1))
    y = spp_fused(x, params, ks=ks)
    return jnp.transpose(y, (0, 3, 1, 2))


# ---------------------------------------------------------------------------
# Pure-JAX reference (correctness check only)
# ---------------------------------------------------------------------------
def spp_reference(x_nchw, params, ks=(5, 9, 13)):
    x = jnp.transpose(x_nchw, (0, 2, 3, 1)).astype(jnp.float32)

    def pw(z, w2d, b):
        y = jnp.einsum("nhwc,cd->nhwd", z, w2d) + b.reshape(-1)
        return _hardswish(y)

    x1 = pw(x, params["w1"], params["b1"])
    pools = [x1]
    for k in ks:
        p = k // 2
        pools.append(
            jax.lax.reduce_window(
                x1, -jnp.inf, jax.lax.max,
                window_dimensions=(1, k, k, 1),
                window_strides=(1, 1, 1, 1),
                padding=[(0, 0), (p, p), (p, p), (0, 0)],
            )
        )
    cat = jnp.concatenate(pools, axis=-1)
    n_branch, c_, c2 = params["w2"].shape
    w2_full = params["w2"].reshape(n_branch * c_, c2)
    y = pw(cat, w2_full, params["b2"])
    return jnp.transpose(y, (0, 3, 1, 2))


if __name__ == "__main__":
    key = jax.random.PRNGKey(0)
    kx, kp, kx2, kp2 = jax.random.split(key, 4)

    # Case 1: W already a multiple of 8.
    N, C1, H, W = 2, 4, 16, 16
    C2 = 8
    x = jax.random.normal(kx, (N, C1, H, W), jnp.float32)
    params = init_spp_params(kp, C1, C2)

    out = jax.block_until_ready(spp_forward(x, params))
    assert out.shape == (N, C2, H, W), out.shape
    ref = jax.block_until_ready(spp_reference(x, params))
    err = float(jnp.max(jnp.abs(out - ref)))
    assert err < 1e-3, err

    # Case 2: W % 8 != 0 exercises the lane/sublane padding + validity masks.
    N2, C1b, H2, W2, C2b = 1, 6, 10, 12, 16
    x2 = jax.random.normal(kx2, (N2, C1b, H2, W2), jnp.float32)
    params2 = init_spp_params(kp2, C1b, C2b)
    out2 = jax.block_until_ready(spp_forward(x2, params2))
    assert out2.shape == (N2, C2b, H2, W2), out2.shape
    ref2 = jax.block_until_ready(spp_reference(x2, params2))
    err2 = float(jnp.max(jnp.abs(out2 - ref2)))
    assert err2 < 1e-3, err2

    print("KERNEL_OK")
</pallas_src>

<mosaic_0001>
module attributes {stable_mosaic.version = 11 : i64} {
  func.func @_spp_fused_kernel(%arg0: i32, %arg1: i32, %arg2: memref<1x16x16x4xf32, #tpu.memory_space<vmem>>, %arg3: memref<4x2xf32, #tpu.memory_space<vmem>>, %arg4: memref<1x2xf32, #tpu.memory_space<vmem>>, %arg5: memref<4x2x8xf32, #tpu.memory_space<vmem>>, %arg6: memref<1x8xf32, #tpu.memory_space<vmem>>, %arg7: memref<1x16x16x8xf32, #tpu.memory_space<vmem>>, %arg8: memref<20x16x2xf32, #tpu.memory_space<vmem>>) attributes {dimension_semantics = [#tpu.dimension_semantics<parallel>, #tpu.dimension_semantics<parallel>], iteration_bounds = array<i64: 2, 1>, scalar_prefetch = 0 : i64, scratch_operands = 1 : i64, tpu.core_type = #tpu.core_type<tc>, window_params = [{transform_indices = @transform_0, window_bounds = array<i64: 1, 16, 16, 4>}, {pipeline_mode = #tpu.pipeline_mode<synchronous>, transform_indices = @transform_1, window_bounds = array<i64: 4, 2>}, {pipeline_mode = #tpu.pipeline_mode<synchronous>, transform_indices = @transform_2, window_bounds = array<i64: 1, 2>}, {transform_indices = @transform_3, window_bounds = array<i64: 4, 2, 8>}, {transform_indices = @transform_4, window_bounds = array<i64: 1, 8>}, {transform_indices = @transform_5, window_bounds = array<i64: 1, 16, 16, 8>}]} {
    %c0 = arith.constant 0 : index
    %c0_0 = arith.constant 0 : index
    %c0_1 = arith.constant 0 : index
    %c0_2 = arith.constant 0 : index
    %0 = vector.load %arg2[%c0, %c0_0, %c0_1, %c0_2] : memref<1x16x16x4xf32, #tpu.memory_space<vmem>>, vector<1x16x16x4xf32>
    %1 = vector.shape_cast %0 : vector<1x16x16x4xf32> to vector<16x16x4xf32>
    %2 = vector.shape_cast %1 : vector<16x16x4xf32> to vector<256x4xf32>
    %c0_3 = arith.constant 0 : index
    %c0_4 = arith.constant 0 : index
    %3 = vector.load %arg3[%c0_3, %c0_4] : memref<4x2xf32, #tpu.memory_space<vmem>>, vector<4x2xf32>
    %cst = arith.constant dense<0.000000e+00> : vector<256x2xf32>
    %4 = tpu.matmul %2, %3, %cst {dimension_numbers = #tpu.dot_dimension_numbers<[1], [0], [0], [1], [0, 0, 1, 1], [], []>} : vector<256x4xf32>, vector<4x2xf32>, vector<256x2xf32> -> vector<256x2xf32>
    %c0_5 = arith.constant 0 : index
    %c0_6 = arith.constant 0 : index
    %5 = vector.load %arg4[%c0_5, %c0_6] : memref<1x2xf32, #tpu.memory_space<vmem>>, vector<1x2xf32>
    %6 = vector.broadcast %5 : vector<1x2xf32> to vector<256x2xf32>
    %7 = arith.addf %4, %6 : vector<256x2xf32>
    %cst_7 = arith.constant 3.000000e+00 : f32
    %8 = vector.broadcast %cst_7 : f32 to vector<256x2xf32>
    %9 = arith.addf %7, %8 : vector<256x2xf32>
    %cst_8 = arith.constant 0.000000e+00 : f32
    %cst_9 = arith.constant 6.000000e+00 : f32
    %10 = vector.broadcast %cst_8 : f32 to vector<256x2xf32>
    %11 = arith.maximumf %10, %9 : vector<256x2xf32>
    %12 = vector.broadcast %cst_9 : f32 to vector<256x2xf32>
    %13 = arith.minimumf %12, %11 : vector<256x2xf32>
    %14 = arith.mulf %7, %13 : vector<256x2xf32>
    %cst_10 = arith.constant 0.166666672 : f32
    %15 = vector.broadcast %cst_10 : f32 to vector<256x2xf32>
    %16 = arith.mulf %14, %15 : vector<256x2xf32>
    %17 = vector.shape_cast %16 : vector<256x2xf32> to vector<16x16x2xf32>
    %cst_11 = arith.constant 0xFF800000 : f32
    %18 = vector.broadcast %cst_11 : f32 to vector<2x16x2xf32>
    %c0_12 = arith.constant 0 : index
    %c0_13 = arith.constant 0 : index
    %c0_14 = arith.constant 0 : index
    %19 = vector.load %arg8[%c0_12, %c0_13, %c0_14] : memref<20x16x2xf32, #tpu.memory_space<vmem>>, vector<2x16x2xf32>
    tpu.vector_store %arg8[%c0_12, %c0_13, %c0_14], %18 {strides = array<i32>} : memref<20x16x2xf32, #tpu.memory_space<vmem>>, vector<2x16x2xf32>,
    %cst_15 = arith.constant 0xFF800000 : f32
    %20 = vector.broadcast %cst_15 : f32 to vector<2x16x2xf32>
    %c18 = arith.constant 18 : index
    %c0_16 = arith.constant 0 : index
    %c0_17 = arith.constant 0 : index
    %21 = vector.load %arg8[%c18, %c0_16, %c0_17] : memref<20x16x2xf32, #tpu.memory_space<vmem>>, vector<2x16x2xf32>
    tpu.vector_store %arg8[%c18, %c0_16, %c0_17], %20 {strides = array<i32>} : memref<20x16x2xf32, #tpu.memory_space<vmem>>, vector<2x16x2xf32>,
    %22 = tpu.iota {dimensions = array<i32: 1>} : vector<1x16x2xi32>
    %c1_i32 = arith.constant 1 : i32
    %23 = tpu.dynamic_rotate %22 by %c1_i32 dim 1 : vector<1x16x2xi32>, i32 -> vector<1x16x2xi32>
    %24 = arith.subi %23, %22 : vector<1x16x2xi32>
    %25 = math.absi %24 : vector<1x16x2xi32>
    %c2_i32 = arith.constant 2 : i32
    %26 = vector.broadcast %c2_i32 : i32 to vector<1x16x2xi32>
    %27 = arith.cmpi sle, %25, %26 : vector<1x16x2xi32>
    %c16_i32 = arith.constant 16 : i32
    %28 = vector.broadcast %c16_i32 : i32 to vector<1x16x2xi32>
    %29 = arith.cmpi slt, %23, %28 : vector<1x16x2xi32>
    %30 = arith.andi %27, %29 : vector<1x16x2xi1>
    %c2_i32_18 = arith.constant 2 : i32
    %31 = tpu.dynamic_rotate %22 by %c2_i32_18 dim 1 : vector<1x16x2xi32>, i32 -> vector<1x16x2xi32>
    %32 = arith.subi %31, %22 : vector<1x16x2xi32>
    %33 = math.absi %32 : vector<1x16x2xi32>
    %c2_i32_19 = arith.constant 2 : i32
    %34 = vector.broadcast %c2_i32_19 : i32 to vector<1x16x2xi32>
    %35 = arith.cmpi sle, %33, %34 : vector<1x16x2xi32>
    %c16_i32_20 = arith.constant 16 : i32
    %36 = vector.broadcast %c16_i32_20 : i32 to vector<1x16x2xi32>
    %37 = arith.cmpi slt, %31, %36 : vector<1x16x2xi32>
    %38 = arith.andi %35, %37 : vector<1x16x2xi1>
    %c14_i32 = arith.constant 14 : i32
    %39 = tpu.dynamic_rotate %22 by %c14_i32 dim 1 : vector<1x16x2xi32>, i32 -> vector<1x16x2xi32>
    %40 = arith.subi %39, %22 : vector<1x16x2xi32>
    %41 = math.absi %40 : vector<1x16x2xi32>
    %c2_i32_21 = arith.constant 2 : i32
    %42 = vector.broadcast %c2_i32_21 : i32 to vector<1x16x2xi32>
    %43 = arith.cmpi sle, %41, %42 : vector<1x16x2xi32>
    %c16_i32_22 = arith.constant 16 : i32
    %44 = vector.broadcast %c16_i32_22 : i32 to vector<1x16x2xi32>
    %45 = arith.cmpi slt, %39, %44 : vector<1x16x2xi32>
    %46 = arith.andi %43, %45 : vector<1x16x2xi1>
    %c15_i32 = arith.constant 15 : i32
    %47 = tpu.dynamic_rotate %22 by %c15_i32 dim 1 : vector<1x16x2xi32>, i32 -> vector<1x16x2xi32>
    %48 = arith.subi %47, %22 : vector<1x16x2xi32>
    %49 = math.absi %48 : vector<1x16x2xi32>
    %c2_i32_23 = arith.constant 2 : i32
    %50 = vector.broadcast %c2_i32_23 : i32 to vector<1x16x2xi32>
    %51 = arith.cmpi sle, %49, %50 : vector<1x16x2xi32>
    %c16_i32_24 = arith.constant 16 : i32
    %52 = vector.broadcast %c16_i32_24 : i32 to vector<1x16x2xi32>
    %53 = arith.cmpi slt, %47, %52 : vector<1x16x2xi32>
    %54 = arith.andi %51, %53 : vector<1x16x2xi1>
    %55 = vector.shape_cast %17 : vector<16x16x2xf32> to vector<256x2xf32>
    %c0_25 = arith.constant 0 : index
    %c0_26 = arith.constant 0 : index
    %c0_27 = arith.constant 0 : index
    %56 = vector.load %arg5[%c0_25, %c0_26, %c0_27] : memref<4x2x8xf32, #tpu.memory_space<vmem>>, vector<1x2x8xf32>
    %57 = vector.shape_cast %56 : vector<1x2x8xf32> to vector<2x8xf32>
    %cst_28 = arith.constant dense<0.000000e+00> : vector<256x8xf32>
    %58 = tpu.matmul %55, %57, %cst_28 {dimension_numbers = #tpu.dot_dimension_numbers<[1], [0], [0], [1], [0, 0, 1, 1], [], []>} : vector<256x2xf32>, vector<2x8xf32>, vector<256x8xf32> -> vector<256x8xf32>
    %c2 = arith.constant 2 : index
    %c0_29 = arith.constant 0 : index
    %c0_30 = arith.constant 0 : index
    %59 = vector.load %arg8[%c2, %c0_29, %c0_30] : memref<20x16x2xf32, #tpu.memory_space<vmem>>, vector<16x16x2xf32>
    tpu.vector_store %arg8[%c2, %c0_29, %c0_30], %17 {strides = array<i32>} : memref<20x16x2xf32, #tpu.memory_space<vmem>>, vector<16x16x2xf32>,
    %c0_31 = arith.constant 0 : index
    %c0_32 = arith.constant 0 : index
    %c0_33 = arith.constant 0 : index
    %60 = vector.load %arg8[%c0_31, %c0_32, %c0_33] : memref<20x16x2xf32, #tpu.memory_space<vmem>>, vector<16x16x2xf32>
    %c1 = arith.constant 1 : index
    %c0_34 = arith.constant 0 : index
    %c0_35 = arith.constant 0 : index
    %61 = vector.load %arg8[%c1, %c0_34, %c0_35] : memref<20x16x2xf32, #tpu.memory_space<vmem>>, vector<16x16x2xf32>
    %62 = arith.maximumf %60, %61 : vector<16x16x2xf32>
    %c2_36 = arith.constant 2 : index
    %c0_37 = arith.constant 0 : index
    %c0_38 = arith.constant 0 : index
    %63 = vector.load %arg8[%c2_36, %c0_37, %c0_38] : memref<20x16x2xf32, #tpu.memory_space<vmem>>, vector<16x16x2xf32>
    %64 = arith.maximumf %62, %63 : vector<16x16x2xf32>
    %c3 = arith.constant 3 : index
    %c0_39 = arith.constant 0 : index
    %c0_40 = arith.constant 0 : index
    %65 = vector.load %arg8[%c3, %c0_39, %c0_40] : memref<20x16x2xf32, #tpu.memory_space<vmem>>, vector<16x16x2xf32>
    %66 = arith.maximumf %64, %65 : vector<16x16x2xf32>
    %c4 = arith.constant 4 : index
    %c0_41 = arith.constant 0 : index
    %c0_42 = arith.constant 0 : index
    %67 = vector.load %arg8[%c4, %c0_41, %c0_42] : memref<20x16x2xf32, #tpu.memory_space<vmem>>, vector<16x16x2xf32>
    %68 = arith.maximumf %66, %67 : vector<16x16x2xf32>
    %c1_i32_43 = arith.constant 1 : i32
    %69 = tpu.dynamic_rotate %68 by %c1_i32_43 dim 1 : vector<16x16x2xf32>, i32 -> vector<16x16x2xf32>
    %cst_44 = arith.constant 0xFF800000 : f32
    %70 = vector.shape_cast %30 : vector<1x16x2xi1> to vector<1x16x2xi1>
    %71 = vector.broadcast %70 : vector<1x16x2xi1> to vector<16x16x2xi1>
    %72 = vector.broadcast %cst_44 : f32 to vector<16x16x2xf32>
    %73 = arith.select %71, %69, %72 : vector<16x16x2xi1>, vector<16x16x2xf32>
    %74 = arith.maximumf %68, %73 : vector<16x16x2xf32>
    %c2_i32_45 = arith.constant 2 : i32
    %75 = tpu.dynamic_rotate %68 by %c2_i32_45 dim 1 : vector<16x16x2xf32>, i32 -> vector<16x16x2xf32>
    %cst_46 = arith.constant 0xFF800000 : f32
    %76 = vector.shape_cast %38 : vector<1x16x2xi1> to vector<1x16x2xi1>
    %77 = vector.broadcast %76 : vector<1x16x2xi1> to vector<16x16x2xi1>
    %78 = vector.broadcast %cst_46 : f32 to vector<16x16x2xf32>
    %79 = arith.select %77, %75, %78 : vector<16x16x2xi1>, vector<16x16x2xf32>
    %80 = arith.maximumf %74, %79 : vector<16x16x2xf32>
    %c14_i32_47 = arith.constant 14 : i32
    %81 = tpu.dynamic_rotate %68 by %c14_i32_47 dim 1 : vector<16x16x2xf32>, i32 -> vector<16x16x2xf32>
    %cst_48 = arith.constant 0xFF800000 : f32
    %82 = vector.shape_cast %46 : vector<1x16x2xi1> to vector<1x16x2xi1>
    %83 = vector.broadcast %82 : vector<1x16x2xi1> to vector<16x16x2xi1>
    %84 = vector.broadcast %cst_48 : f32 to vector<16x16x2xf32>
    %85 = arith.select %83, %81, %84 : vector<16x16x2xi1>, vector<16x16x2xf32>
    %86 = arith.maximumf %80, %85 : vector<16x16x2xf32>
    %c15_i32_49 = arith.constant 15 : i32
    %87 = tpu.dynamic_rotate %68 by %c15_i32_49 dim 1 : vector<16x16x2xf32>, i32 -> vector<16x16x2xf32>
    %cst_50 = arith.constant 0xFF800000 : f32
    %88 = vector.shape_cast %54 : vector<1x16x2xi1> to vector<1x16x2xi1>
    %89 = vector.broadcast %88 : vector<1x16x2xi1> to vector<16x16x2xi1>
    %90 = vector.broadcast %cst_50 : f32 to vector<16x16x2xf32>
    %91 = arith.select %89, %87, %90 : vector<16x16x2xi1>, vector<16x16x2xf32>
    %92 = arith.maximumf %86, %91 : vector<16x16x2xf32>
    %93 = vector.shape_cast %92 : vector<16x16x2xf32> to vector<256x2xf32>
    %c1_51 = arith.constant 1 : index
    %c0_52 = arith.constant 0 : index
    %c0_53 = arith.constant 0 : index
    %94 = vector.load %arg5[%c1_51, %c0_52, %c0_53] : memref<4x2x8xf32, #tpu.memory_space<vmem>>, vector<1x2x8xf32>
    %95 = vector.shape_cast %94 : vector<1x2x8xf32> to vector<2x8xf32>
    %cst_54 = arith.constant dense<0.000000e+00> : vector<256x8xf32>
    %96 = tpu.matmul %93, %95, %cst_54 {dimension_numbers = #tpu.dot_dimension_numbers<[1], [0], [0], [1], [0, 0, 1, 1], [], []>} : vector<256x2xf32>, vector<2x8xf32>, vector<256x8xf32> -> vector<256x8xf32>
    %97 = arith.addf %58, %96 : vector<256x8xf32>
    %c2_55 = arith.constant 2 : index
    %c0_56 = arith.constant 0 : index
    %c0_57 = arith.constant 0 : index
    %98 = vector.load %arg8[%c2_55, %c0_56, %c0_57] : memref<20x16x2xf32, #tpu.memory_space<vmem>>, vector<16x16x2xf32>
    tpu.vector_store %arg8[%c2_55, %c0_56, %c0_57], %92 {strides = array<i32>} : memref<20x16x2xf32, #tpu.memory_space<vmem>>, vector<16x16x2xf32>,
    %c0_58 = arith.constant 0 : index
    %c0_59 = arith.constant 0 : index
    %c0_60 = arith.constant 0 : index
    %99 = vector.load %arg8[%c0_58, %c0_59, %c0_60] : memref<20x16x2xf32, #tpu.memory_space<vmem>>, vector<16x16x2xf32>
    %c1_61 = arith.constant 1 : index
    %c0_62 = arith.constant 0 : index
    %c0_63 = arith.constant 0 : index
    %100 = vector.load %arg8[%c1_61, %c0_62, %c0_63] : memref<20x16x2xf32, #tpu.memory_space<vmem>>, vector<16x16x2xf32>
    %101 = arith.maximumf %99, %100 : vector<16x16x2xf32>
    %c2_64 = arith.constant 2 : index
    %c0_65 = arith.constant 0 : index
    %c0_66 = arith.constant 0 : index
    %102 = vector.load %arg8[%c2_64, %c0_65, %c0_66] : memref<20x16x2xf32, #tpu.memory_space<vmem>>, vector<16x16x2xf32>
    %103 = arith.maximumf %101, %102 : vector<16x16x2xf32>
    %c3_67 = arith.constant 3 : index
    %c0_68 = arith.constant 0 : index
    %c0_69 = arith.constant 0 : index
    %104 = vector.load %arg8[%c3_67, %c0_68, %c0_69] : memref<20x16x2xf32, #tpu.memory_space<vmem>>, vector<16x16x2xf32>
    %105 = arith.maximumf %103, %104 : vector<16x16x2xf32>
    %c4_70 = arith.constant 4 : index
    %c0_71 = arith.constant 0 : index
    %c0_72 = arith.constant 0 : index
    %106 = vector.load %arg8[%c4_70, %c0_71, %c0_72] : memref<20x16x2xf32, #tpu.memory_space<vmem>>, vector<16x16x2xf32>
    %107 = arith.maximumf %105, %106 : vector<16x16x2xf32>
    %c1_i32_73 = arith.constant 1 : i32
    %108 = tpu.dynamic_rotate %107 by %c1_i32_73 dim 1 : vector<16x16x2xf32>, i32 -> vector<16x16x2xf32>
    %cst_74 = arith.constant 0xFF800000 : f32
    %109 = vector.shape_cast %30 : vector<1x16x2xi1> to vector<1x16x2xi1>
    %110 = vector.broadcast %109 : vector<1x16x2xi1> to vector<16x16x2xi1>
    %111 = vector.broadcast %cst_74 : f32 to vector<16x16x2xf32>
    %112 = arith.select %110, %108, %111 : vector<16x16x2xi1>, vector<16x16x2xf32>
    %113 = arith.maximumf %107, %112 : vector<16x16x2xf32>
    %c2_i32_75 = arith.constant 2 : i32
    %114 = tpu.dynamic_rotate %107 by %c2_i32_75 dim 1 : vector<16x16x2xf32>, i32 -> vector<16x16x2xf32>
    %cst_76 = arith.constant 0xFF800000 : f32
    %115 = vector.shape_cast %38 : vector<1x16x2xi1> to vector<1x16x2xi1>
    %116 = vector.broadcast %115 : vector<1x16x2xi1> to vector<16x16x2xi1>
    %117 = vector.broadcast %cst_76 : f32 to vector<16x16x2xf32>
    %118 = arith.select %116, %114, %117 : vector<16x16x2xi1>, vector<16x16x2xf32>
    %119 = arith.maximumf %113, %118 : vector<16x16x2xf32>
    %c14_i32_77 = arith.constant 14 : i32
    %120 = tpu.dynamic_rotate %107 by %c14_i32_77 dim 1 : vector<16x16x2xf32>, i32 -> vector<16x16x2xf32>
    %cst_78 = arith.constant 0xFF800000 : f32
    %121 = vector.shape_cast %46 : vector<1x16x2xi1> to vector<1x16x2xi1>
    %122 = vector.broadcast %121 : vector<1x16x2xi1> to vector<16x16x2xi1>
    %123 = vector.broadcast %cst_78 : f32 to vector<16x16x2xf32>
    %124 = arith.select %122, %120, %123 : vector<16x16x2xi1>, vector<16x16x2xf32>
    %125 = arith.maximumf %119, %124 : vector<16x16x2xf32>
    %c15_i32_79 = arith.constant 15 : i32
    %126 = tpu.dynamic_rotate %107 by %c15_i32_79 dim 1 : vector<16x16x2xf32>, i32 -> vector<16x16x2xf32>
    %cst_80 = arith.constant 0xFF800000 : f32
    %127 = vector.shape_cast %54 : vector<1x16x2xi1> to vector<1x16x2xi1>
    %128 = vector.broadcast %127 : vector<1x16x2xi1> to vector<16x16x2xi1>
    %129 = vector.broadcast %cst_80 : f32 to vector<16x16x2xf32>
    %130 = arith.select %128, %126, %129 : vector<16x16x2xi1>, vector<16x16x2xf32>
    %131 = arith.maximumf %125, %130 : vector<16x16x2xf32>
    %132 = vector.shape_cast %131 : vector<16x16x2xf32> to vector<256x2xf32>
    %c2_81 = arith.constant 2 : index
    %c0_82 = arith.constant 0 : index
    %c0_83 = arith.constant 0 : index
    %133 = vector.load %arg5[%c2_81, %c0_82, %c0_83] : memref<4x2x8xf32, #tpu.memory_space<vmem>>, vector<1x2x8xf32>
    %134 = vector.shape_cast %133 : vector<1x2x8xf32> to vector<2x8xf32>
    %cst_84 = arith.constant dense<0.000000e+00> : vector<256x8xf32>
    %135 = tpu.matmul %132, %134, %cst_84 {dimension_numbers = #tpu.dot_dimension_numbers<[1], [0], [0], [1], [0, 0, 1, 1], [], []>} : vector<256x2xf32>, vector<2x8xf32>, vector<256x8xf32> -> vector<256x8xf32>
    %136 = arith.addf %97, %135 : vector<256x8xf32>
    %c2_85 = arith.constant 2 : index
    %c0_86 = arith.constant 0 : index
    %c0_87 = arith.constant 0 : index
    %137 = vector.load %arg8[%c2_85, %c0_86, %c0_87] : memref<20x16x2xf32, #tpu.memory_space<vmem>>, vector<16x16x2xf32>
    tpu.vector_store %arg8[%c2_85, %c0_86, %c0_87], %131 {strides = array<i32>} : memref<20x16x2xf32, #tpu.memory_space<vmem>>, vector<16x16x2xf32>,
    %c0_88 = arith.constant 0 : index
    %c0_89 = arith.constant 0 : index
    %c0_90 = arith.constant 0 : index
    %138 = vector.load %arg8[%c0_88, %c0_89, %c0_90] : memref<20x16x2xf32, #tpu.memory_space<vmem>>, vector<16x16x2xf32>
    %c1_91 = arith.constant 1 : index
    %c0_92 = arith.constant 0 : index
    %c0_93 = arith.constant 0 : index
    %139 = vector.load %arg8[%c1_91, %c0_92, %c0_93] : memref<20x16x2xf32, #tpu.memory_space<vmem>>, vector<16x16x2xf32>
    %140 = arith.maximumf %138, %139 : vector<16x16x2xf32>
    %c2_94 = arith.constant 2 : index
    %c0_95 = arith.constant 0 : index
    %c0_96 = arith.constant 0 : index
    %141 = vector.load %arg8[%c2_94, %c0_95, %c0_96] : memref<20x16x2xf32, #tpu.memory_space<vmem>>, vector<16x16x2xf32>
    %142 = arith.maximumf %140, %141 : vector<16x16x2xf32>
    %c3_97 = arith.constant 3 : index
    %c0_98 = arith.constant 0 : index
    %c0_99 = arith.constant 0 : index
    %143 = vector.load %arg8[%c3_97, %c0_98, %c0_99] : memref<20x16x2xf32, #tpu.memory_space<vmem>>, vector<16x16x2xf32>
    %144 = arith.maximumf %142, %143 : vector<16x16x2xf32>
    %c4_100 = arith.constant 4 : index
    %c0_101 = arith.constant 0 : index
    %c0_102 = arith.constant 0 : index
    %145 = vector.load %arg8[%c4_100, %c0_101, %c0_102] : memref<20x16x2xf32, #tpu.memory_space<vmem>>, vector<16x16x2xf32>
    %146 = arith.maximumf %144, %145 : vector<16x16x2xf32>
    %c1_i32_103 = arith.constant 1 : i32
    %147 = tpu.dynamic_rotate %146 by %c1_i32_103 dim 1 : vector<16x16x2xf32>, i32 -> vector<16x16x2xf32>
    %cst_104 = arith.constant 0xFF800000 : f32
    %148 = vector.shape_cast %30 : vector<1x16x2xi1> to vector<1x16x2xi1>
    %149 = vector.broadcast %148 : vector<1x16x2xi1> to vector<16x16x2xi1>
    %150 = vector.broadcast %cst_104 : f32 to vector<16x16x2xf32>
    %151 = arith.select %149, %147, %150 : vector<16x16x2xi1>, vector<16x16x2xf32>
    %152 = arith.maximumf %146, %151 : vector<16x16x2xf32>
    %c2_i32_105 = arith.constant 2 : i32
    %153 = tpu.dynamic_rotate %146 by %c2_i32_105 dim 1 : vector<16x16x2xf32>, i32 -> vector<16x16x2xf32>
    %cst_106 = arith.constant 0xFF800000 : f32
    %154 = vector.shape_cast %38 : vector<1x16x2xi1> to vector<1x16x2xi1>
    %155 = vector.broadcast %154 : vector<1x16x2xi1> to vector<16x16x2xi1>
    %156 = vector.broadcast %cst_106 : f32 to vector<16x16x2xf32>
    %157 = arith.select %155, %153, %156 : vector<16x16x2xi1>, vector<16x16x2xf32>
    %158 = arith.maximumf %152, %157 : vector<16x16x2xf32>
    %c14_i32_107 = arith.constant 14 : i32
    %159 = tpu.dynamic_rotate %146 by %c14_i32_107 dim 1 : vector<16x16x2xf32>, i32 -> vector<16x16x2xf32>
    %cst_108 = arith.constant 0xFF800000 : f32
    %160 = vector.shape_cast %46 : vector<1x16x2xi1> to vector<1x16x2xi1>
    %161 = vector.broadcast %160 : vector<1x16x2xi1> to vector<16x16x2xi1>
    %162 = vector.broadcast %cst_108 : f32 to vector<16x16x2xf32>
    %163 = arith.select %161, %159, %162 : vector<16x16x2xi1>, vector<16x16x2xf32>
    %164 = arith.maximumf %158, %163 : vector<16x16x2xf32>
    %c15_i32_109 = arith.constant 15 : i32
    %165 = tpu.dynamic_rotate %146 by %c15_i32_109 dim 1 : vector<16x16x2xf32>, i32 -> vector<16x16x2xf32>
    %cst_110 = arith.constant 0xFF800000 : f32
    %166 = vector.shape_cast %54 : vector<1x16x2xi1> to vector<1x16x2xi1>
    %167 = vector.broadcast %166 : vector<1x16x2xi1> to vector<16x16x2xi1>
    %168 = vector.broadcast %cst_110 : f32 to vector<16x16x2xf32>
    %169 = arith.select %167, %165, %168 : vector<16x16x2xi1>, vector<16x16x2xf32>
    %170 = arith.maximumf %164, %169 : vector<16x16x2xf32>
    %171 = vector.shape_cast %170 : vector<16x16x2xf32> to vector<256x2xf32>
    %c3_111 = arith.constant 3 : index
    %c0_112 = arith.constant 0 : index
    %c0_113 = arith.constant 0 : index
    %172 = vector.load %arg5[%c3_111, %c0_112, %c0_113] : memref<4x2x8xf32, #tpu.memory_space<vmem>>, vector<1x2x8xf32>
    %173 = vector.shape_cast %172 : vector<1x2x8xf32> to vector<2x8xf32>
    %cst_114 = arith.constant dense<0.000000e+00> : vector<256x8xf32>
    %174 = tpu.matmul %171, %173, %cst_114 {dimension_numbers = #tpu.dot_dimension_numbers<[1], [0], [0], [1], [0, 0, 1, 1], [], []>} : vector<256x2xf32>, vector<2x8xf32>, vector<256x8xf32> -> vector<256x8xf32>
    %175 = arith.addf %136, %174 : vector<256x8xf32>
    %c0_115 = arith.constant 0 : index
    %c0_116 = arith.constant 0 : index
    %176 = vector.load %arg6[%c0_115, %c0_116] : memref<1x8xf32, #tpu.memory_space<vmem>>, vector<1x8xf32>
    %177 = vector.broadcast %176 : vector<1x8xf32> to vector<256x8xf32>
    %178 = arith.addf %175, %177 : vector<256x8xf32>
    %cst_117 = arith.constant 3.000000e+00 : f32
    %179 = vector.broadcast %cst_117 : f32 to vector<256x8xf32>
    %180 = arith.addf %178, %179 : vector<256x8xf32>
    %cst_118 = arith.constant 0.000000e+00 : f32
    %cst_119 = arith.constant 6.000000e+00 : f32
    %181 = vector.broadcast %cst_118 : f32 to vector<256x8xf32>
    %182 = arith.maximumf %181, %180 : vector<256x8xf32>
    %183 = vector.broadcast %cst_119 : f32 to vector<256x8xf32>
    %184 = arith.minimumf %183, %182 : vector<256x8xf32>
    %185 = arith.mulf %178, %184 : vector<256x8xf32>
    %cst_120 = arith.constant 0.166666672 : f32
    %186 = vector.broadcast %cst_120 : f32 to vector<256x8xf32>
    %187 = arith.mulf %185, %186 : vector<256x8xf32>
    %188 = vector.shape_cast %187 : vector<256x8xf32> to vector<16x16x8xf32>
    %c0_121 = arith.constant 0 : index
    %c0_122 = arith.constant 0 : index
    %c0_123 = arith.constant 0 : index
    %c0_124 = arith.constant 0 : index
    %189 = vector.load %arg7[%c0_121, %c0_122, %c0_123, %c0_124] : memref<1x16x16x8xf32, #tpu.memory_space<vmem>>, vector<1x16x16x8xf32>
    %190 = vector.shape_cast %189 : vector<1x16x16x8xf32> to vector<16x16x8xf32>
    %191 = vector.shape_cast %188 : vector<16x16x8xf32> to vector<1x16x16x8xf32>
    tpu.vector_store %arg7[%c0_121, %c0_122, %c0_123, %c0_124], %191 {strides = array<i32>} : memref<1x16x16x8xf32, #tpu.memory_space<vmem>>, vector<1x16x16x8xf32>,
    return
  }
  func.func @transform_0(%arg0: i32, %arg1: i32) -> (i32, i32, i32, i32) {
    %c0_i32 = arith.constant 0 : i32
    %c0_i32_0 = arith.constant 0 : i32
    %c0_i32_1 = arith.constant 0 : i32
    %c0_i32_2 = arith.constant 0 : i32
    return %arg0, %c0_i32, %c0_i32_0, %c0_i32_1 : i32, i32, i32, i32
  }
  func.func @transform_1(%arg0: i32, %arg1: i32) -> (i32, i32) {
    %c0_i32 = arith.constant 0 : i32
    %c0_i32_0 = arith.constant 0 : i32
    %c0_i32_1 = arith.constant 0 : i32
    return %c0_i32, %c0_i32_0 : i32, i32
  }
  func.func @transform_2(%arg0: i32, %arg1: i32) -> (i32, i32) {
    %c0_i32 = arith.constant 0 : i32
    %c0_i32_0 = arith.constant 0 : i32
    %c0_i32_1 = arith.constant 0 : i32
    return %c0_i32, %c0_i32_0 : i32, i32
  }
  func.func @transform_3(%arg0: i32, %arg1: i32) -> (i32, i32, i32) {
    %c0_i32 = arith.constant 0 : i32
    %c0_i32_0 = arith.constant 0 : i32
    %c0_i32_1 = arith.constant 0 : i32
    return %c0_i32, %c0_i32_0, %arg1 : i32, i32, i32
  }
  func.func @transform_4(%arg0: i32, %arg1: i32) -> (i32, i32) {
    %c0_i32 = arith.constant 0 : i32
    %c0_i32_0 = arith.constant 0 : i32
    return %c0_i32, %arg1 : i32, i32
  }
  func.func @transform_5(%arg0: i32, %arg1: i32) -> (i32, i32, i32, i32) {
    %c0_i32 = arith.constant 0 : i32
    %c0_i32_0 = arith.constant 0 : i32
    %c0_i32_1 = arith.constant 0 : i32
    return %arg0, %c0_i32, %c0_i32_0, %arg1 : i32, i32, i32, i32
  }
}

</mosaic_0001>

<llo_original>
// kernel: tpu_custom_call.1
$region0: #{tpu_custom_call.1}
  #allocation0 [shape = 'u32[]', space=smem, size = 0x4, offset = 0x4, fixed_abs, tag = 'smem constant byte address 0x4 - core index']
  #allocation1 [shape = 'u32[144,128]{1,0:T(1,128)}', space=vmem, size = 0x12000, scoped, tag = 'internal scratch']
  #allocation2 [shape = 'f32[20,16,2]{2,1,0:T(8,128)}', space=vmem, size = 0x28000, scoped, tag = 'scratch operand']
  %s0 = inlined_call_operand.vmem [shape: f32[2,16,16,4], index: 0, kind: input, shape index: {}]
  %s1 = inlined_call_operand.vmem [shape: f32[4,2], index: 1, kind: input, shape index: {}]
  %s2 = inlined_call_operand.vmem [shape: f32[1,2], index: 2, kind: input, shape index: {}]
  %s3 = inlined_call_operand.vmem [shape: f32[4,2,8], index: 3, kind: input, shape index: {}]
  %s4 = inlined_call_operand.vmem [shape: f32[1,8], index: 4, kind: input, shape index: {}]
  %s5 = inlined_call_operand.vmem [shape: f32[2,16,16,8], index: 5, kind: output, shape index: {}]
  %s6 = sld [smem:[#allocation0]]
  $region53: #{tpu_custom_call.1} parent=0
    _
  %s8 = ssub.s32 1, %s6
  %s9 = scalar_select 0, %s8, %s6
  loop: start=0, step=1, limit=4
  $region2: #{tpu_custom_call.1} parent=0 // loop_pre_header
    _
  $region3: #{tpu_custom_call.1} parent=0 // loop_header
    %s11 = sphi 0, %s15
    %p12 = scmp.ge.s32.totalorder %s11, 4
    %s18 = sphi 0, %s30
    %s19 = sphi 0, %s26
    %s20 = sphi 0, %s18
    %s21 = sphi 0, %s19
    %s22 = sphi 0, %s20
    %s23 = sphi 0, %s21
    %s33 = sphi 0, %s35
    %s36 = sphi 0, %s33
    %s37 = sphi 0, %s36
    %s53 = sphi 0, %s37
    %s57 = sphi 0, %s57
    %s59 = sphi 0, %s57
    %s60 = sphi 0, %s59
    %s74 = sphi 0, %s60
    %s78 = sphi 0, %s78
    %s80 = sphi 0, %s78
    %s81 = sphi 0, %s80
    %s95 = sphi 0, %s81
    %s101 = sphi 0, %s103
    %s104 = sphi 0, %s101
    %s105 = sphi 0, %s104
    %s121 = sphi 0, %s105
    %s127 = sphi 0, %s129
    %s130 = sphi 0, %s127
    %s131 = sphi 0, %s130
    %s147 = sphi 0, %s131
    %s155 = sphi 0, %s157
    %s158 = sphi 0, %s155
    %s159 = sphi 0, %s158
    %s175 = sphi 0, %s159
  $region4: #{tpu_custom_call.1} parent=0 // loop_header_branch
    %14 = sbr.rel (%p12) target = $region8
  $region5: #{tpu_custom_call.1} parent=0 // loop_body
    %s16 = ssub.s32 %s11, 1
    %s17 = ssub.s32 %s11, 2
    %s24 = sadd.s32 1, %s19
    %p25 = scmp.ge.s32.totalorder %s24, 1
    %s26 = scalar_select %p25, 0, %s24
    %s27 = sadd.s32 1, %s18
    %s28 = scalar_select %p25, %s27, %s18
    %p29 = scmp.ge.s32.totalorder %s28, 2
    %s30 = scalar_select %p29, 0, %s28
    %s31 = ssub.s32 %s18, %s30
    %p32 = scmp.eq.s32.totalorder %s31, 0
    %s34 = sadd.s32 %s33, 1
    %s35 = scalar_select %p32, %s33, %s34
    %p38 = pneg %p32
    %p39 = scmp.eq.s32.totalorder %s11, 1
    %p40 = por %p38, %p39
    %p41 = scmp.ne.s32.totalorder %s33, %s36
    %p42 = scmp.eq.s32.totalorder %s11, 0
    %p43 = por %p41, %p42
    %p44 = scmp.ne.s32.totalorder %s33, %s36
    %p45 = scmp.eq.s32.totalorder %s16, 1
    %p46 = por %p44, %p45
    %p47 = scmp.ne.s32.totalorder %s36, %s37
    %p48 = scmp.eq.s32.totalorder %s16, 0
    %p49 = por %p47, %p48
    %p50 = scmp.ne.s32.totalorder %s36, %s37
    %p51 = scmp.eq.s32.totalorder %s17, 1
    %p52 = por %p50, %p51
    %p54 = scmp.ne.s32.totalorder %s37, %s53
    %p55 = scmp.eq.s32.totalorder %s17, 0
    %p56 = por %p54, %p55
    %s58 = sadd.s32 %s57, 1
    %p61 = scmp.eq.s32.totalorder %s11, 1
    %p62 = scmp.ne.s32.totalorder %s57, %s59
    %p63 = scmp.eq.s32.totalorder %s11, 0
    %p64 = por %p62, %p63
    %p65 = scmp.ne.s32.totalorder %s57, %s59
    %p66 = scmp.eq.s32.totalorder %s16, 1
    %p67 = por %p65, %p66
    %p68 = scmp.ne.s32.totalorder %s59, %s60
    %p69 = scmp.eq.s32.totalorder %s16, 0
    %p70 = por %p68, %p69
    %p71 = scmp.ne.s32.totalorder %s59, %s60
    %p72 = scmp.eq.s32.totalorder %s17, 1
    %p73 = por %p71, %p72
    %p75 = scmp.ne.s32.totalorder %s60, %s74
    %p76 = scmp.eq.s32.totalorder %s17, 0
    %p77 = por %p75, %p76
    %s79 = sadd.s32 %s78, 1
    %p82 = scmp.eq.s32.totalorder %s11, 1
    %p83 = scmp.ne.s32.totalorder %s78, %s80
    %p84 = scmp.eq.s32.totalorder %s11, 0
    %p85 = por %p83, %p84
    %p86 = scmp.ne.s32.totalorder %s78, %s80
    %p87 = scmp.eq.s32.totalorder %s16, 1
    %p88 = por %p86, %p87
    %p89 = scmp.ne.s32.totalorder %s80, %s81
    %p90 = scmp.eq.s32.totalorder %s16, 0
    %p91 = por %p89, %p90
    %p92 = scmp.ne.s32.totalorder %s80, %s81
    %p93 = scmp.eq.s32.totalorder %s17, 1
    %p94 = por %p92, %p93
    %p96 = scmp.ne.s32.totalorder %s81, %s95
    %p97 = scmp.eq.s32.totalorder %s17, 0
    %p98 = por %p96, %p97
    %s99 = ssub.s32 %s19, %s26
    %p100 = scmp.eq.s32.totalorder %s99, 0
    %s102 = sadd.s32 %s101, 1
    %s103 = scalar_select %p100, %s101, %s102
    %p106 = pneg %p100
    %p107 = scmp.eq.s32.totalorder %s11, 1
    %p108 = por %p106, %p107
    %p109 = scmp.ne.s32.totalorder %s101, %s104
    %p110 = scmp.eq.s32.totalorder %s11, 0
    %p111 = por %p109, %p110
    %p112 = scmp.ne.s32.totalorder %s101, %s104
    %p113 = scmp.eq.s32.totalorder %s16, 1
    %p114 = por %p112, %p113
    %p115 = scmp.ne.s32.totalorder %s104, %s105
    %p116 = scmp.eq.s32.totalorder %s16, 0
    %p117 = por %p115, %p116
    %p118 = scmp.ne.s32.totalorder %s104, %s105
    %p119 = scmp.eq.s32.totalorder %s17, 1
    %p120 = por %p118, %p119
    %p122 = scmp.ne.s32.totalorder %s105, %s121
    %p123 = scmp.eq.s32.totalorder %s17, 0
    %p124 = por %p122, %p123
    %s125 = ssub.s32 %s19, %s26
    %p126 = scmp.eq.s32.totalorder %s125, 0
    %s128 = sadd.s32 %s127, 1
    %s129 = scalar_select %p126, %s127, %s128
    %p132 = pneg %p126
    %p133 = scmp.eq.s32.totalorder %s11, 1
    %p134 = por %p132, %p133
    %p135 = scmp.ne.s32.totalorder %s127, %s130
    %p136 = scmp.eq.s32.totalorder %s11, 0
    %p137 = por %p135, %p136
    %p138 = scmp.ne.s32.totalorder %s127, %s130
    %p139 = scmp.eq.s32.totalorder %s16, 1
    %p140 = por %p138, %p139
    %p141 = scmp.ne.s32.totalorder %s130, %s131
    %p142 = scmp.eq.s32.totalorder %s16, 0
    %p143 = por %p141, %p142
    %p144 = scmp.ne.s32.totalorder %s130, %s131
    %p145 = scmp.eq.s32.totalorder %s17, 1
    %p146 = por %p144, %p145
    %p148 = scmp.ne.s32.totalorder %s131, %s147
    %p149 = scmp.eq.s32.totalorder %s17, 0
    %p150 = por %p148, %p149
    %s151 = ssub.s32 %s18, %s30
    %s152 = ssub.s32 %s19, %s26
    %s153 = sor.u32 %s151, %s152
    %p154 = scmp.eq.s32.totalorder %s153, 0
    %s156 = sadd.s32 %s155, 1
    %s157 = scalar_select %p154, %s155, %s156
    %p160 = pneg %p154
    %p161 = scmp.eq.s32.totalorder %s11, 1
    %p162 = por %p160, %p161
    %p163 = scmp.ne.s32.totalorder %s155, %s158
    %p164 = scmp.eq.s32.totalorder %s11, 0
    %p165 = por %p163, %p164
    %p166 = scmp.ne.s32.totalorder %s155, %s158
    %p167 = scmp.eq.s32.totalorder %s16, 1
    %p168 = por %p166, %p167
    %p169 = scmp.ne.s32.totalorder %s158, %s159
    %p170 = scmp.eq.s32.totalorder %s16, 0
    %p171 = por %p169, %p170
    %p172 = scmp.ne.s32.totalorder %s158, %s159
    %p173 = scmp.eq.s32.totalorder %s17, 1
    %p174 = por %p172, %p173
    %p176 = scmp.ne.s32.totalorder %s159, %s175
    %p177 = scmp.eq.s32.totalorder %s17, 0
    %p178 = por %p176, %p177
    %p179 = scmp.le.s32.totalorder 1, %s11
    %p180 = scmp.lt.s32.totalorder %s11, 3
    %p181 = pnand %p179, %p180
    %p182 = pneg %p181
    // Predicated region
    $region9: #{tpu_custom_call.1} parent=5 // pred_check
      _
    $region10: #{tpu_custom_call.1} parent=5 // pred_check_branch
      %184 = sbr.rel (%p181) target = $region12
    $region11: #{tpu_custom_call.1} parent=5 // pred_region
      %s185 = ssub.s32 %s11, 1
      // Predicated region
      $region13: #{tpu_custom_call.1} parent=11 // pred_check
        %p186 = pneg %p70
      $region14: #{tpu_custom_call.1} parent=11 // pred_check_branch
        %188 = sbr.rel (%p186) target = $region16
      $region15: #{tpu_custom_call.1} parent=11 // pred_region
        _
      $region16: #{tpu_custom_call.1} parent=11 // pred_fallthru
        _
      // Predicated region
      $region17: #{tpu_custom_call.1} parent=11 // pred_check
        %p189 = pneg %p91
      $region18: #{tpu_custom_call.1} parent=11 // pred_check_branch
        %191 = sbr.rel (%p189) target = $region20
      $region19: #{tpu_custom_call.1} parent=11 // pred_region
        _
      $region20: #{tpu_custom_call.1} parent=11 // pred_fallthru
        _
      // Predicated region
      $region21: #{tpu_custom_call.1} parent=11 // pred_check
        %p192 = pneg %p117
      $region22: #{tpu_custom_call.1} parent=11 // pred_check_branch
        %194 = sbr.rel (%p192) target = $region24
      $region23: #{tpu_custom_call.1} parent=11 // pred_region
        %p195 = scmp.lt.s32.totalorder %s21, 0
        %s196 = scalar_select %p195, %s21, 0
        %s197 = smul.addr %s196, 2
        %s198 = scalar_lea.vmem %s3, %s197
      $region24: #{tpu_custom_call.1} parent=11 // pred_fallthru
        _
      // Predicated region
      $region25: #{tpu_custom_call.1} parent=11 // pred_check
        %p199 = pneg %p143
      $region26: #{tpu_custom_call.1} parent=11 // pred_check_branch
        %201 = sbr.rel (%p199) target = $region28
      $region27: #{tpu_custom_call.1} parent=11 // pred_region
        %p202 = scmp.lt.s32.totalorder %s21, 0
        %s203 = scalar_select %p202, %s21, 0
        %s204 = scalar_lea.vmem %s4, %s203
      $region28: #{tpu_custom_call.1} parent=11 // pred_fallthru
        _
    $region12: #{tpu_custom_call.1} parent=5 // pred_fallthru
      _
    %p205 = scmp.lt.s32.totalorder %s11, 2
    // Predicated region
    $region29: #{tpu_custom_call.1} parent=5 // pred_check
      %p206 = pneg %p205
    $region30: #{tpu_custom_call.1} parent=5 // pred_check_branch
      %208 = sbr.rel (%p206) target = $region32
    $region31: #{tpu_custom_call.1} parent=5 // pred_region
      // Predicated region
      $region33: #{tpu_custom_call.1} parent=31 // pred_check
        %p209 = pneg %p43
      $region34: #{tpu_custom_call.1} parent=31 // pred_check_branch
        %211 = sbr.rel (%p209) target = $region36
      $region35: #{tpu_custom_call.1} parent=31 // pred_region
        %p212 = scmp.lt.s32.totalorder %s18, 1
        %s213 = scalar_select %p212, %s18, 1
        %s214 = smul.addr %s213, 32
        %s215 = smul.addr %s214, 8
        %s216 = scalar_lea.vmem %s0, %s215
      $region36: #{tpu_custom_call.1} parent=31 // pred_fallthru
        _
    $region32: #{tpu_custom_call.1} parent=5 // pred_fallthru
      _
    %p217 = scmp.le.s32.totalorder 1, %s11
    %p218 = scmp.lt.s32.totalorder %s11, 3
    %p219 = pnand %p217, %p218
    %p220 = pneg %p219
    // Predicated region
    $region37: #{tpu_custom_call.1} parent=5 // pred_check
      _
    $region38: #{tpu_custom_call.1} parent=5 // pred_check_branch
      %222 = sbr.rel (%p219) target = $region40
    $region39: #{tpu_custom_call.1} parent=5 // pred_region
      %s223 = ssub.s32 %s11, 1
      %p224 = scmp.lt.s32.totalorder %s20, 1
      %s225 = scalar_select %p224, %s20, 1
      %s226 = smul.addr %s225, 32
      %s227 = smul.addr %s226, 8
      %s228 = scalar_lea.vmem %s0, %s227
      %p229 = pneg %p49
      %p230 = pneg %p46
      %p231 = pneg %p70
      %p232 = pneg %p67
      %p233 = pneg %p91
      %p234 = pneg %p88
      %p235 = scmp.lt.s32.totalorder %s21, 0
      %s236 = scalar_select %p235, %s21, 0
      %s237 = smul.addr %s236, 2
      %s238 = scalar_lea.vmem %s3, %s237
      %p239 = pneg %p117
      %p240 = pneg %p114
      %p241 = scmp.lt.s32.totalorder %s21, 0
      %s242 = scalar_select %p241, %s21, 0
      %s243 = scalar_lea.vmem %s4, %s242
      %p244 = pneg %p143
      %p245 = pneg %p140
      %p246 = pneg %p171
      %p247 = pneg %p168
      %p248 = scmp.lt.s32.totalorder %s20, 1
      %s249 = scalar_select %p248, %s20, 1
      %p250 = scmp.lt.s32.totalorder %s21, 0
      %s251 = scalar_select %p250, %s21, 0
      %s252 = smul.addr %s249, 32
      %s253 = sadd.s32 %s251, %s252
      %s254 = smul.addr %s253, 8
      %s255 = scalar_lea.vmem %s5, %s254
      %p256 = scmp.lt.s32.totalorder %s20, 1
      %s257 = scalar_select %p256, %s20, 1
      %s258 = smul.addr %s257, 32
      %s259 = smul.addr %s258, 8
      %s260 = scalar_lea.vmem %s0, %s259
      %p261 = scmp.lt.s32.totalorder %s21, 0
      %s262 = scalar_select %p261, %s21, 0
      %s263 = smul.addr %s262, 2
      %s264 = scalar_lea.vmem %s3, %s263
      %p265 = scmp.lt.s32.totalorder %s21, 0
      %s266 = scalar_select %p265, %s21, 0
      %s267 = scalar_lea.vmem %s4, %s266
      %p268 = scmp.lt.s32.totalorder %s20, 1
      %s269 = scalar_select %p268, %s20, 1
      %p270 = scmp.lt.s32.totalorder %s21, 0
      %s271 = scalar_select %p270, %s21, 0
      %s272 = smul.addr %s269, 32
      %s273 = sadd.s32 %s271, %s272
      %s274 = smul.addr %s273, 8
      %s275 = scalar_lea.vmem %s5, %s274
      %v276 = vld [vmem:[%s260] sm:$0xff]
      %v277 = vld [vmem:[%s260 + $0x8] sm:$0xff]
      %v278 = vld [vmem:[%s260 + $0x10] sm:$0xff]
      %v279 = vld [vmem:[%s260 + $0x18] sm:$0xff]
      %v280 = vld [vmem:[%s260 + $0x20] sm:$0xff]
      %v281 = vld [vmem:[%s260 + $0x28] sm:$0xff]
      %v282 = vld [vmem:[%s260 + $0x30] sm:$0xff]
      %v283 = vld [vmem:[%s260 + $0x38] sm:$0xff]
      %v284 = vld [vmem:[%s260 + $0x40] sm:$0xff]
      %v285 = vld [vmem:[%s260 + $0x48] sm:$0xff]
      %v286 = vld [vmem:[%s260 + $0x50] sm:$0xff]
      %v287 = vld [vmem:[%s260 + $0x58] sm:$0xff]
      %v288 = vld [vmem:[%s260 + $0x60] sm:$0xff]
      %v289 = vld [vmem:[%s260 + $0x68] sm:$0xff]
      %v290 = vld [vmem:[%s260 + $0x70] sm:$0xff]
      %v291 = vld [vmem:[%s260 + $0x78] sm:$0xff]
      %v292 = vld [vmem:[%s260 + $0x80] sm:$0xff]
      %v293 = vld [vmem:[%s260 + $0x88] sm:$0xff]
      %v294 = vld [vmem:[%s260 + $0x90] sm:$0xff]
      %v295 = vld [vmem:[%s260 + $0x98] sm:$0xff]
      %v296 = vld [vmem:[%s260 + $0xa0] sm:$0xff]
      %v297 = vld [vmem:[%s260 + $0xa8] sm:$0xff]
      %v298 = vld [vmem:[%s260 + $0xb0] sm:$0xff]
      %v299 = vld [vmem:[%s260 + $0xb8] sm:$0xff]
      %v300 = vld [vmem:[%s260 + $0xc0] sm:$0xff]
      %v301 = vld [vmem:[%s260 + $0xc8] sm:$0xff]
      %v302 = vld [vmem:[%s260 + $0xd0] sm:$0xff]
      %v303 = vld [vmem:[%s260 + $0xd8] sm:$0xff]
      %v304 = vld [vmem:[%s260 + $0xe0] sm:$0xff]
      %v305 = vld [vmem:[%s260 + $0xe8] sm:$0xff]
      %v306 = vld [vmem:[%s260 + $0xf0] sm:$0xff]
      %v307 = vld [vmem:[%s260 + $0xf8] sm:$0xff]
      %v308 = vld [vmem:[%s1] sm:$0xf]
      %v309 = vld [vmem:[%s2] sm:$0x1]
      %v311 = vlaneseq
      %v312 = vshrl.u32 %v311, 7
      %v313 = vsub.s32 0, %v312
      %v314 = vrot.slane %v309, %v313
      %vm316 = vcmask 31744
      %v318 = vsel %vm316, %v276, 0
      %v321 = vsel %vm316, %v277, 0
      %v324 = vsel %vm316, %v278, 0
      %v327 = vsel %vm316, %v279, 0
      %v330 = vsel %vm316, %v280, 0
      %v333 = vsel %vm316, %v281, 0
      %v336 = vsel %vm316, %v282, 0
      %v339 = vsel %vm316, %v283, 0
      %v342 = vsel %vm316, %v284, 0
      %v345 = vsel %vm316, %v285, 0
      %v348 = vsel %vm316, %v286, 0
      %v351 = vsel %vm316, %v287, 0
      %v354 = vsel %vm316, %v288, 0
      %v357 = vsel %vm316, %v289, 0
      %v360 = vsel %vm316, %v290, 0
      %v363 = vsel %vm316, %v291, 0
      %v366 = vsel %vm316, %v292, 0
      %v369 = vsel %vm316, %v293, 0
      %v372 = vsel %vm316, %v294, 0
      %v375 = vsel %vm316, %v295, 0
      %v378 = vsel %vm316, %v296, 0
      %v381 = vsel %vm316, %v297, 0
      %v384 = vsel %vm316, %v298, 0
      %v387 = vsel %vm316, %v299, 0
      %v390 = vsel %vm316, %v300, 0
      %v393 = vsel %vm316, %v301, 0
      %v396 = vsel %vm316, %v302, 0
      %v399 = vsel %vm316, %v303, 0
      %v402 = vsel %vm316, %v304, 0
      %v405 = vsel %vm316, %v305, 0
      %v408 = vsel %vm316, %v306, 0
      %v411 = vsel %vm316, %v307, 0
      %vm413 = vcmask 1043456
      %v415 = vsel %vm413, %v308, 0
      %417 = vmatprep.subr.mxu0 0.0
      %418 = vmatpush1.msra.mxu0 %v415
      %419 = vmatprep.subr.mxu0 0.0
      %420 = vmatpush1.msra.mxu0 0.0
      %421 = vmatprep.subr.mxu0 0.0
      %422 = vmatpush1.msra.mxu0 0.0
      %423 = vmatprep.subr.mxu0 0.0
      %424 = vmatpush1.msra.mxu0 0.0
      %425 = vmatprep.subr.mxu0 0.0
      %426 = vmatpush1.msra.mxu0 0.0
      %427 = vmatprep.subr.mxu0 0.0
      %428 = vmatpush1.msra.mxu0 0.0
      %429 = vmatprep.subr.mxu0 0.0
      %430 = vmatpush1.msra.mxu0 0.0
      %431 = vmatprep.subr.mxu0 0.0
      %432 = vmatpush1.msra.mxu0 0.0
      %433 = vmatprep.subr.mxu0 0.0
      %434 = vmatpush1.msra.mxu0 0.0
      %435 = vmatprep.subr.mxu0 0.0
      %436 = vmatpush1.msra.mxu0 0.0
      %437 = vmatprep.subr.mxu0 0.0
      %438 = vmatpush1.msra.mxu0 0.0
      %439 = vmatprep.subr.mxu0 0.0
      %440 = vmatpush1.msra.mxu0 0.0
      %441 = vmatprep.subr.mxu0 0.0
      %442 = vmatpush1.msra.mxu0 0.0
      %443 = vmatprep.subr.mxu0 0.0
      %444 = vmatpush1.msra.mxu0 0.0
      %445 = vmatprep.subr.mxu0 0.0
      %446 = vmatpush1.msra.mxu0 0.0
      %447 = vmatprep.subr.mxu0 0.0
      %448 = vmatpush1.msra.mxu0 0.0
      %449 = vmatprep.subr.mxu0 0.0
      %450 = vmatpush1.msra.mxu0 0.0
      %451 = vmatprep.subr.mxu0 0.0
      %452 = vmatpush1.msra.mxu0 0.0
      %453 = vmatprep.subr.mxu0 0.0
      %454 = vmatpush1.msra.mxu0 0.0
      %455 = vmatprep.subr.mxu0 0.0
      %456 = vmatpush1.msra.mxu0 0.0
      %457 = vmatprep.subr.mxu0 0.0
      %458 = vmatpush1.msra.mxu0 0.0
      %459 = vmatprep.subr.mxu0 0.0
      %460 = vmatpush1.msra.mxu0 0.0
      %461 = vmatprep.subr.mxu0 0.0
      %462 = vmatpush1.msra.mxu0 0.0
      %463 = vmatprep.subr.mxu0 0.0
      %464 = vmatpush1.msra.mxu0 0.0
      %465 = vmatprep.subr.mxu0 0.0
      %466 = vmatpush1.msra.mxu0 0.0
      %467 = vmatprep.subr.mxu0 0.0
      %468 = vmatpush1.msra.mxu0 0.0
      %469 = vmatprep.subr.mxu0 0.0
      %470 = vmatpush1.msra.mxu0 0.0
      %471 = vmatprep.subr.mxu0 0.0
      %472 = vmatpush1.msra.mxu0 0.0
      %473 = vmatprep.subr.mxu0 0.0
      %474 = vmatpush1.msra.mxu0 0.0
      %475 = vmatprep.subr.mxu0 0.0
      %476 = vmatpush1.msra.mxu0 0.0
      %477 = vmatprep.subr.mxu0 0.0
      %478 = vmatpush1.msra.mxu0 0.0
      %479 = vmatprep.subr.mxu0 0.0
      %480 = vmatpush1.msra.mxu0 0.0
      %481 = vmatprep.mubr.f32.mxu0 0.0
      %482 = vmatmul.mubr.f32.gmra.mrb[0].mxu0 %v318
      %v483 = vpop.f32.mrb[0].mxu0
      %v484 = vadd.f32 %v314, %v483
      %v485 = vpop.f32.mrb[0].mxu0
      %486 = vmatprep.mubr.f32.mxu0 0.0
      %487 = vmatmul.mubr.f32.gmra.mrb[0].mxu0 %v321
      %v488 = vpop.f32.mrb[0].mxu0
      %v489 = vadd.f32 %v314, %v488
      %v490 = vpop.f32.mrb[0].mxu0
      %491 = vmatprep.mubr.f32.mxu0 0.0
      %492 = vmatmul.mubr.f32.gmra.mrb[0].mxu0 %v324
      %v493 = vpop.f32.mrb[0].mxu0
      %v494 = vadd.f32 %v314, %v493
      %v495 = vpop.f32.mrb[0].mxu0
      %496 = vmatprep.mubr.f32.mxu0 0.0
      %497 = vmatmul.mubr.f32.gmra.mrb[0].mxu0 %v327
      %v498 = vpop.f32.mrb[0].mxu0
      %v499 = vadd.f32 %v314, %v498
      %v500 = vpop.f32.mrb[0].mxu0
      %501 = vmatprep.mubr.f32.mxu0 0.0
      %502 = vmatmul.mubr.f32.gmra.mrb[0].mxu0 %v330
      %v503 = vpop.f32.mrb[0].mxu0
      %v504 = vadd.f32 %v314, %v503
      %v505 = vpop.f32.mrb[0].mxu0
      %506 = vmatprep.mubr.f32.mxu0 0.0
      %507 = vmatmul.mubr.f32.gmra.mrb[0].mxu0 %v333
      %v508 = vpop.f32.mrb[0].mxu0
      %v509 = vadd.f32 %v314, %v508
      %v510 = vpop.f32.mrb[0].mxu0
      %511 = vmatprep.mubr.f32.mxu0 0.0
      %512 = vmatmul.mubr.f32.gmra.mrb[0].mxu0 %v336
      %v513 = vpop.f32.mrb[0].mxu0
      %v514 = vadd.f32 %v314, %v513
      %v515 = vpop.f32.mrb[0].mxu0
      %516 = vmatprep.mubr.f32.mxu0 0.0
      %517 = vmatmul.mubr.f32.gmra.mrb[0].mxu0 %v339
      %v518 = vpop.f32.mrb[0].mxu0
      %v519 = vadd.f32 %v314, %v518
      %v520 = vpop.f32.mrb[0].mxu0
      %521 = vmatprep.mubr.f32.mxu0 0.0
      %522 = vmatmul.mubr.f32.gmra.mrb[0].mxu0 %v342
      %v523 = vpop.f32.mrb[0].mxu0
      %v524 = vadd.f32 %v314, %v523
      %v525 = vpop.f32.mrb[0].mxu0
      %526 = vmatprep.mubr.f32.mxu0 0.0
      %527 = vmatmul.mubr.f32.gmra.mrb[0].mxu0 %v345
      %v528 = vpop.f32.mrb[0].mxu0
      %v529 = vadd.f32 %v314, %v528
      %v530 = vpop.f32.mrb[0].mxu0
      %531 = vmatprep.mubr.f32.mxu0 0.0
      %532 = vmatmul.mubr.f32.gmra.mrb[0].mxu0 %v348
      %v533 = vpop.f32.mrb[0].mxu0
      %v534 = vadd.f32 %v314, %v533
      %v535 = vpop.f32.mrb[0].mxu0
      %536 = vmatprep.mubr.f32.mxu0 0.0
      %537 = vmatmul.mubr.f32.gmra.mrb[0].mxu0 %v351
      %v538 = vpop.f32.mrb[0].mxu0
      %v539 = vadd.f32 %v314, %v538
      %v540 = vpop.f32.mrb[0].mxu0
      %541 = vmatprep.mubr.f32.mxu0 0.0
      %542 = vmatmul.mubr.f32.gmra.mrb[0].mxu0 %v354
      %v543 = vpop.f32.mrb[0].mxu0
      %v544 = vadd.f32 %v314, %v543
      %v545 = vpop.f32.mrb[0].mxu0
      %546 = vmatprep.mubr.f32.mxu0 0.0
      %547 = vmatmul.mubr.f32.gmra.mrb[0].mxu0 %v357
      %v548 = vpop.f32.mrb[0].mxu0
      %v549 = vadd.f32 %v314, %v548
      %v550 = vpop.f32.mrb[0].mxu0
      %551 = vmatprep.mubr.f32.mxu0 0.0
      %552 = vmatmul.mubr.f32.gmra.mrb[0].mxu0 %v360
      %v553 = vpop.f32.mrb[0].mxu0
      %v554 = vadd.f32 %v314, %v553
      %v555 = vpop.f32.mrb[0].mxu0
      %556 = vmatprep.mubr.f32.mxu0 0.0
      %557 = vmatmul.mubr.f32.gmra.mrb[0].mxu0 %v363
      %v558 = vpop.f32.mrb[0].mxu0
      %v559 = vadd.f32 %v314, %v558
      %v560 = vpop.f32.mrb[0].mxu0
      %561 = vmatprep.mubr.f32.mxu0 0.0
      %562 = vmatmul.mubr.f32.gmra.mrb[0].mxu0 %v366
      %v563 = vpop.f32.mrb[0].mxu0
      %v564 = vadd.f32 %v314, %v563
      %v565 = vpop.f32.mrb[0].mxu0
      %566 = vmatprep.mubr.f32.mxu0 0.0
      %567 = vmatmul.mubr.f32.gmra.mrb[0].mxu0 %v369
      %v568 = vpop.f32.mrb[0].mxu0
      %v569 = vadd.f32 %v314, %v568
      %v570 = vpop.f32.mrb[0].mxu0
      %571 = vmatprep.mubr.f32.mxu0 0.0
      %572 = vmatmul.mubr.f32.gmra.mrb[0].mxu0 %v372
      %v573 = vpop.f32.mrb[0].mxu0
      %v574 = vadd.f32 %v314, %v573
      %v575 = vpop.f32.mrb[0].mxu0
      %576 = vmatprep.mubr.f32.mxu0 0.0
      %577 = vmatmul.mubr.f32.gmra.mrb[0].mxu0 %v375
      %v578 = vpop.f32.mrb[0].mxu0
      %v579 = vadd.f32 %v314, %v578
      %v580 = vpop.f32.mrb[0].mxu0
      %581 = vmatprep.mubr.f32.mxu0 0.0
      %582 = vmatmul.mubr.f32.gmra.mrb[0].mxu0 %v378
      %v583 = vpop.f32.mrb[0].mxu0
      %v584 = vadd.f32 %v314, %v583
      %v585 = vpop.f32.mrb[0].mxu0
      %586 = vmatprep.mubr.f32.mxu0 0.0
      %587 = vmatmul.mubr.f32.gmra.mrb[0].mxu0 %v381
      %v588 = vpop.f32.mrb[0].mxu0
      %v589 = vadd.f32 %v314, %v588
      %v590 = vpop.f32.mrb[0].mxu0
      %591 = vmatprep.mubr.f32.mxu0 0.0
      %592 = vmatmul.mubr.f32.gmra.mrb[0].mxu0 %v384
      %v593 = vpop.f32.mrb[0].mxu0
      %v594 = vadd.f32 %v314, %v593
      %v595 = vpop.f32.mrb[0].mxu0
      %596 = vmatprep.mubr.f32.mxu0 0.0
      %597 = vmatmul.mubr.f32.gmra.mrb[0].mxu0 %v387
      %v598 = vpop.f32.mrb[0].mxu0
      %v599 = vadd.f32 %v314, %v598
      %v600 = vpop.f32.mrb[0].mxu0
      %601 = vmatprep.mubr.f32.mxu0 0.0
      %602 = vmatmul.mubr.f32.gmra.mrb[0].mxu0 %v390
      %v603 = vpop.f32.mrb[0].mxu0
      %v604 = vadd.f32 %v314, %v603
      %v605 = vpop.f32.mrb[0].mxu0
      %606 = vmatprep.mubr.f32.mxu0 0.0
      %607 = vmatmul.mubr.f32.gmra.mrb[0].mxu0 %v393
      %v608 = vpop.f32.mrb[0].mxu0
      %v609 = vadd.f32 %v314, %v608
      %v610 = vpop.f32.mrb[0].mxu0
      %611 = vmatprep.mubr.f32.mxu0 0.0
      %612 = vmatmul.mubr.f32.gmra.mrb[0].mxu0 %v396
      %v613 = vpop.f32.mrb[0].mxu0
      %v614 = vadd.f32 %v314, %v613
      %v615 = vpop.f32.mrb[0].mxu0
      %616 = vmatprep.mubr.f32.mxu0 0.0
      %617 = vmatmul.mubr.f32.gmra.mrb[0].mxu0 %v399
      %v618 = vpop.f32.mrb[0].mxu0
      %v619 = vadd.f32 %v314, %v618
      %v620 = vpop.f32.mrb[0].mxu0
      %621 = vmatprep.mubr.f32.mxu0 0.0
      %622 = vmatmul.mubr.f32.gmra.mrb[0].mxu0 %v402
      %v623 = vpop.f32.mrb[0].mxu0
      %v624 = vadd.f32 %v314, %v623
      %v625 = vpop.f32.mrb[0].mxu0
      %626 = vmatprep.mubr.f32.mxu0 0.0
      %627 = vmatmul.mubr.f32.gmra.mrb[0].mxu0 %v405
      %v628 = vpop.f32.mrb[0].mxu0
      %v629 = vadd.f32 %v314, %v628
      %v630 = vpop.f32.mrb[0].mxu0
      %631 = vmatprep.mubr.f32.mxu0 0.0
      %632 = vmatmul.mubr.f32.gmra.mrb[0].mxu0 %v408
      %v633 = vpop.f32.mrb[0].mxu0
      %v634 = vadd.f32 %v314, %v633
      %v635 = vpop.f32.mrb[0].mxu0
      %636 = vmatprep.mubr.f32.mxu0 0.0
      %637 = vmatmul.mubr.f32.gmra.mrb[0].mxu0 %v411
      %v638 = vpop.f32.mrb[0].mxu0
      %v639 = vadd.f32 %v314, %v638
      %v640 = vpop.f32.mrb[0].mxu0
      %641 = vdwg.mxu0
      %v642 = vadd.f32 %v484, 3.0
      %v643 = vadd.f32 %v489, 3.0
      %v644 = vadd.f32 %v494, 3.0
      %v645 = vadd.f32 %v499, 3.0
      %v646 = vadd.f32 %v504, 3.0
      %v647 = vadd.f32 %v509, 3.0
      %v648 = vadd.f32 %v514, 3.0
      %v649 = vadd.f32 %v519, 3.0
      %v650 = vadd.f32 %v524, 3.0
      %v651 = vadd.f32 %v529, 3.0
      %v652 = vadd.f32 %v534, 3.0
      %v653 = vadd.f32 %v539, 3.0
      %v654 = vadd.f32 %v544, 3.0
      %v655 = vadd.f32 %v549, 3.0
      %v656 = vadd.f32 %v554, 3.0
      %v657 = vadd.f32 %v559, 3.0
      %v658 = vadd.f32 %v564, 3.0
      %v659 = vadd.f32 %v569, 3.0
      %v660 = vadd.f32 %v574, 3.0
      %v661 = vadd.f32 %v579, 3.0
      %v662 = vadd.f32 %v584, 3.0
      %v663 = vadd.f32 %v589, 3.0
      %v664 = vadd.f32 %v594, 3.0
      %v665 = vadd.f32 %v599, 3.0
      %v666 = vadd.f32 %v604, 3.0
      %v667 = vadd.f32 %v609, 3.0
      %v668 = vadd.f32 %v614, 3.0
      %v669 = vadd.f32 %v619, 3.0
      %v670 = vadd.f32 %v624, 3.0
      %v671 = vadd.f32 %v629, 3.0
      %v672 = vadd.f32 %v634, 3.0
      %v673 = vadd.f32 %v639, 3.0
      %v674 = vmax.f32 %v642, 0.0
      %v675 = vmax.f32 %v643, 0.0
      %v676 = vmax.f32 %v644, 0.0
      %v677 = vmax.f32 %v645, 0.0
      %v678 = vmax.f32 %v646, 0.0
      %v679 = vmax.f32 %v647, 0.0
      %v680 = vmax.f32 %v648, 0.0
      %v681 = vmax.f32 %v649, 0.0
      %v682 = vmax.f32 %v650, 0.0
      %v683 = vmax.f32 %v651, 0.0
      %v684 = vmax.f32 %v652, 0.0
      %v685 = vmax.f32 %v653, 0.0
      %v686 = vmax.f32 %v654, 0.0
      %v687 = vmax.f32 %v655, 0.0
      %v688 = vmax.f32 %v656, 0.0
      %v689 = vmax.f32 %v657, 0.0
      %v690 = vmax.f32 %v658, 0.0
      %v691 = vmax.f32 %v659, 0.0
      %v692 = vmax.f32 %v660, 0.0
      %v693 = vmax.f32 %v661, 0.0
      %v694 = vmax.f32 %v662, 0.0
      %v695 = vmax.f32 %v663, 0.0
      %v696 = vmax.f32 %v664, 0.0
      %v697 = vmax.f32 %v665, 0.0
      %v698 = vmax.f32 %v666, 0.0
      %v699 = vmax.f32 %v667, 0.0
      %v700 = vmax.f32 %v668, 0.0
      %v701 = vmax.f32 %v669, 0.0
      %v702 = vmax.f32 %v670, 0.0
      %v703 = vmax.f32 %v671, 0.0
      %v704 = vmax.f32 %v672, 0.0
      %v705 = vmax.f32 %v673, 0.0
      %v706 = vmin.f32 %v674, 6.0
      %v707 = vmin.f32 %v675, 6.0
      %v708 = vmin.f32 %v676, 6.0
      %v709 = vmin.f32 %v677, 6.0
      %v710 = vmin.f32 %v678, 6.0
      %v711 = vmin.f32 %v679, 6.0
      %v712 = vmin.f32 %v680, 6.0
      %v713 = vmin.f32 %v681, 6.0
      %v714 = vmin.f32 %v682, 6.0
      %v715 = vmin.f32 %v683, 6.0
      %v716 = vmin.f32 %v684, 6.0
      %v717 = vmin.f32 %v685, 6.0
      %v718 = vmin.f32 %v686, 6.0
      %v719 = vmin.f32 %v687, 6.0
      %v720 = vmin.f32 %v688, 6.0
      %v721 = vmin.f32 %v689, 6.0
      %v722 = vmin.f32 %v690, 6.0
      %v723 = vmin.f32 %v691, 6.0
      %v724 = vmin.f32 %v692, 6.0
      %v725 = vmin.f32 %v693, 6.0
      %v726 = vmin.f32 %v694, 6.0
      %v727 = vmin.f32 %v695, 6.0
      %v728 = vmin.f32 %v696, 6.0
      %v729 = vmin.f32 %v697, 6.0
      %v730 = vmin.f32 %v698, 6.0
      %v731 = vmin.f32 %v699, 6.0
      %v732 = vmin.f32 %v700, 6.0
      %v733 = vmin.f32 %v701, 6.0
      %v734 = vmin.f32 %v702, 6.0
      %v735 = vmin.f32 %v703, 6.0
      %v736 = vmin.f32 %v704, 6.0
      %v737 = vmin.f32 %v705, 6.0
      %v738 = vmul.f32 %v484, %v706
      %v739 = vmul.f32 %v489, %v707
      %v740 = vmul.f32 %v494, %v708
      %v741 = vmul.f32 %v499, %v709
      %v742 = vmul.f32 %v504, %v710
      %v743 = vmul.f32 %v509, %v711
      %v744 = vmul.f32 %v514, %v712
      %v745 = vmul.f32 %v519, %v713
      %v746 = vmul.f32 %v524, %v714
      %v747 = vmul.f32 %v529, %v715
      %v748 = vmul.f32 %v534, %v716
      %v749 = vmul.f32 %v539, %v717
      %v750 = vmul.f32 %v544, %v718
      %v751 = vmul.f32 %v549, %v719
      %v752 = vmul.f32 %v554, %v720
      %v753 = vmul.f32 %v559, %v721
      %v754 = vmul.f32 %v564, %v722
      %v755 = vmul.f32 %v569, %v723
      %v756 = vmul.f32 %v574, %v724
      %v757 = vmul.f32 %v579, %v725
      %v758 = vmul.f32 %v584, %v726
      %v759 = vmul.f32 %v589, %v727
      %v760 = vmul.f32 %v594, %v728
      %v761 = vmul.f32 %v599, %v729
      %v762 = vmul.f32 %v604, %v730
      %v763 = vmul.f32 %v609, %v731
      %v764 = vmul.f32 %v614, %v732
      %v765 = vmul.f32 %v619, %v733
      %v766 = vmul.f32 %v624, %v734
      %v767 = vmul.f32 %v629, %v735
      %v768 = vmul.f32 %v634, %v736
      %v769 = vmul.f32 %v639, %v737
      %v770 = vmul.f32 %v738, 0.16666667
      %v771 = vmul.f32 %v739, 0.16666667
      %v772 = vmul.f32 %v740, 0.16666667
      %v773 = vmul.f32 %v741, 0.16666667
      %v774 = vmul.f32 %v742, 0.16666667
      %v775 = vmul.f32 %v743, 0.16666667
      %v776 = vmul.f32 %v744, 0.16666667
      %v777 = vmul.f32 %v745, 0.16666667
      %v778 = vmul.f32 %v746, 0.16666667
      %v779 = vmul.f32 %v747, 0.16666667
      %v780 = vmul.f32 %v748, 0.16666667
      %v781 = vmul.f32 %v749, 0.16666667
      %v782 = vmul.f32 %v750, 0.16666667
      %v783 = vmul.f32 %v751, 0.16666667
      %v784 = vmul.f32 %v752, 0.16666667
      %v785 = vmul.f32 %v753, 0.16666667
      %v786 = vmul.f32 %v754, 0.16666667
      %v787 = vmul.f32 %v755, 0.16666667
      %v788 = vmul.f32 %v756, 0.16666667
      %v789 = vmul.f32 %v757, 0.16666667
      %v790 = vmul.f32 %v758, 0.16666667
      %v791 = vmul.f32 %v759, 0.16666667
      %v792 = vmul.f32 %v760, 0.16666667
      %v793 = vmul.f32 %v761, 0.16666667
      %v794 = vmul.f32 %v762, 0.16666667
      %v795 = vmul.f32 %v763, 0.16666667
      %v796 = vmul.f32 %v764, 0.16666667
      %v797 = vmul.f32 %v765, 0.16666667
      %v798 = vmul.f32 %v766, 0.16666667
      %v799 = vmul.f32 %v767, 0.16666667
      %v800 = vmul.f32 %v768, 0.16666667
      %v801 = vmul.f32 %v769, 0.16666667
      %vm802 = vcmask 15360
      %803 = vst.msk [vmem:[#allocation2] sm:$0xff] %vm802, -inf
      %804 = vst.msk [vmem:[#allocation2 + $0x8] sm:$0xff] %vm802, -inf
      %805 = vst.msk [vmem:[#allocation2 + $0x10] sm:$0xff] %vm802, -inf
      %806 = vst.msk [vmem:[#allocation2 + $0x18] sm:$0xff] %vm802, -inf
      %s807 = scalar_lea.vmem [#allocation2], 288
      %808 = vst.msk [vmem:[%s807] sm:$0xff] %vm802, -inf
      %809 = vst.msk [vmem:[%s807 + $0x8] sm:$0xff] %vm802, -inf
      %810 = vst.msk [vmem:[%s807 + $0x10] sm:$0xff] %vm802, -inf
      %811 = vst.msk [vmem:[%s807 + $0x18] sm:$0xff] %vm802, -inf
      %v812 = vlaneseq
      %v813 = vshrl.u32 %v812, 7
      %v814 = vadd.s32 %v813, 8
      %v815 = vrot.slane %v813, 7
      %v816 = vrot.slane %v814, 7
      %vm817 = vcmp.lt.s32.totalorder %v813, 1
      %v818 = vsel %vm817, %v815, %v816
      %v819 = vsel %vm817, %v816, %v815
      %v820 = vsub.s32 %v819, %v813
      %v821 = vsub.s32 %v818, %v814
      %vm822 = vcmp.lt.s32.totalorder %v820, 0
      %v823 = vsub.s32 0, %v820
      %v824 = vsel %vm822, %v823, %v820
      %vm825 = vcmp.lt.s32.totalorder %v821, 0
      %v826 = vsub.s32 0, %v821
      %v827 = vsel %vm825, %v826, %v821
      %vm828 = vcmp.le.s32.totalorder %v824, 2
      %vm829 = vcmp.le.s32.totalorder %v827, 2
      %vm830 = vcmp.lt.s32.totalorder %v819, 16
      %vm831 = vcmp.lt.s32.totalorder %v818, 16
      %vm832 = vmand %vm828, %vm830
      %vm833 = vmand %vm829, %vm831
      %v834 = vrot.slane %v813, 6
      %v835 = vrot.slane %v814, 6
      %vm836 = vcmp.lt.s32.totalorder %v813, 2
      %v837 = vsel %vm836, %v834, %v835
      %v838 = vsel %vm836, %v835, %v834
      %v839 = vsub.s32 %v838, %v813
      %v840 = vsub.s32 %v837, %v814
      %vm841 = vcmp.lt.s32.totalorder %v839, 0
      %v842 = vsub.s32 0, %v839
      %v843 = vsel %vm841, %v842, %v839
      %vm844 = vcmp.lt.s32.totalorder %v840, 0
      %v845 = vsub.s32 0, %v840
      %v846 = vsel %vm844, %v845, %v840
      %vm847 = vcmp.le.s32.totalorder %v843, 2
      %vm848 = vcmp.le.s32.totalorder %v846, 2
      %vm849 = vcmp.lt.s32.totalorder %v838, 16
      %vm850 = vcmp.lt.s32.totalorder %v837, 16
      %vm851 = vmand %vm847, %vm849
      %vm852 = vmand %vm848, %vm850
      %v853 = vrot.slane %v813, 2
      %v854 = vrot.slane %v814, 2
      %vm855 = vcmp.lt.s32.totalorder %v813, 6
      %v856 = vsel %vm855, %v853, %v854
      %v857 = vsel %vm855, %v854, %v853
      %v858 = vsub.s32 %v856, %v813
      %v859 = vsub.s32 %v857, %v814
      %vm860 = vcmp.lt.s32.totalorder %v858, 0
      %v861 = vsub.s32 0, %v858
      %v862 = vsel %vm860, %v861, %v858
      %vm863 = vcmp.lt.s32.totalorder %v859, 0
      %v864 = vsub.s32 0, %v859
      %v865 = vsel %vm863, %v864, %v859
      %vm866 = vcmp.le.s32.totalorder %v862, 2
      %vm867 = vcmp.le.s32.totalorder %v865, 2
      %vm868 = vcmp.lt.s32.totalorder %v856, 16
      %vm869 = vcmp.lt.s32.totalorder %v857, 16
      %vm870 = vmand %vm866, %vm868
      %vm871 = vmand %vm867, %vm869
      %v872 = vrot.slane %v813, 1
      %v873 = vrot.slane %v814, 1
      %vm874 = vcmp.lt.s32.totalorder %v813, 7
      %v875 = vsel %vm874, %v872, %v873
      %v876 = vsel %vm874, %v873, %v872
      %v877 = vsub.s32 %v875, %v813
      %v878 = vsub.s32 %v876, %v814
      %vm879 = vcmp.lt.s32.totalorder %v877, 0
      %v880 = vsub.s32 0, %v877
      %v881 = vsel %vm879, %v880, %v877
      %vm882 = vcmp.lt.s32.totalorder %v878, 0
      %v883 = vsub.s32 0, %v878
      %v884 = vsel %vm882, %v883, %v878
      %vm885 = vcmp.le.s32.totalorder %v881, 2
      %vm886 = vcmp.le.s32.totalorder %v884, 2
      %vm887 = vcmp.lt.s32.totalorder %v875, 16
      %vm888 = vcmp.lt.s32.totalorder %v876, 16
      %vm889 = vmand %vm885, %vm887
      %vm890 = vmand %vm886, %vm888
      %v891 = vld [vmem:[%s264] sm:$0x3]
      %s892 = scalar_lea.vmem [#allocation2], 32
      %893 = vst.msk [vmem:[%s892] sm:$0xff] %vm802, %v770
      %894 = vst.msk [vmem:[%s892 + $0x8] sm:$0xff] %vm802, %v771
      %895 = vst.msk [vmem:[%s892 + $0x10] sm:$0xff] %vm802, %v772
      %896 = vst.msk [vmem:[%s892 + $0x18] sm:$0xff] %vm802, %v773
      %897 = vst.msk [vmem:[%s892 + $0x20] sm:$0xff] %vm802, %v774
      %898 = vst.msk [vmem:[%s892 + $0x28] sm:$0xff] %vm802, %v775
      %899 = vst.msk [vmem:[%s892 + $0x30] sm:$0xff] %vm802, %v776
      %900 = vst.msk [vmem:[%s892 + $0x38] sm:$0xff] %vm802, %v777
      %901 = vst.msk [vmem:[%s892 + $0x40] sm:$0xff] %vm802, %v778
      %902 = vst.msk [vmem:[%s892 + $0x48] sm:$0xff] %vm802, %v779
      %903 = vst.msk [vmem:[%s892 + $0x50] sm:$0xff] %vm802, %v780
      %904 = vst.msk [vmem:[%s892 + $0x58] sm:$0xff] %vm802, %v781
      %905 = vst.msk [vmem:[%s892 + $0x60] sm:$0xff] %vm802, %v782
      %906 = vst.msk [vmem:[%s892 + $0x68] sm:$0xff] %vm802, %v783
      %907 = vst.msk [vmem:[%s892 + $0x70] sm:$0xff] %vm802, %v784
      %908 = vst.msk [vmem:[%s892 + $0x78] sm:$0xff] %vm802, %v785
      %909 = vst.msk [vmem:[%s892 + $0x80] sm:$0xff] %vm802, %v786
      %910 = vst.msk [vmem:[%s892 + $0x88] sm:$0xff] %vm802, %v787
      %911 = vst.msk [vmem:[%s892 + $0x90] sm:$0xff] %vm802, %v788
      %912 = vst.msk [vmem:[%s892 + $0x98] sm:$0xff] %vm802, %v789
      %913 = vst.msk [vmem:[%s892 + $0xa0] sm:$0xff] %vm802, %v790
      %914 = vst.msk [vmem:[%s892 + $0xa8] sm:$0xff] %vm802, %v791
      %915 = vst.msk [vmem:[%s892 + $0xb0] sm:$0xff] %vm802, %v792
      %916 = vst.msk [vmem:[%s892 + $0xb8] sm:$0xff] %vm802, %v793
      %917 = vst.msk [vmem:[%s892 + $0xc0] sm:$0xff] %vm802, %v794
      %918 = vst.msk [vmem:[%s892 + $0xc8] sm:$0xff] %vm802, %v795
      %919 = vst.msk [vmem:[%s892 + $0xd0] sm:$0xff] %vm802, %v796
      %920 = vst.msk [vmem:[%s892 + $0xd8] sm:$0xff] %vm802, %v797
      %921 = vst.msk [vmem:[%s892 + $0xe0] sm:$0xff] %vm802, %v798
      %922 = vst.msk [vmem:[%s892 + $0xe8] sm:$0xff] %vm802, %v799
      %923 = vst.msk [vmem:[%s892 + $0xf0] sm:$0xff] %vm802, %v800
      %924 = vst.msk [vmem:[%s892 + $0xf8] sm:$0xff] %vm802, %v801
      %v925 = vld [vmem:[#allocation2] sm:$0xff]
      %v926 = vld [vmem:[#allocation2 + $0x8] sm:$0xff]
      %v927 = vld [vmem:[#allocation2 + $0x10] sm:$0xff]
      %v928 = vld [vmem:[#allocation2 + $0x18] sm:$0xff]
      %v929 = vld [vmem:[#allocation2 + $0x20] sm:$0xff]
      %v930 = vld [vmem:[#allocation2 + $0x28] sm:$0xff]
      %v931 = vld [vmem:[#allocation2 + $0x30] sm:$0xff]
      %v932 = vld [vmem:[#allocation2 + $0x38] sm:$0xff]
      %v933 = vld [vmem:[#allocation2 + $0x40] sm:$0xff]
      %v934 = vld [vmem:[#allocation2 + $0x48] sm:$0xff]
      %v935 = vld [vmem:[#allocation2 + $0x50] sm:$0xff]
      %v936 = vld [vmem:[#allocation2 + $0x58] sm:$0xff]
      %v937 = vld [vmem:[#allocation2 + $0x60] sm:$0xff]
      %v938 = vld [vmem:[#allocation2 + $0x68] sm:$0xff]
      %v939 = vld [vmem:[#allocation2 + $0x70] sm:$0xff]
      %v940 = vld [vmem:[#allocation2 + $0x78] sm:$0xff]
      %v941 = vld [vmem:[#allocation2 + $0x80] sm:$0xff]
      %v942 = vld [vmem:[#allocation2 + $0x88] sm:$0xff]
      %v943 = vld [vmem:[#allocation2 + $0x90] sm:$0xff]
      %v944 = vld [vmem:[#allocation2 + $0x98] sm:$0xff]
      %v945 = vld [vmem:[#allocation2 + $0xa0] sm:$0xff]
      %v946 = vld [vmem:[#allocation2 + $0xa8] sm:$0xff]
      %v947 = vld [vmem:[#allocation2 + $0xb0] sm:$0xff]
      %v948 = vld [vmem:[#allocation2 + $0xb8] sm:$0xff]
      %v949 = vld [vmem:[#allocation2 + $0xc0] sm:$0xff]
      %v950 = vld [vmem:[#allocation2 + $0xc8] sm:$0xff]
      %v951 = vld [vmem:[#allocation2 + $0xd0] sm:$0xff]
      %v952 = vld [vmem:[#allocation2 + $0xd8] sm:$0xff]
      %v953 = vld [vmem:[#allocation2 + $0xe0] sm:$0xff]
      %v954 = vld [vmem:[#allocation2 + $0xe8] sm:$0xff]
      %v955 = vld [vmem:[#allocation2 + $0xf0] sm:$0xff]
      %v956 = vld [vmem:[#allocation2 + $0xf8] sm:$0xff]
      %s957 = scalar_lea.vmem [#allocation2], 16
      %v958 = vld [vmem:[%s957] sm:$0xff]
      %v959 = vld [vmem:[%s957 + $0x8] sm:$0xff]
      %v960 = vld [vmem:[%s957 + $0x10] sm:$0xff]
      %v961 = vld [vmem:[%s957 + $0x18] sm:$0xff]
      %v962 = vld [vmem:[%s957 + $0x20] sm:$0xff]
      %v963 = vld [vmem:[%s957 + $0x28] sm:$0xff]
      %v964 = vld [vmem:[%s957 + $0x30] sm:$0xff]
      %v965 = vld [vmem:[%s957 + $0x38] sm:$0xff]
      %v966 = vld [vmem:[%s957 + $0x40] sm:$0xff]
      %v967 = vld [vmem:[%s957 + $0x48] sm:$0xff]
      %v968 = vld [vmem:[%s957 + $0x50] sm:$0xff]
      %v969 = vld [vmem:[%s957 + $0x58] sm:$0xff]
      %v970 = vld [vmem:[%s957 + $0x60] sm:$0xff]
      %v971 = vld [vmem:[%s957 + $0x68] sm:$0xff]
      %v972 = vld [vmem:[%s957 + $0x70] sm:$0xff]
      %v973 = vld [vmem:[%s957 + $0x78] sm:$0xff]
      %v974 = vld [vmem:[%s957 + $0x80] sm:$0xff]
      %v975 = vld [vmem:[%s957 + $0x88] sm:$0xff]
      %v976 = vld [vmem:[%s957 + $0x90] sm:$0xff]
      %v977 = vld [vmem:[%s957 + $0x98] sm:$0xff]
      %v978 = vld [vmem:[%s957 + $0xa0] sm:$0xff]
      %v979 = vld [vmem:[%s957 + $0xa8] sm:$0xff]
      %v980 = vld [vmem:[%s957 + $0xb0] sm:$0xff]
      %v981 = vld [vmem:[%s957 + $0xb8] sm:$0xff]
      %v982 = vld [vmem:[%s957 + $0xc0] sm:$0xff]
      %v983 = vld [vmem:[%s957 + $0xc8] sm:$0xff]
      %v984 = vld [vmem:[%s957 + $0xd0] sm:$0xff]
      %v985 = vld [vmem:[%s957 + $0xd8] sm:$0xff]
      %v986 = vld [vmem:[%s957 + $0xe0] sm:$0xff]
      %v987 = vld [vmem:[%s957 + $0xe8] sm:$0xff]
      %v988 = vld [vmem:[%s957 + $0xf0] sm:$0xff]
      %v989 = vld [vmem:[%s957 + $0xf8] sm:$0xff]
      %v990 = vmax.f32 %v925, %v958
      %v991 = vmax.f32 %v926, %v959
      %v992 = vmax.f32 %v927, %v960
      %v993 = vmax.f32 %v928, %v961
      %v994 = vmax.f32 %v929, %v962
      %v995 = vmax.f32 %v930, %v963
      %v996 = vmax.f32 %v931, %v964
      %v997 = vmax.f32 %v932, %v965
      %v998 = vmax.f32 %v933, %v966
      %v999 = vmax.f32 %v934, %v967
      %v1000 = vmax.f32 %v935, %v968
      %v1001 = vmax.f32 %v936, %v969
      %v1002 = vmax.f32 %v937, %v970
      %v1003 = vmax.f32 %v938, %v971
      %v1004 = vmax.f32 %v939, %v972
      %v1005 = vmax.f32 %v940, %v973
      %v1006 = vmax.f32 %v941, %v974
      %v1007 = vmax.f32 %v942, %v975
      %v1008 = vmax.f32 %v943, %v976
      %v1009 = vmax.f32 %v944, %v977
      %v1010 = vmax.f32 %v945, %v978
      %v1011 = vmax.f32 %v946, %v979
      %v1012 = vmax.f32 %v947, %v980
      %v1013 = vmax.f32 %v948, %v981
      %v1014 = vmax.f32 %v949, %v982
      %v1015 = vmax.f32 %v950, %v983
      %v1016 = vmax.f32 %v951, %v984
      %v1017 = vmax.f32 %v952, %v985
      %v1018 = vmax.f32 %v953, %v986
      %v1019 = vmax.f32 %v954, %v987
      %v1020 = vmax.f32 %v955, %v988
      %v1021 = vmax.f32 %v956, %v989
      %v1022 = vld [vmem:[%s892] sm:$0xff]
      %v1023 = vld [vmem:[%s892 + $0x8] sm:$0xff]
      %v1024 = vld [vmem:[%s892 + $0x10] sm:$0xff]
      %v1025 = vld [vmem:[%s892 + $0x18] sm:$0xff]
      %v1026 = vld [vmem:[%s892 + $0x20] sm:$0xff]
      %v1027 = vld [vmem:[%s892 + $0x28] sm:$0xff]
      %v1028 = vld [vmem:[%s892 + $0x30] sm:$0xff]
      %v1029 = vld [vmem:[%s892 + $0x38] sm:$0xff]
      %v1030 = vld [vmem:[%s892 + $0x40] sm:$0xff]
      %v1031 = vld [vmem:[%s892 + $0x48] sm:$0xff]
      %v1032 = vld [vmem:[%s892 + $0x50] sm:$0xff]
      %v1033 = vld [vmem:[%s892 + $0x58] sm:$0xff]
      %v1034 = vld [vmem:[%s892 + $0x60] sm:$0xff]
      %v1035 = vld [vmem:[%s892 + $0x68] sm:$0xff]
      %v1036 = vld [vmem:[%s892 + $0x70] sm:$0xff]
      %v1037 = vld [vmem:[%s892 + $0x78] sm:$0xff]
      %v1038 = vld [vmem:[%s892 + $0x80] sm:$0xff]
      %v1039 = vld [vmem:[%s892 + $0x88] sm:$0xff]
      %v1040 = vld [vmem:[%s892 + $0x90] sm:$0xff]
      %v1041 = vld [vmem:[%s892 + $0x98] sm:$0xff]
      %v1042 = vld [vmem:[%s892 + $0xa0] sm:$0xff]
      %v1043 = vld [vmem:[%s892 + $0xa8] sm:$0xff]
      %v1044 = vld [vmem:[%s892 + $0xb0] sm:$0xff]
      %v1045 = vld [vmem:[%s892 + $0xb8] sm:$0xff]
      %v1046 = vld [vmem:[%s892 + $0xc0] sm:$0xff]
      %v1047 = vld [vmem:[%s892 + $0xc8] sm:$0xff]
      %v1048 = vld [vmem:[%s892 + $0xd0] sm:$0xff]
      %v1049 = vld [vmem:[%s892 + $0xd8] sm:$0xff]
      %v1050 = vld [vmem:[%s892 + $0xe0] sm:$0xff]
      %v1051 = vld [vmem:[%s892 + $0xe8] sm:$0xff]
      %v1052 = vld [vmem:[%s892 + $0xf0] sm:$0xff]
      %v1053 = vld [vmem:[%s892 + $0xf8] sm:$0xff]
      %v1054 = vmax.f32 %v990, %v1022
      %v1055 = vmax.f32 %v991, %v1023
      %v1056 = vmax.f32 %v992, %v1024
      %v1057 = vmax.f32 %v993, %v1025
      %v1058 = vmax.f32 %v994, %v1026
      %v1059 = vmax.f32 %v995, %v1027
      %v1060 = vmax.f32 %v996, %v1028
      %v1061 = vmax.f32 %v997, %v1029
      %v1062 = vmax.f32 %v998, %v1030
      %v1063 = vmax.f32 %v999, %v1031
      %v1064 = vmax.f32 %v1000, %v1032
      %v1065 = vmax.f32 %v1001, %v1033
      %v1066 = vmax.f32 %v1002, %v1034
      %v1067 = vmax.f32 %v1003, %v1035
      %v1068 = vmax.f32 %v1004, %v1036
      %v1069 = vmax.f32 %v1005, %v1037
      %v1070 = vmax.f32 %v1006, %v1038
      %v1071 = vmax.f32 %v1007, %v1039
      %v1072 = vmax.f32 %v1008, %v1040
      %v1073 = vmax.f32 %v1009, %v1041
      %v1074 = vmax.f32 %v1010, %v1042
      %v1075 = vmax.f32 %v1011, %v1043
      %v1076 = vmax.f32 %v1012, %v1044
      %v1077 = vmax.f32 %v1013, %v1045
      %v1078 = vmax.f32 %v1014, %v1046
      %v1079 = vmax.f32 %v1015, %v1047
      %v1080 = vmax.f32 %v1016, %v1048
      %v1081 = vmax.f32 %v1017, %v1049
      %v1082 = vmax.f32 %v1018, %v1050
      %v1083 = vmax.f32 %v1019, %v1051
      %v1084 = vmax.f32 %v1020, %v1052
      %v1085 = vmax.f32 %v1021, %v1053
      %s1086 = scalar_lea.vmem [#allocation2], 48
      %v1087 = vld [vmem:[%s1086] sm:$0xff]
      %v1088 = vld [vmem:[%s1086 + $0x8] sm:$0xff]
      %v1089 = vld [vmem:[%s1086 + $0x10] sm:$0xff]
      %v1090 = vld [vmem:[%s1086 + $0x18] sm:$0xff]
      %v1091 = vld [vmem:[%s1086 + $0x20] sm:$0xff]
      %v1092 = vld [vmem:[%s1086 + $0x28] sm:$0xff]
      %v1093 = vld [vmem:[%s1086 + $0x30] sm:$0xff]
      %v1094 = vld [vmem:[%s1086 + $0x38] sm:$0xff]
      %v1095 = vld [vmem:[%s1086 + $0x40] sm:$0xff]
      %v1096 = vld [vmem:[%s1086 + $0x48] sm:$0xff]
      %v1097 = vld [vmem:[%s1086 + $0x50] sm:$0xff]
      %v1098 = vld [vmem:[%s1086 + $0x58] sm:$0xff]
      %v1099 = vld [vmem:[%s1086 + $0x60] sm:$0xff]
      %v1100 = vld [vmem:[%s1086 + $0x68] sm:$0xff]
      %v1101 = vld [vmem:[%s1086 + $0x70] sm:$0xff]
      %v1102 = vld [vmem:[%s1086 + $0x78] sm:$0xff]
      %v1103 = vld [vmem:[%s1086 + $0x80] sm:$0xff]
      %v1104 = vld [vmem:[%s1086 + $0x88] sm:$0xff]
      %v1105 = vld [vmem:[%s1086 + $0x90] sm:$0xff]
      %v1106 = vld [vmem:[%s1086 + $0x98] sm:$0xff]
      %v1107 = vld [vmem:[%s1086 + $0xa0] sm:$0xff]
      %v1108 = vld [vmem:[%s1086 + $0xa8] sm:$0xff]
      %v1109 = vld [vmem:[%s1086 + $0xb0] sm:$0xff]
      %v1110 = vld [vmem:[%s1086 + $0xb8] sm:$0xff]
      %v1111 = vld [vmem:[%s1086 + $0xc0] sm:$0xff]
      %v1112 = vld [vmem:[%s1086 + $0xc8] sm:$0xff]
      %v1113 = vld [vmem:[%s1086 + $0xd0] sm:$0xff]
      %v1114 = vld [vmem:[%s1086 + $0xd8] sm:$0xff]
      %v1115 = vld [vmem:[%s1086 + $0xe0] sm:$0xff]
      %v1116 = vld [vmem:[%s1086 + $0xe8] sm:$0xff]
      %v1117 = vld [vmem:[%s1086 + $0xf0] sm:$0xff]
      %v1118 = vld [vmem:[%s1086 + $0xf8] sm:$0xff]
      %v1119 = vmax.f32 %v1054, %v1087
      %v1120 = vmax.f32 %v1055, %v1088
      %v1121 = vmax.f32 %v1056, %v1089
      %v1122 = vmax.f32 %v1057, %v1090
      %v1123 = vmax.f32 %v1058, %v1091
      %v1124 = vmax.f32 %v1059, %v1092
      %v1125 = vmax.f32 %v1060, %v1093
      %v1126 = vmax.f32 %v1061, %v1094
      %v1127 = vmax.f32 %v1062, %v1095
      %v1128 = vmax.f32 %v1063, %v1096
      %v1129 = vmax.f32 %v1064, %v1097
      %v1130 = vmax.f32 %v1065, %v1098
      %v1131 = vmax.f32 %v1066, %v1099
      %v1132 = vmax.f32 %v1067, %v1100
      %v1133 = vmax.f32 %v1068, %v1101
      %v1134 = vmax.f32 %v1069, %v1102
      %v1135 = vmax.f32 %v1070, %v1103
      %v1136 = vmax.f32 %v1071, %v1104
      %v1137 = vmax.f32 %v1072, %v1105
      %v1138 = vmax.f32 %v1073, %v1106
      %v1139 = vmax.f32 %v1074, %v1107
      %v1140 = vmax.f32 %v1075, %v1108
      %v1141 = vmax.f32 %v1076, %v1109
      %v1142 = vmax.f32 %v1077, %v1110
      %v1143 = vmax.f32 %v1078, %v1111
      %v1144 = vmax.f32 %v1079, %v1112
      %v1145 = vmax.f32 %v1080, %v1113
      %v1146 = vmax.f32 %v1081, %v1114
      %v1147 = vmax.f32 %v1082, %v1115
      %v1148 = vmax.f32 %v1083, %v1116
      %v1149 = vmax.f32 %v1084, %v1117
      %v1150 = vmax.f32 %v1085, %v1118
      %s1151 = scalar_lea.vmem [#allocation2], 64
      %v1152 = vld [vmem:[%s1151] sm:$0xff]
      %v1153 = vld [vmem:[%s1151 + $0x8] sm:$0xff]
      %v1154 = vld [vmem:[%s1151 + $0x10] sm:$0xff]
      %v1155 = vld [vmem:[%s1151 + $0x18] sm:$0xff]
      %v1156 = vld [vmem:[%s1151 + $0x20] sm:$0xff]
      %v1157 = vld [vmem:[%s1151 + $0x28] sm:$0xff]
      %v1158 = vld [vmem:[%s1151 + $0x30] sm:$0xff]
      %v1159 = vld [vmem:[%s1151 + $0x38] sm:$0xff]
      %v1160 = vld [vmem:[%s1151 + $0x40] sm:$0xff]
      %v1161 = vld [vmem:[%s1151 + $0x48] sm:$0xff]
      %v1162 = vld [vmem:[%s1151 + $0x50] sm:$0xff]
      %v1163 = vld [vmem:[%s1151 + $0x58] sm:$0xff]
      %v1164 = vld [vmem:[%s1151 + $0x60] sm:$0xff]
      %v1165 = vld [vmem:[%s1151 + $0x68] sm:$0xff]
      %v1166 = vld [vmem:[%s1151 + $0x70] sm:$0xff]
      %v1167 = vld [vmem:[%s1151 + $0x78] sm:$0xff]
      %v1168 = vld [vmem:[%s1151 + $0x80] sm:$0xff]
      %v1169 = vld [vmem:[%s1151 + $0x88] sm:$0xff]
      %v1170 = vld [vmem:[%s1151 + $0x90] sm:$0xff]
      %v1171 = vld [vmem:[%s1151 + $0x98] sm:$0xff]
      %v1172 = vld [vmem:[%s1151 + $0xa0] sm:$0xff]
      %v1173 = vld [vmem:[%s1151 + $0xa8] sm:$0xff]
      %v1174 = vld [vmem:[%s1151 + $0xb0] sm:$0xff]
      %v1175 = vld [vmem:[%s1151 + $0xb8] sm:$0xff]
      %v1176 = vld [vmem:[%s1151 + $0xc0] sm:$0xff]
      %v1177 = vld [vmem:[%s1151 + $0xc8] sm:$0xff]
      %v1178 = vld [vmem:[%s1151 + $0xd0] sm:$0xff]
      %v1179 = vld [vmem:[%s1151 + $0xd8] sm:$0xff]
      %v1180 = vld [vmem:[%s1151 + $0xe0] sm:$0xff]
      %v1181 = vld [vmem:[%s1151 + $0xe8] sm:$0xff]
      %v1182 = vld [vmem:[%s1151 + $0xf0] sm:$0xff]
      %v1183 = vld [vmem:[%s1151 + $0xf8] sm:$0xff]
      %v1184 = vmax.f32 %v1119, %v1152
      %v1185 = vmax.f32 %v1120, %v1153
      %v1186 = vmax.f32 %v1121, %v1154
      %v1187 = vmax.f32 %v1122, %v1155
      %v1188 = vmax.f32 %v1123, %v1156
      %v1189 = vmax.f32 %v1124, %v1157
      %v1190 = vmax.f32 %v1125, %v1158
      %v1191 = vmax.f32 %v1126, %v1159
      %v1192 = vmax.f32 %v1127, %v1160
      %v1193 = vmax.f32 %v1128, %v1161
      %v1194 = vmax.f32 %v1129, %v1162
      %v1195 = vmax.f32 %v1130, %v1163
      %v1196 = vmax.f32 %v1131, %v1164
      %v1197 = vmax.f32 %v1132, %v1165
      %v1198 = vmax.f32 %v1133, %v1166
      %v1199 = vmax.f32 %v1134, %v1167
      %v1200 = vmax.f32 %v1135, %v1168
      %v1201 = vmax.f32 %v1136, %v1169
      %v1202 = vmax.f32 %v1137, %v1170
      %v1203 = vmax.f32 %v1138, %v1171
      %v1204 = vmax.f32 %v1139, %v1172
      %v1205 = vmax.f32 %v1140, %v1173
      %v1206 = vmax.f32 %v1141, %v1174
      %v1207 = vmax.f32 %v1142, %v1175
      %v1208 = vmax.f32 %v1143, %v1176
      %v1209 = vmax.f32 %v1144, %v1177
      %v1210 = vmax.f32 %v1145, %v1178
      %v1211 = vmax.f32 %v1146, %v1179
      %v1212 = vmax.f32 %v1147, %v1180
      %v1213 = vmax.f32 %v1148, %v1181
      %v1214 = vmax.f32 %v1149, %v1182
      %v1215 = vmax.f32 %v1150, %v1183
      %v1216 = vrot.slane %v1184, 7
      %v1217 = vrot.slane %v1186, 7
      %v1218 = vrot.slane %v1188, 7
      %v1219 = vrot.slane %v1190, 7
      %v1220 = vrot.slane %v1192, 7
      %v1221 = vrot.slane %v1194, 7
      %v1222 = vrot.slane %v1196, 7
      %v1223 = vrot.slane %v1198, 7
      %v1224 = vrot.slane %v1200, 7
      %v1225 = vrot.slane %v1202, 7
      %v1226 = vrot.slane %v1204, 7
      %v1227 = vrot.slane %v1206, 7
      %v1228 = vrot.slane %v1208, 7
      %v1229 = vrot.slane %v1210, 7
      %v1230 = vrot.slane %v1212, 7
      %v1231 = vrot.slane %v1214, 7
      %v1232 = vrot.slane %v1185, 7
      %v1233 = vrot.slane %v1187, 7
      %v1234 = vrot.slane %v1189, 7
      %v1235 = vrot.slane %v1191, 7
      %v1236 = vrot.slane %v1193, 7
      %v1237 = vrot.slane %v1195, 7
      %v1238 = vrot.slane %v1197, 7
      %v1239 = vrot.slane %v1199, 7
      %v1240 = vrot.slane %v1201, 7
      %v1241 = vrot.slane %v1203, 7
      %v1242 = vrot.slane %v1205, 7
      %v1243 = vrot.slane %v1207, 7
      %v1244 = vrot.slane %v1209, 7
      %v1245 = vrot.slane %v1211, 7
      %v1246 = vrot.slane %v1213, 7
      %v1247 = vrot.slane %v1215, 7
      %v1248 = vsel %vm817, %v1216, %v1232
      %v1249 = vsel %vm817, %v1217, %v1233
      %v1250 = vsel %vm817, %v1218, %v1234
      %v1251 = vsel %vm817, %v1219, %v1235
      %v1252 = vsel %vm817, %v1220, %v1236
      %v1253 = vsel %vm817, %v1221, %v1237
      %v1254 = vsel %vm817, %v1222, %v1238
      %v1255 = vsel %vm817, %v1223, %v1239
      %v1256 = vsel %vm817, %v1224, %v1240
      %v1257 = vsel %vm817, %v1225, %v1241
      %v1258 = vsel %vm817, %v1226, %v1242
      %v1259 = vsel %vm817, %v1227, %v1243
      %v1260 = vsel %vm817, %v1228, %v1244
      %v1261 = vsel %vm817, %v1229, %v1245
      %v1262 = vsel %vm817, %v1230, %v1246
      %v1263 = vsel %vm817, %v1231, %v1247
      %v1264 = vsel %vm817, %v1232, %v1216
      %v1265 = vsel %vm817, %v1233, %v1217
      %v1266 = vsel %vm817, %v1234, %v1218
      %v1267 = vsel %vm817, %v1235, %v1219
      %v1268 = vsel %vm817, %v1236, %v1220
      %v1269 = vsel %vm817, %v1237, %v1221
      %v1270 = vsel %vm817, %v1238, %v1222
      %v1271 = vsel %vm817, %v1239, %v1223
      %v1272 = vsel %vm817, %v1240, %v1224
      %v1273 = vsel %vm817, %v1241, %v1225
      %v1274 = vsel %vm817, %v1242, %v1226
      %v1275 = vsel %vm817, %v1243, %v1227
      %v1276 = vsel %vm817, %v1244, %v1228
      %v1277 = vsel %vm817, %v1245, %v1229
      %v1278 = vsel %vm817, %v1246, %v1230
      %v1279 = vsel %vm817, %v1247, %v1231
      %v1280 = vsel %vm832, 1, 0
      %v1281 = vsel %vm833, 1, 0
      %vm1282 = vcmp.eq.s32.totalorder %v1280, 1
      %vm1283 = vcmp.eq.s32.totalorder %v1281, 1
      %v1284 = vsel %vm1282, %v1264, -inf
      %v1285 = vsel %vm1283, %v1248, -inf
      %v1286 = vsel %vm1282, %v1265, -inf
      %v1287 = vsel %vm1283, %v1249, -inf
      %v1288 = vsel %vm1282, %v1266, -inf
      %v1289 = vsel %vm1283, %v1250, -inf
      %v1290 = vsel %vm1282, %v1267, -inf
      %v1291 = vsel %vm1283, %v1251, -inf
      %v1292 = vsel %vm1282, %v1268, -inf
      %v1293 = vsel %vm1283, %v1252, -inf
      %v1294 = vsel %vm1282, %v1269, -inf
      %v1295 = vsel %vm1283, %v1253, -inf
      %v1296 = vsel %vm1282, %v1270, -inf
      %v1297 = vsel %vm1283, %v1254, -inf
      %v1298 = vsel %vm1282, %v1271, -inf
      %v1299 = vsel %vm1283, %v1255, -inf
      %v1300 = vsel %vm1282, %v1272, -inf
      %v1301 = vsel %vm1283, %v1256, -inf
      %v1302 = vsel %vm1282, %v1273, -inf
      %v1303 = vsel %vm1283, %v1257, -inf
      %v1304 = vsel %vm1282, %v1274, -inf
      %v1305 = vsel %vm1283, %v1258, -inf
      %v1306 = vsel %vm1282, %v1275, -inf
      %v1307 = vsel %vm1283, %v1259, -inf
      %v1308 = vsel %vm1282, %v1276, -inf
      %v1309 = vsel %vm1283, %v1260, -inf
      %v1310 = vsel %vm1282, %v1277, -inf
      %v1311 = vsel %vm1283, %v1261, -inf
      %v1312 = vsel %vm1282, %v1278, -inf
      %v1313 = vsel %vm1283, %v1262, -inf
      %v1314 = vsel %vm1282, %v1279, -inf
      %v1315 = vsel %vm1283, %v1263, -inf
      %v1316 = vmax.f32 %v1184, %v1284
      %v1317 = vmax.f32 %v1185, %v1285
      %v1318 = vmax.f32 %v1186, %v1286
      %v1319 = vmax.f32 %v1187, %v1287
      %v1320 = vmax.f32 %v1188, %v1288
      %v1321 = vmax.f32 %v1189, %v1289
      %v1322 = vmax.f32 %v1190, %v1290
      %v1323 = vmax.f32 %v1191, %v1291
      %v1324 = vmax.f32 %v1192, %v1292
      %v1325 = vmax.f32 %v1193, %v1293
      %v1326 = vmax.f32 %v1194, %v1294
      %v1327 = vmax.f32 %v1195, %v1295
      %v1328 = vmax.f32 %v1196, %v1296
      %v1329 = vmax.f32 %v1197, %v1297
      %v1330 = vmax.f32 %v1198, %v1298
      %v1331 = vmax.f32 %v1199, %v1299
      %v1332 = vmax.f32 %v1200, %v1300
      %v1333 = vmax.f32 %v1201, %v1301
      %v1334 = vmax.f32 %v1202, %v1302
      %v1335 = vmax.f32 %v1203, %v1303
      %v1336 = vmax.f32 %v1204, %v1304
      %v1337 = vmax.f32 %v1205, %v1305
      %v1338 = vmax.f32 %v1206, %v1306
      %v1339 = vmax.f32 %v1207, %v1307
      %v1340 = vmax.f32 %v1208, %v1308
      %v1341 = vmax.f32 %v1209, %v1309
      %v1342 = vmax.f32 %v1210, %v1310
      %v1343 = vmax.f32 %v1211, %v1311
      %v1344 = vmax.f32 %v1212, %v1312
      %v1345 = vmax.f32 %v1213, %v1313
      %v1346 = vmax.f32 %v1214, %v1314
      %v1347 = vmax.f32 %v1215, %v1315
      %v1348 = vrot.slane %v1184, 6
      %v1349 = vrot.slane %v1186, 6
      %v1350 = vrot.slane %v1188, 6
      %v1351 = vrot.slane %v1190, 6
      %v1352 = vrot.slane %v1192, 6
      %v1353 = vrot.slane %v1194, 6
      %v1354 = vrot.slane %v1196, 6
      %v1355 = vrot.slane %v1198, 6
      %v1356 = vrot.slane %v1200, 6
      %v1357 = vrot.slane %v1202, 6
      %v1358 = vrot.slane %v1204, 6
      %v1359 = vrot.slane %v1206, 6
      %v1360 = vrot.slane %v1208, 6
      %v1361 = vrot.slane %v1210, 6
      %v1362 = vrot.slane %v1212, 6
      %v1363 = vrot.slane %v1214, 6
      %v1364 = vrot.slane %v1185, 6
      %v1365 = vrot.slane %v1187, 6
      %v1366 = vrot.slane %v1189, 6
      %v1367 = vrot.slane %v1191, 6
      %v1368 = vrot.slane %v1193, 6
      %v1369 = vrot.slane %v1195, 6
      %v1370 = vrot.slane %v1197, 6
      %v1371 = vrot.slane %v1199, 6
      %v1372 = vrot.slane %v1201, 6
      %v1373 = vrot.slane %v1203, 6
      %v1374 = vrot.slane %v1205, 6
      %v1375 = vrot.slane %v1207, 6
      %v1376 = vrot.slane %v1209, 6
      %v1377 = vrot.slane %v1211, 6
      %v1378 = vrot.slane %v1213, 6
      %v1379 = vrot.slane %v1215, 6
      %v1380 = vsel %vm836, %v1348, %v1364
      %v1381 = vsel %vm836, %v1349, %v1365
      %v1382 = vsel %vm836, %v1350, %v1366
      %v1383 = vsel %vm836, %v1351, %v1367
      %v1384 = vsel %vm836, %v1352, %v1368
      %v1385 = vsel %vm836, %v1353, %v1369
      %v1386 = vsel %vm836, %v1354, %v1370
      %v1387 = vsel %vm836, %v1355, %v1371
      %v1388 = vsel %vm836, %v1356, %v1372
      %v1389 = vsel %vm836, %v1357, %v1373
      %v1390 = vsel %vm836, %v1358, %v1374
      %v1391 = vsel %vm836, %v1359, %v1375
      %v1392 = vsel %vm836, %v1360, %v1376
      %v1393 = vsel %vm836, %v1361, %v1377
      %v1394 = vsel %vm836, %v1362, %v1378
      %v1395 = vsel %vm836, %v1363, %v1379
      %v1396 = vsel %vm836, %v1364, %v1348
      %v1397 = vsel %vm836, %v1365, %v1349
      %v1398 = vsel %vm836, %v1366, %v1350
      %v1399 = vsel %vm836, %v1367, %v1351
      %v1400 = vsel %vm836, %v1368, %v1352
      %v1401 = vsel %vm836, %v1369, %v1353
      %v1402 = vsel %vm836, %v1370, %v1354
      %v1403 = vsel %vm836, %v1371, %v1355
      %v1404 = vsel %vm836, %v1372, %v1356
      %v1405 = vsel %vm836, %v1373, %v1357
      %v1406 = vsel %vm836, %v1374, %v1358
      %v1407 = vsel %vm836, %v1375, %v1359
      %v1408 = vsel %vm836, %v1376, %v1360
      %v1409 = vsel %vm836, %v1377, %v1361
      %v1410 = vsel %vm836, %v1378, %v1362
      %v1411 = vsel %vm836, %v1379, %v1363
      %v1412 = vsel %vm851, 1, 0
      %v1413 = vsel %vm852, 1, 0
      %vm1414 = vcmp.eq.s32.totalorder %v1412, 1
      %vm1415 = vcmp.eq.s32.totalorder %v1413, 1
      %v1416 = vsel %vm1414, %v1396, -inf
      %v1417 = vsel %vm1415, %v1380, -inf
      %v1418 = vsel %vm1414, %v1397, -inf
      %v1419 = vsel %vm1415, %v1381, -inf
      %v1420 = vsel %vm1414, %v1398, -inf
      %v1421 = vsel %vm1415, %v1382, -inf
      %v1422 = vsel %vm1414, %v1399, -inf
      %v1423 = vsel %vm1415, %v1383, -inf
      %v1424 = vsel %vm1414, %v1400, -inf
      %v1425 = vsel %vm1415, %v1384, -inf
      %v1426 = vsel %vm1414, %v1401, -inf
      %v1427 = vsel %vm1415, %v1385, -inf
      %v1428 = vsel %vm1414, %v1402, -inf
      %v1429 = vsel %vm1415, %v1386, -inf
      %v1430 = vsel %vm1414, %v1403, -inf
      %v1431 = vsel %vm1415, %v1387, -inf
      %v1432 = vsel %vm1414, %v1404, -inf
      %v1433 = vsel %vm1415, %v1388, -inf
      %v1434 = vsel %vm1414, %v1405, -inf
      %v1435 = vsel %vm1415, %v1389, -inf
      %v1436 = vsel %vm1414, %v1406, -inf
      %v1437 = vsel %vm1415, %v1390, -inf
      %v1438 = vsel %vm1414, %v1407, -inf
      %v1439 = vsel %vm1415, %v1391, -inf
      %v1440 = vsel %vm1414, %v1408, -inf
      %v1441 = vsel %vm1415, %v1392, -inf
      %v1442 = vsel %vm1414, %v1409, -inf
      %v1443 = vsel %vm1415, %v1393, -inf
      %v1444 = vsel %vm1414, %v1410, -inf
      %v1445 = vsel %vm1415, %v1394, -inf
      %v1446 = vsel %vm1414, %v1411, -inf
      %v1447 = vsel %vm1415, %v1395, -inf
      %v1448 = vmax.f32 %v1316, %v1416
      %v1449 = vmax.f32 %v1317, %v1417
      %v1450 = vmax.f32 %v1318, %v1418
      %v1451 = vmax.f32 %v1319, %v1419
      %v1452 = vmax.f32 %v1320, %v1420
      %v1453 = vmax.f32 %v1321, %v1421
      %v1454 = vmax.f32 %v1322, %v1422
      %v1455 = vmax.f32 %v1323, %v1423
      %v1456 = vmax.f32 %v1324, %v1424
      %v1457 = vmax.f32 %v1325, %v1425
      %v1458 = vmax.f32 %v1326, %v1426
      %v1459 = vmax.f32 %v1327, %v1427
      %v1460 = vmax.f32 %v1328, %v1428
      %v1461 = vmax.f32 %v1329, %v1429
      %v1462 = vmax.f32 %v1330, %v1430
      %v1463 = vmax.f32 %v1331, %v1431
      %v1464 = vmax.f32 %v1332, %v1432
      %v1465 = vmax.f32 %v1333, %v1433
      %v1466 = vmax.f32 %v1334, %v1434
      %v1467 = vmax.f32 %v1335, %v1435
      %v1468 = vmax.f32 %v1336, %v1436
      %v1469 = vmax.f32 %v1337, %v1437
      %v1470 = vmax.f32 %v1338, %v1438
      %v1471 = vmax.f32 %v1339, %v1439
      %v1472 = vmax.f32 %v1340, %v1440
      %v1473 = vmax.f32 %v1341, %v1441
      %v1474 = vmax.f32 %v1342, %v1442
      %v1475 = vmax.f32 %v1343, %v1443
      %v1476 = vmax.f32 %v1344, %v1444
      %v1477 = vmax.f32 %v1345, %v1445
      %v1478 = vmax.f32 %v1346, %v1446
      %v1479 = vmax.f32 %v1347, %v1447
      %v1480 = vrot.slane %v1184, 2
      %v1481 = vrot.slane %v1186, 2
      %v1482 = vrot.slane %v1188, 2
      %v1483 = vrot.slane %v1190, 2
      %v1484 = vrot.slane %v1192, 2
      %v1485 = vrot.slane %v1194, 2
      %v1486 = vrot.slane %v1196, 2
      %v1487 = vrot.slane %v1198, 2
      %v1488 = vrot.slane %v1200, 2
      %v1489 = vrot.slane %v1202, 2
      %v1490 = vrot.slane %v1204, 2
      %v1491 = vrot.slane %v1206, 2
      %v1492 = vrot.slane %v1208, 2
      %v1493 = vrot.slane %v1210, 2
      %v1494 = vrot.slane %v1212, 2
      %v1495 = vrot.slane %v1214, 2
      %v1496 = vrot.slane %v1185, 2
      %v1497 = vrot.slane %v1187, 2
      %v1498 = vrot.slane %v1189, 2
      %v1499 = vrot.slane %v1191, 2
      %v1500 = vrot.slane %v1193, 2
      %v1501 = vrot.slane %v1195, 2
      %v1502 = vrot.slane %v1197, 2
      %v1503 = vrot.slane %v1199, 2
      %v1504 = vrot.slane %v1201, 2
      %v1505 = vrot.slane %v1203, 2
      %v1506 = vrot.slane %v1205, 2
      %v1507 = vrot.slane %v1207, 2
      %v1508 = vrot.slane %v1209, 2
      %v1509 = vrot.slane %v1211, 2
      %v1510 = vrot.slane %v1213, 2
      %v1511 = vrot.slane %v1215, 2
      %v1512 = vsel %vm855, %v1480, %v1496
      %v1513 = vsel %vm855, %v1481, %v1497
      %v1514 = vsel %vm855, %v1482, %v1498
      %v1515 = vsel %vm855, %v1483, %v1499
      %v1516 = vsel %vm855, %v1484, %v1500
      %v1517 = vsel %vm855, %v1485, %v1501
      %v1518 = vsel %vm855, %v1486, %v1502
      %v1519 = vsel %vm855, %v1487, %v1503
      %v1520 = vsel %vm855, %v1488, %v1504
      %v1521 = vsel %vm855, %v1489, %v1505
      %v1522 = vsel %vm855, %v1490, %v1506
      %v1523 = vsel %vm855, %v1491, %v1507
      %v1524 = vsel %vm855, %v1492, %v1508
      %v1525 = vsel %vm855, %v1493, %v1509
      %v1526 = vsel %vm855, %v1494, %v1510
      %v1527 = vsel %vm855, %v1495, %v1511
      %v1528 = vsel %vm855, %v1496, %v1480
      %v1529 = vsel %vm855, %v1497, %v1481
      %v1530 = vsel %vm855, %v1498, %v1482
      %v1531 = vsel %vm855, %v1499, %v1483
      %v1532 = vsel %vm855, %v1500, %v1484
      %v1533 = vsel %vm855, %v1501, %v1485
      %v1534 = vsel %vm855, %v1502, %v1486
      %v1535 = vsel %vm855, %v1503, %v1487
      %v1536 = vsel %vm855, %v1504, %v1488
      %v1537 = vsel %vm855, %v1505, %v1489
      %v1538 = vsel %vm855, %v1506, %v1490
      %v1539 = vsel %vm855, %v1507, %v1491
      %v1540 = vsel %vm855, %v1508, %v1492
      %v1541 = vsel %vm855, %v1509, %v1493
      %v1542 = vsel %vm855, %v1510, %v1494
      %v1543 = vsel %vm855, %v1511, %v1495
      %v1544 = vsel %vm870, 1, 0
      %v1545 = vsel %vm871, 1, 0
      %vm1546 = vcmp.eq.s32.totalorder %v1544, 1
      %vm1547 = vcmp.eq.s32.totalorder %v1545, 1
      %v1548 = vsel %vm1546, %v1512, -inf
      %v1549 = vsel %vm1547, %v1528, -inf
      %v1550 = vsel %vm1546, %v1513, -inf
      %v1551 = vsel %vm1547, %v1529, -inf
      %v1552 = vsel %vm1546, %v1514, -inf
      %v1553 = vsel %vm1547, %v1530, -inf
      %v1554 = vsel %vm1546, %v1515, -inf
      %v1555 = vsel %vm1547, %v1531, -inf
      %v1556 = vsel %vm1546, %v1516, -inf
      %v1557 = vsel %vm1547, %v1532, -inf
      %v1558 = vsel %vm1546, %v1517, -inf
      %v1559 = vsel %vm1547, %v1533, -inf
      %v1560 = vsel %vm1546, %v1518, -inf
      %v1561 = vsel %vm1547, %v1534, -inf
      %v1562 = vsel %vm1546, %v1519, -inf
      %v1563 = vsel %vm1547, %v1535, -inf
      %v1564 = vsel %vm1546, %v1520, -inf
      %v1565 = vsel %vm1547, %v1536, -inf
      %v1566 = vsel %vm1546, %v1521, -inf
      %v1567 = vsel %vm1547, %v1537, -inf
      %v1568 = vsel %vm1546, %v1522, -inf
      %v1569 = vsel %vm1547, %v1538, -inf
      %v1570 = vsel %vm1546, %v1523, -inf
      %v1571 = vsel %vm1547, %v1539, -inf
      %v1572 = vsel %vm1546, %v1524, -inf
      %v1573 = vsel %vm1547, %v1540, -inf
      %v1574 = vsel %vm1546, %v1525, -inf
      %v1575 = vsel %vm1547, %v1541, -inf
      %v1576 = vsel %vm1546, %v1526, -inf
      %v1577 = vsel %vm1547, %v1542, -inf
      %v1578 = vsel %vm1546, %v1527, -inf
      %v1579 = vsel %vm1547, %v1543, -inf
      %v1580 = vmax.f32 %v1448, %v1548
      %v1581 = vmax.f32 %v1449, %v1549
      %v1582 = vmax.f32 %v1450, %v1550
      %v1583 = vmax.f32 %v1451, %v1551
      %v1584 = vmax.f32 %v1452, %v1552
      %v1585 = vmax.f32 %v1453, %v1553
      %v1586 = vmax.f32 %v1454, %v1554
      %v1587 = vmax.f32 %v1455, %v1555
      %v1588 = vmax.f32 %v1456, %v1556
      %v1589 = vmax.f32 %v1457, %v1557
      %v1590 = vmax.f32 %v1458, %v1558
      %v1591 = vmax.f32 %v1459, %v1559
      %v1592 = vmax.f32 %v1460, %v1560
      %v1593 = vmax.f32 %v1461, %v1561
      %v1594 = vmax.f32 %v1462, %v1562
      %v1595 = vmax.f32 %v1463, %v1563
      %v1596 = vmax.f32 %v1464, %v1564
      %v1597 = vmax.f32 %v1465, %v1565
      %v1598 = vmax.f32 %v1466, %v1566
      %v1599 = vmax.f32 %v1467, %v1567
      %v1600 = vmax.f32 %v1468, %v1568
      %v1601 = vmax.f32 %v1469, %v1569
      %v1602 = vmax.f32 %v1470, %v1570
      %v1603 = vmax.f32 %v1471, %v1571
      %v1604 = vmax.f32 %v1472, %v1572
      %v1605 = vmax.f32 %v1473, %v1573
      %v1606 = vmax.f32 %v1474, %v1574
      %v1607 = vmax.f32 %v1475, %v1575
      %v1608 = vmax.f32 %v1476, %v1576
      %v1609 = vmax.f32 %v1477, %v1577
      %v1610 = vmax.f32 %v1478, %v1578
      %v1611 = vmax.f32 %v1479, %v1579
      %v1612 = vrot.slane %v1184, 1
      %v1613 = vrot.slane %v1186, 1
      %v1614 = vrot.slane %v1188, 1
      %v1615 = vrot.slane %v1190, 1
      %v1616 = vrot.slane %v1192, 1
      %v1617 = vrot.slane %v1194, 1
      %v1618 = vrot.slane %v1196, 1
      %v1619 = vrot.slane %v1198, 1
      %v1620 = vrot.slane %v1200, 1
      %v1621 = vrot.slane %v1202, 1
      %v1622 = vrot.slane %v1204, 1
      %v1623 = vrot.slane %v1206, 1
      %v1624 = vrot.slane %v1208, 1
      %v1625 = vrot.slane %v1210, 1
      %v1626 = vrot.slane %v1212, 1
      %v1627 = vrot.slane %v1214, 1
      %v1628 = vrot.slane %v1185, 1
      %v1629 = vrot.slane %v1187, 1
      %v1630 = vrot.slane %v1189, 1
      %v1631 = vrot.slane %v1191, 1
      %v1632 = vrot.slane %v1193, 1
      %v1633 = vrot.slane %v1195, 1
      %v1634 = vrot.slane %v1197, 1
      %v1635 = vrot.slane %v1199, 1
      %v1636 = vrot.slane %v1201, 1
      %v1637 = vrot.slane %v1203, 1
      %v1638 = vrot.slane %v1205, 1
      %v1639 = vrot.slane %v1207, 1
      %v1640 = vrot.slane %v1209, 1
      %v1641 = vrot.slane %v1211, 1
      %v1642 = vrot.slane %v1213, 1
      %v1643 = vrot.slane %v1215, 1
      %v1644 = vsel %vm874, %v1612, %v1628
      %v1645 = vsel %vm874, %v1613, %v1629
      %v1646 = vsel %vm874, %v1614, %v1630
      %v1647 = vsel %vm874, %v1615, %v1631
      %v1648 = vsel %vm874, %v1616, %v1632
      %v1649 = vsel %vm874, %v1617, %v1633
      %v1650 = vsel %vm874, %v1618, %v1634
      %v1651 = vsel %vm874, %v1619, %v1635
      %v1652 = vsel %vm874, %v1620, %v1636
      %v1653 = vsel %vm874, %v1621, %v1637
      %v1654 = vsel %vm874, %v1622, %v1638
      %v1655 = vsel %vm874, %v1623, %v1639
      %v1656 = vsel %vm874, %v1624, %v1640
      %v1657 = vsel %vm874, %v1625, %v1641
      %v1658 = vsel %vm874, %v1626, %v1642
      %v1659 = vsel %vm874, %v1627, %v1643
      %v1660 = vsel %vm874, %v1628, %v1612
      %v1661 = vsel %vm874, %v1629, %v1613
      %v1662 = vsel %vm874, %v1630, %v1614
      %v1663 = vsel %vm874, %v1631, %v1615
      %v1664 = vsel %vm874, %v1632, %v1616
      %v1665 = vsel %vm874, %v1633, %v1617
      %v1666 = vsel %vm874, %v1634, %v1618
      %v1667 = vsel %vm874, %v1635, %v1619
      %v1668 = vsel %vm874, %v1636, %v1620
      %v1669 = vsel %vm874, %v1637, %v1621
      %v1670 = vsel %vm874, %v1638, %v1622
      %v1671 = vsel %vm874, %v1639, %v1623
      %v1672 = vsel %vm874, %v1640, %v1624
      %v1673 = vsel %vm874, %v1641, %v1625
      %v1674 = vsel %vm874, %v1642, %v1626
      %v1675 = vsel %vm874, %v1643, %v1627
      %v1676 = vsel %vm889, 1, 0
      %v1677 = vsel %vm890, 1, 0
      %vm1678 = vcmp.eq.s32.totalorder %v1676, 1
      %vm1679 = vcmp.eq.s32.totalorder %v1677, 1
      %v1680 = vsel %vm1678, %v1644, -inf
      %v1681 = vsel %vm1679, %v1660, -inf
      %v1682 = vsel %vm1678, %v1645, -inf
      %v1683 = vsel %vm1679, %v1661, -inf
      %v1684 = vsel %vm1678, %v1646, -inf
      %v1685 = vsel %vm1679, %v1662, -inf
      %v1686 = vsel %vm1678, %v1647, -inf
      %v1687 = vsel %vm1679, %v1663, -inf
      %v1688 = vsel %vm1678, %v1648, -inf
      %v1689 = vsel %vm1679, %v1664, -inf
      %v1690 = vsel %vm1678, %v1649, -inf
      %v1691 = vsel %vm1679, %v1665, -inf
      %v1692 = vsel %vm1678, %v1650, -inf
      %v1693 = vsel %vm1679, %v1666, -inf
      %v1694 = vsel %vm1678, %v1651, -inf
      %v1695 = vsel %vm1679, %v1667, -inf
      %v1696 = vsel %vm1678, %v1652, -inf
      %v1697 = vsel %vm1679, %v1668, -inf
      %v1698 = vsel %vm1678, %v1653, -inf
      %v1699 = vsel %vm1679, %v1669, -inf
      %v1700 = vsel %vm1678, %v1654, -inf
      %v1701 = vsel %vm1679, %v1670, -inf
      %v1702 = vsel %vm1678, %v1655, -inf
      %v1703 = vsel %vm1679, %v1671, -inf
      %v1704 = vsel %vm1678, %v1656, -inf
      %v1705 = vsel %vm1679, %v1672, -inf
      %v1706 = vsel %vm1678, %v1657, -inf
      %v1707 = vsel %vm1679, %v1673, -inf
      %v1708 = vsel %vm1678, %v1658, -inf
      %v1709 = vsel %vm1679, %v1674, -inf
      %v1710 = vsel %vm1678, %v1659, -inf
      %v1711 = vsel %vm1679, %v1675, -inf
      %v1712 = vmax.f32 %v1580, %v1680
      %v1713 = vmax.f32 %v1581, %v1681
      %v1714 = vmax.f32 %v1582, %v1682
      %v1715 = vmax.f32 %v1583, %v1683
      %v1716 = vmax.f32 %v1584, %v1684
      %v1717 = vmax.f32 %v1585, %v1685
      %v1718 = vmax.f32 %v1586, %v1686
      %v1719 = vmax.f32 %v1587, %v1687
      %v1720 = vmax.f32 %v1588, %v1688
      %v1721 = vmax.f32 %v1589, %v1689
      %v1722 = vmax.f32 %v1590, %v1690
      %v1723 = vmax.f32 %v1591, %v1691
      %v1724 = vmax.f32 %v1592, %v1692
      %v1725 = vmax.f32 %v1593, %v1693
      %v1726 = vmax.f32 %v1594, %v1694
      %v1727 = vmax.f32 %v1595, %v1695
      %v1728 = vmax.f32 %v1596, %v1696
      %v1729 = vmax.f32 %v1597, %v1697
      %v1730 = vmax.f32 %v1598, %v1698
      %v1731 = vmax.f32 %v1599, %v1699
      %v1732 = vmax.f32 %v1600, %v1700
      %v1733 = vmax.f32 %v1601, %v1701
      %v1734 = vmax.f32 %v1602, %v1702
      %v1735 = vmax.f32 %v1603, %v1703
      %v1736 = vmax.f32 %v1604, %v1704
      %v1737 = vmax.f32 %v1605, %v1705
      %v1738 = vmax.f32 %v1606, %v1706
      %v1739 = vmax.f32 %v1607, %v1707
      %v1740 = vmax.f32 %v1608, %v1708
      %v1741 = vmax.f32 %v1609, %v1709
      %v1742 = vmax.f32 %v1610, %v1710
      %v1743 = vmax.f32 %v1611, %v1711
      %s1744 = scalar_lea.vmem %s264, 2
      %v1745 = vld [vmem:[%s1744] sm:$0x3]
      %v1747 = vsel %vm802, %v1712, 0
      %v1750 = vsel %vm802, %v1713, 0
      %v1753 = vsel %vm802, %v1714, 0
      %v1756 = vsel %vm802, %v1715, 0
      %v1759 = vsel %vm802, %v1716, 0
      %v1762 = vsel %vm802, %v1717, 0
      %v1765 = vsel %vm802, %v1718, 0
      %v1768 = vsel %vm802, %v1719, 0
      %v1771 = vsel %vm802, %v1720, 0
      %v1774 = vsel %vm802, %v1721, 0
      %v1777 = vsel %vm802, %v1722, 0
      %v1780 = vsel %vm802, %v1723, 0
      %v1783 = vsel %vm802, %v1724, 0
      %v1786 = vsel %vm802, %v1725, 0
      %v1789 = vsel %vm802, %v1726, 0
      %v1792 = vsel %vm802, %v1727, 0
      %v1795 = vsel %vm802, %v1728, 0
      %v1798 = vsel %vm802, %v1729, 0
      %v1801 = vsel %vm802, %v1730, 0
      %v1804 = vsel %vm802, %v1731, 0
      %v1807 = vsel %vm802, %v1732, 0
      %v1810 = vsel %vm802, %v1733, 0
      %v1813 = vsel %vm802, %v1734, 0
      %v1816 = vsel %vm802, %v1735, 0
      %v1819 = vsel %vm802, %v1736, 0
      %v1822 = vsel %vm802, %v1737, 0
      %v1825 = vsel %vm802, %v1738, 0
      %v1828 = vsel %vm802, %v1739, 0
      %v1831 = vsel %vm802, %v1740, 0
      %v1834 = vsel %vm802, %v1741, 0
      %v1837 = vsel %vm802, %v1742, 0
      %v1840 = vsel %vm802, %v1743, 0
      %vm1842 = vcmask 1041408
      %v1844 = vsel %vm1842, %v1745, 0
      %1846 = vmatprep.subr.mxu0 0.0
      %1847 = vmatpush1.msra.mxu0 %v1844
      %1848 = vmatprep.subr.mxu0 0.0
      %1849 = vmatpush1.msra.mxu0 0.0
      %1850 = vmatprep.subr.mxu0 0.0
      %1851 = vmatpush1.msra.mxu0 0.0
      %1852 = vmatprep.subr.mxu0 0.0
      %1853 = vmatpush1.msra.mxu0 0.0
      %1854 = vmatprep.subr.mxu0 0.0
      %1855 = vmatpush1.msra.mxu0 0.0
      %1856 = vmatprep.subr.mxu0 0.0
      %1857 = vmatpush1.msra.mxu0 0.0
      %1858 = vmatprep.subr.mxu0 0.0
      %1859 = vmatpush1.msra.mxu0 0.0
      %1860 = vmatprep.subr.mxu0 0.0
      %1861 = vmatpush1.msra.mxu0 0.0
      %1862 = vmatprep.subr.mxu0 0.0
      %1863 = vmatpush1.msra.mxu0 0.0
      %1864 = vmatprep.subr.mxu0 0.0
      %1865 = vmatpush1.msra.mxu0 0.0
      %1866 = vmatprep.subr.mxu0 0.0
      %1867 = vmatpush1.msra.mxu0 0.0
      %1868 = vmatprep.subr.mxu0 0.0
      %1869 = vmatpush1.msra.mxu0 0.0
      %1870 = vmatprep.subr.mxu0 0.0
      %1871 = vmatpush1.msra.mxu0 0.0
      %1872 = vmatprep.subr.mxu0 0.0
      %1873 = vmatpush1.msra.mxu0 0.0
      %1874 = vmatprep.subr.mxu0 0.0
      %1875 = vmatpush1.msra.mxu0 0.0
      %1876 = vmatprep.subr.mxu0 0.0
      %1877 = vmatpush1.msra.mxu0 0.0
      %1878 = vmatprep.subr.mxu0 0.0
      %1879 = vmatpush1.msra.mxu0 0.0
      %1880 = vmatprep.subr.mxu0 0.0
      %1881 = vmatpush1.msra.mxu0 0.0
      %1882 = vmatprep.subr.mxu0 0.0
      %1883 = vmatpush1.msra.mxu0 0.0
      %1884 = vmatprep.subr.mxu0 0.0
      %1885 = vmatpush1.msra.mxu0 0.0
      %1886 = vmatprep.subr.mxu0 0.0
      %1887 = vmatpush1.msra.mxu0 0.0
      %1888 = vmatprep.subr.mxu0 0.0
      %1889 = vmatpush1.msra.mxu0 0.0
      %1890 = vmatprep.subr.mxu0 0.0
      %1891 = vmatpush1.msra.mxu0 0.0
      %1892 = vmatprep.subr.mxu0 0.0
      %1893 = vmatpush1.msra.mxu0 0.0
      %1894 = vmatprep.subr.mxu0 0.0
      %1895 = vmatpush1.msra.mxu0 0.0
      %1896 = vmatprep.subr.mxu0 0.0
      %1897 = vmatpush1.msra.mxu0 0.0
      %1898 = vmatprep.subr.mxu0 0.0
      %1899 = vmatpush1.msra.mxu0 0.0
      %1900 = vmatprep.subr.mxu0 0.0
      %1901 = vmatpush1.msra.mxu0 0.0
      %1902 = vmatprep.subr.mxu0 0.0
      %1903 = vmatpush1.msra.mxu0 0.0
      %1904 = vmatprep.subr.mxu0 0.0
      %1905 = vmatpush1.msra.mxu0 0.0
      %1906 = vmatprep.subr.mxu0 0.0
      %1907 = vmatpush1.msra.mxu0 0.0
      %1908 = vmatprep.subr.mxu0 0.0
      %1909 = vmatpush1.msra.mxu0 0.0
      %1910 = vmatprep.mubr.f32.mxu0 0.0
      %1911 = vmatmul.mubr.f32.gmra.mrb[0].mxu0 %v1747
      %v1912 = vpop.f32.mrb[0].mxu0
      %v1913 = vadd.f32 0.0, %v1912
      %v1914 = vpop.f32.mrb[0].mxu0
      %1915 = vmatprep.mubr.f32.mxu0 0.0
      %1916 = vmatmul.mubr.f32.gmra.mrb[0].mxu0 %v1750
      %v1917 = vpop.f32.mrb[0].mxu0
      %v1918 = vadd.f32 0.0, %v1917
      %v1919 = vpop.f32.mrb[0].mxu0
      %1920 = vmatprep.mubr.f32.mxu0 0.0
      %1921 = vmatmul.mubr.f32.gmra.mrb[0].mxu0 %v1753
      %v1922 = vpop.f32.mrb[0].mxu0
      %v1923 = vadd.f32 0.0, %v1922
      %v1924 = vpop.f32.mrb[0].mxu0
      %1925 = vmatprep.mubr.f32.mxu0 0.0
      %1926 = vmatmul.mubr.f32.gmra.mrb[0].mxu0 %v1756
      %v1927 = vpop.f32.mrb[0].mxu0
      %v1928 = vadd.f32 0.0, %v1927
      %v1929 = vpop.f32.mrb[0].mxu0
      %1930 = vmatprep.mubr.f32.mxu0 0.0
      %1931 = vmatmul.mubr.f32.gmra.mrb[0].mxu0 %v1759
      %v1932 = vpop.f32.mrb[0].mxu0
      %v1933 = vadd.f32 0.0, %v1932
      %v1934 = vpop.f32.mrb[0].mxu0
      %1935 = vmatprep.mubr.f32.mxu0 0.0
      %1936 = vmatmul.mubr.f32.gmra.mrb[0].mxu0 %v1762
      %v1937 = vpop.f32.mrb[0].mxu0
      %v1938 = vadd.f32 0.0, %v1937
      %v1939 = vpop.f32.mrb[0].mxu0
      %1940 = vmatprep.mubr.f32.mxu0 0.0
      %1941 = vmatmul.mubr.f32.gmra.mrb[0].mxu0 %v1765
      %v1942 = vpop.f32.mrb[0].mxu0
      %v1943 = vadd.f32 0.0, %v1942
      %v1944 = vpop.f32.mrb[0].mxu0
      %1945 = vmatprep.mubr.f32.mxu0 0.0
      %1946 = vmatmul.mubr.f32.gmra.mrb[0].mxu0 %v1768
      %v1947 = vpop.f32.mrb[0].mxu0
      %v1948 = vadd.f32 0.0, %v1947
      %v1949 = vpop.f32.mrb[0].mxu0
      %1950 = vmatprep.mubr.f32.mxu0 0.0
      %1951 = vmatmul.mubr.f32.gmra.mrb[0].mxu0 %v1771
      %v1952 = vpop.f32.mrb[0].mxu0
      %v1953 = vadd.f32 0.0, %v1952
      %v1954 = vpop.f32.mrb[0].mxu0
      %1955 = vmatprep.mubr.f32.mxu0 0.0
      %1956 = vmatmul.mubr.f32.gmra.mrb[0].mxu0 %v1774
      %v1957 = vpop.f32.mrb[0].mxu0
      %v1958 = vadd.f32 0.0, %v1957
      %v1959 = vpop.f32.mrb[0].mxu0
      %1960 = vmatprep.mubr.f32.mxu0 0.0
      %1961 = vmatmul.mubr.f32.gmra.mrb[0].mxu0 %v1777
      %v1962 = vpop.f32.mrb[0].mxu0
      %v1963 = vadd.f32 0.0, %v1962
      %v1964 = vpop.f32.mrb[0].mxu0
      %1965 = vmatprep.mubr.f32.mxu0 0.0
      %1966 = vmatmul.mubr.f32.gmra.mrb[0].mxu0 %v1780
      %v1967 = vpop.f32.mrb[0].mxu0
      %v1968 = vadd.f32 0.0, %v1967
      %v1969 = vpop.f32.mrb[0].mxu0
      %1970 = vmatprep.mubr.f32.mxu0 0.0
      %1971 = vmatmul.mubr.f32.gmra.mrb[0].mxu0 %v1783
      %v1972 = vpop.f32.mrb[0].mxu0
      %v1973 = vadd.f32 0.0, %v1972
      %v1974 = vpop.f32.mrb[0].mxu0
      %1975 = vmatprep.mubr.f32.mxu0 0.0
      %1976 = vmatmul.mubr.f32.gmra.mrb[0].mxu0 %v1786
      %v1977 = vpop.f32.mrb[0].mxu0
      %v1978 = vadd.f32 0.0, %v1977
      %v1979 = vpop.f32.mrb[0].mxu0
      %1980 = vmatprep.mubr.f32.mxu0 0.0
      %1981 = vmatmul.mubr.f32.gmra.mrb[0].mxu0 %v1789
      %v1982 = vpop.f32.mrb[0].mxu0
      %v1983 = vadd.f32 0.0, %v1982
      %v1984 = vpop.f32.mrb[0].mxu0
      %1985 = vmatprep.mubr.f32.mxu0 0.0
      %1986 = vmatmul.mubr.f32.gmra.mrb[0].mxu0 %v1792
      %v1987 = vpop.f32.mrb[0].mxu0
      %v1988 = vadd.f32 0.0, %v1987
      %v1989 = vpop.f32.mrb[0].mxu0
      %1990 = vmatprep.mubr.f32.mxu0 0.0
      %1991 = vmatmul.mubr.f32.gmra.mrb[0].mxu0 %v1795
      %v1992 = vpop.f32.mrb[0].mxu0
      %v1993 = vadd.f32 0.0, %v1992
      %v1994 = vpop.f32.mrb[0].mxu0
      %1995 = vmatprep.mubr.f32.mxu0 0.0
      %1996 = vmatmul.mubr.f32.gmra.mrb[0].mxu0 %v1798
      %v1997 = vpop.f32.mrb[0].mxu0
      %v1998 = vadd.f32 0.0, %v1997
      %v1999 = vpop.f32.mrb[0].mxu0
      %2000 = vmatprep.mubr.f32.mxu0 0.0
      %2001 = vmatmul.mubr.f32.gmra.mrb[0].mxu0 %v1801
      %v2002 = vpop.f32.mrb[0].mxu0
      %v2003 = vadd.f32 0.0, %v2002
      %v2004 = vpop.f32.mrb[0].mxu0
      %2005 = vmatprep.mubr.f32.mxu0 0.0
      %2006 = vmatmul.mubr.f32.gmra.mrb[0].mxu0 %v1804
      %v2007 = vpop.f32.mrb[0].mxu0
      %v2008 = vadd.f32 0.0, %v2007
      %v2009 = vpop.f32.mrb[0].mxu0
      %2010 = vmatprep.mubr.f32.mxu0 0.0
      %2011 = vmatmul.mubr.f32.gmra.mrb[0].mxu0 %v1807
      %v2012 = vpop.f32.mrb[0].mxu0
      %v2013 = vadd.f32 0.0, %v2012
      %v2014 = vpop.f32.mrb[0].mxu0
      %2015 = vmatprep.mubr.f32.mxu0 0.0
      %2016 = vmatmul.mubr.f32.gmra.mrb[0].mxu0 %v1810
      %v2017 = vpop.f32.mrb[0].mxu0
      %v2018 = vadd.f32 0.0, %v2017
      %v2019 = vpop.f32.mrb[0].mxu0
      %2020 = vmatprep.mubr.f32.mxu0 0.0
      %2021 = vmatmul.mubr.f32.gmra.mrb[0].mxu0 %v1813
      %v2022 = vpop.f32.mrb[0].mxu0
      %v2023 = vadd.f32 0.0, %v2022
      %v2024 = vpop.f32.mrb[0].mxu0
      %2025 = vmatprep.mubr.f32.mxu0 0.0
      %2026 = vmatmul.mubr.f32.gmra.mrb[0].mxu0 %v1816
      %v2027 = vpop.f32.mrb[0].mxu0
      %v2028 = vadd.f32 0.0, %v2027
      %v2029 = vpop.f32.mrb[0].mxu0
      %2030 = vmatprep.mubr.f32.mxu0 0.0
      %2031 = vmatmul.mubr.f32.gmra.mrb[0].mxu0 %v1819
      %v2032 = vpop.f32.mrb[0].mxu0
      %v2033 = vadd.f32 0.0, %v2032
      %v2034 = vpop.f32.mrb[0].mxu0
      %2035 = vmatprep.mubr.f32.mxu0 0.0
      %2036 = vmatmul.mubr.f32.gmra.mrb[0].mxu0 %v1822
      %v2037 = vpop.f32.mrb[0].mxu0
      %v2038 = vadd.f32 0.0, %v2037
      %v2039 = vpop.f32.mrb[0].mxu0
      %2040 = vmatprep.mubr.f32.mxu0 0.0
      %2041 = vmatmul.mubr.f32.gmra.mrb[0].mxu0 %v1825
      %v2042 = vpop.f32.mrb[0].mxu0
      %v2043 = vadd.f32 0.0, %v2042
      %v2044 = vpop.f32.mrb[0].mxu0
      %2045 = vmatprep.mubr.f32.mxu0 0.0
      %2046 = vmatmul.mubr.f32.gmra.mrb[0].mxu0 %v1828
      %v2047 = vpop.f32.mrb[0].mxu0
      %v2048 = vadd.f32 0.0, %v2047
      %v2049 = vpop.f32.mrb[0].mxu0
      %2050 = vmatprep.mubr.f32.mxu0 0.0
      %2051 = vmatmul.mubr.f32.gmra.mrb[0].mxu0 %v1831
      %v2052 = vpop.f32.mrb[0].mxu0
      %v2053 = vadd.f32 0.0, %v2052
      %v2054 = vpop.f32.mrb[0].mxu0
      %2055 = vmatprep.mubr.f32.mxu0 0.0
      %2056 = vmatmul.mubr.f32.gmra.mrb[0].mxu0 %v1834
      %v2057 = vpop.f32.mrb[0].mxu0
      %v2058 = vadd.f32 0.0, %v2057
      %v2059 = vpop.f32.mrb[0].mxu0
      %2060 = vmatprep.mubr.f32.mxu0 0.0
      %2061 = vmatmul.mubr.f32.gmra.mrb[0].mxu0 %v1837
      %v2062 = vpop.f32.mrb[0].mxu0
      %v2063 = vadd.f32 0.0, %v2062
      %v2064 = vpop.f32.mrb[0].mxu0
      %2065 = vmatprep.mubr.f32.mxu0 0.0
      %2066 = vmatmul.mubr.f32.gmra.mrb[0].mxu0 %v1840
      %v2067 = vpop.f32.mrb[0].mxu0
      %v2068 = vadd.f32 0.0, %v2067
      %v2069 = vpop.f32.mrb[0].mxu0
      %2070 = vdwg.mxu0
      %v2072 = vsel %vm802, %v770, 0
      %v2075 = vsel %vm802, %v771, 0
      %v2078 = vsel %vm802, %v772, 0
      %v2081 = vsel %vm802, %v773, 0
      %v2084 = vsel %vm802, %v774, 0
      %v2087 = vsel %vm802, %v775, 0
      %v2090 = vsel %vm802, %v776, 0
      %v2093 = vsel %vm802, %v777, 0
      %v2096 = vsel %vm802, %v778, 0
      %v2099 = vsel %vm802, %v779, 0
      %v2102 = vsel %vm802, %v780, 0
      %v2105 = vsel %vm802, %v781, 0
      %v2108 = vsel %vm802, %v782, 0
      %v2111 = vsel %vm802, %v783, 0
      %v2114 = vsel %vm802, %v784, 0
      %v2117 = vsel %vm802, %v785, 0
      %v2120 = vsel %vm802, %v786, 0
      %v2123 = vsel %vm802, %v787, 0
      %v2126 = vsel %vm802, %v788, 0
      %v2129 = vsel %vm802, %v789, 0
      %v2132 = vsel %vm802, %v790, 0
      %v2135 = vsel %vm802, %v791, 0
      %v2138 = vsel %vm802, %v792, 0
      %v2141 = vsel %vm802, %v793, 0
      %v2144 = vsel %vm802, %v794, 0
      %v2147 = vsel %vm802, %v795, 0
      %v2150 = vsel %vm802, %v796, 0
      %v2153 = vsel %vm802, %v797, 0
      %v2156 = vsel %vm802, %v798, 0
      %v2159 = vsel %vm802, %v799, 0
      %v2162 = vsel %vm802, %v800, 0
      %v2165 = vsel %vm802, %v801, 0
      %v2168 = vsel %vm1842, %v891, 0
      %2170 = vmatprep.subr.mxu0 0.0
      %2171 = vmatpush1.msra.mxu0 %v2168
      %2172 = vmatprep.subr.mxu0 0.0
      %2173 = vmatpush1.msra.mxu0 0.0
      %2174 = vmatprep.subr.mxu0 0.0
      %2175 = vmatpush1.msra.mxu0 0.0
      %2176 = vmatprep.subr.mxu0 0.0
      %2177 = vmatpush1.msra.mxu0 0.0
      %2178 = vmatprep.subr.mxu0 0.0
      %2179 = vmatpush1.msra.mxu0 0.0
      %2180 = vmatprep.subr.mxu0 0.0
      %2181 = vmatpush1.msra.mxu0 0.0
      %2182 = vmatprep.subr.mxu0 0.0
      %2183 = vmatpush1.msra.mxu0 0.0
      %2184 = vmatprep.subr.mxu0 0.0
      %2185 = vmatpush1.msra.mxu0 0.0
      %2186 = vmatprep.subr.mxu0 0.0
      %2187 = vmatpush1.msra.mxu0 0.0
      %2188 = vmatprep.subr.mxu0 0.0
      %2189 = vmatpush1.msra.mxu0 0.0
      %2190 = vmatprep.subr.mxu0 0.0
      %2191 = vmatpush1.msra.mxu0 0.0
      %2192 = vmatprep.subr.mxu0 0.0
      %2193 = vmatpush1.msra.mxu0 0.0
      %2194 = vmatprep.subr.mxu0 0.0
      %2195 = vmatpush1.msra.mxu0 0.0
      %2196 = vmatprep.subr.mxu0 0.0
      %2197 = vmatpush1.msra.mxu0 0.0
      %2198 = vmatprep.subr.mxu0 0.0
      %2199 = vmatpush1.msra.mxu0 0.0
      %2200 = vmatprep.subr.mxu0 0.0
      %2201 = vmatpush1.msra.mxu0 0.0
      %2202 = vmatprep.subr.mxu0 0.0
      %2203 = vmatpush1.msra.mxu0 0.0
      %2204 = vmatprep.subr.mxu0 0.0
      %2205 = vmatpush1.msra.mxu0 0.0
      %2206 = vmatprep.subr.mxu0 0.0
      %2207 = vmatpush1.msra.mxu0 0.0
      %2208 = vmatprep.subr.mxu0 0.0
      %2209 = vmatpush1.msra.mxu0 0.0
      %2210 = vmatprep.subr.mxu0 0.0
      %2211 = vmatpush1.msra.mxu0 0.0
      %2212 = vmatprep.subr.mxu0 0.0
      %2213 = vmatpush1.msra.mxu0 0.0
      %2214 = vmatprep.subr.mxu0 0.0
      %2215 = vmatpush1.msra.mxu0 0.0
      %2216 = vmatprep.subr.mxu0 0.0
      %2217 = vmatpush1.msra.mxu0 0.0
      %2218 = vmatprep.subr.mxu0 0.0
      %2219 = vmatpush1.msra.mxu0 0.0
      %2220 = vmatprep.subr.mxu0 0.0
      %2221 = vmatpush1.msra.mxu0 0.0
      %2222 = vmatprep.subr.mxu0 0.0
      %2223 = vmatpush1.msra.mxu0 0.0
      %2224 = vmatprep.subr.mxu0 0.0
      %2225 = vmatpush1.msra.mxu0 0.0
      %2226 = vmatprep.subr.mxu0 0.0
      %2227 = vmatpush1.msra.mxu0 0.0
      %2228 = vmatprep.subr.mxu0 0.0
      %2229 = vmatpush1.msra.mxu0 0.0
      %2230 = vmatprep.subr.mxu0 0.0
      %2231 = vmatpush1.msra.mxu0 0.0
      %2232 = vmatprep.subr.mxu0 0.0
      %2233 = vmatpush1.msra.mxu0 0.0
      %2234 = vmatprep.mubr.f32.mxu0 0.0
      %2235 = vmatmul.mubr.f32.gmra.mrb[0].mxu0 %v2072
      %v2236 = vpop.f32.mrb[0].mxu0
      %v2237 = vadd.f32 %v1913, %v2236
      %v2238 = vpop.f32.mrb[0].mxu0
      %2239 = vmatprep.mubr.f32.mxu0 0.0
      %2240 = vmatmul.mubr.f32.gmra.mrb[0].mxu0 %v2075
      %v2241 = vpop.f32.mrb[0].mxu0
      %v2242 = vadd.f32 %v1918, %v2241
      %v2243 = vpop.f32.mrb[0].mxu0
      %2244 = vmatprep.mubr.f32.mxu0 0.0
      %2245 = vmatmul.mubr.f32.gmra.mrb[0].mxu0 %v2078
      %v2246 = vpop.f32.mrb[0].mxu0
      %v2247 = vadd.f32 %v1923, %v2246
      %v2248 = vpop.f32.mrb[0].mxu0
      %2249 = vmatprep.mubr.f32.mxu0 0.0
      %2250 = vmatmul.mubr.f32.gmra.mrb[0].mxu0 %v2081
      %v2251 = vpop.f32.mrb[0].mxu0
      %v2252 = vadd.f32 %v1928, %v2251
      %v2253 = vpop.f32.mrb[0].mxu0
      %2254 = vmatprep.mubr.f32.mxu0 0.0
      %2255 = vmatmul.mubr.f32.gmra.mrb[0].mxu0 %v2084
      %v2256 = vpop.f32.mrb[0].mxu0
      %v2257 = vadd.f32 %v1933, %v2256
      %v2258 = vpop.f32.mrb[0].mxu0
      %2259 = vmatprep.mubr.f32.mxu0 0.0
      %2260 = vmatmul.mubr.f32.gmra.mrb[0].mxu0 %v2087
      %v2261 = vpop.f32.mrb[0].mxu0
      %v2262 = vadd.f32 %v1938, %v2261
      %v2263 = vpop.f32.mrb[0].mxu0
      %2264 = vmatprep.mubr.f32.mxu0 0.0
      %2265 = vmatmul.mubr.f32.gmra.mrb[0].mxu0 %v2090
      %v2266 = vpop.f32.mrb[0].mxu0
      %v2267 = vadd.f32 %v1943, %v2266
      %v2268 = vpop.f32.mrb[0].mxu0
      %2269 = vmatprep.mubr.f32.mxu0 0.0
      %2270 = vmatmul.mubr.f32.gmra.mrb[0].mxu0 %v2093
      %v2271 = vpop.f32.mrb[0].mxu0
      %v2272 = vadd.f32 %v1948, %v2271
      %v2273 = vpop.f32.mrb[0].mxu0
      %2274 = vmatprep.mubr.f32.mxu0 0.0
      %2275 = vmatmul.mubr.f32.gmra.mrb[0].mxu0 %v2096
      %v2276 = vpop.f32.mrb[0].mxu0
      %v2277 = vadd.f32 %v1953, %v2276
      %v2278 = vpop.f32.mrb[0].mxu0
      %2279 = vmatprep.mubr.f32.mxu0 0.0
      %2280 = vmatmul.mubr.f32.gmra.mrb[0].mxu0 %v2099
      %v2281 = vpop.f32.mrb[0].mxu0
      %v2282 = vadd.f32 %v1958, %v2281
      %v2283 = vpop.f32.mrb[0].mxu0
      %2284 = vmatprep.mubr.f32.mxu0 0.0
      %2285 = vmatmul.mubr.f32.gmra.mrb[0].mxu0 %v2102
      %v2286 = vpop.f32.mrb[0].mxu0
      %v2287 = vadd.f32 %v1963, %v2286
      %v2288 = vpop.f32.mrb[0].mxu0
      %2289 = vmatprep.mubr.f32.mxu0 0.0
      %2290 = vmatmul.mubr.f32.gmra.mrb[0].mxu0 %v2105
      %v2291 = vpop.f32.mrb[0].mxu0
      %v2292 = vadd.f32 %v1968, %v2291
      %v2293 = vpop.f32.mrb[0].mxu0
      %2294 = vmatprep.mubr.f32.mxu0 0.0
      %2295 = vmatmul.mubr.f32.gmra.mrb[0].mxu0 %v2108
      %v2296 = vpop.f32.mrb[0].mxu0
      %v2297 = vadd.f32 %v1973, %v2296
      %v2298 = vpop.f32.mrb[0].mxu0
      %2299 = vmatprep.mubr.f32.mxu0 0.0
      %2300 = vmatmul.mubr.f32.gmra.mrb[0].mxu0 %v2111
      %v2301 = vpop.f32.mrb[0].mxu0
      %v2302 = vadd.f32 %v1978, %v2301
      %v2303 = vpop.f32.mrb[0].mxu0
      %2304 = vmatprep.mubr.f32.mxu0 0.0
      %2305 = vmatmul.mubr.f32.gmra.mrb[0].mxu0 %v2114
      %v2306 = vpop.f32.mrb[0].mxu0
      %v2307 = vadd.f32 %v1983, %v2306
      %v2308 = vpop.f32.mrb[0].mxu0
      %2309 = vmatprep.mubr.f32.mxu0 0.0
      %2310 = vmatmul.mubr.f32.gmra.mrb[0].mxu0 %v2117
      %v2311 = vpop.f32.mrb[0].mxu0
      %v2312 = vadd.f32 %v1988, %v2311
      %v2313 = vpop.f32.mrb[0].mxu0
      %2314 = vmatprep.mubr.f32.mxu0 0.0
      %2315 = vmatmul.mubr.f32.gmra.mrb[0].mxu0 %v2120
      %v2316 = vpop.f32.mrb[0].mxu0
      %v2317 = vadd.f32 %v1993, %v2316
      %v2318 = vpop.f32.mrb[0].mxu0
      %2319 = vmatprep.mubr.f32.mxu0 0.0
      %2320 = vmatmul.mubr.f32.gmra.mrb[0].mxu0 %v2123
      %v2321 = vpop.f32.mrb[0].mxu0
      %v2322 = vadd.f32 %v1998, %v2321
      %v2323 = vpop.f32.mrb[0].mxu0
      %2324 = vmatprep.mubr.f32.mxu0 0.0
      %2325 = vmatmul.mubr.f32.gmra.mrb[0].mxu0 %v2126
      %v2326 = vpop.f32.mrb[0].mxu0
      %v2327 = vadd.f32 %v2003, %v2326
      %v2328 = vpop.f32.mrb[0].mxu0
      %2329 = vmatprep.mubr.f32.mxu0 0.0
      %2330 = vmatmul.mubr.f32.gmra.mrb[0].mxu0 %v2129
      %v2331 = vpop.f32.mrb[0].mxu0
      %v2332 = vadd.f32 %v2008, %v2331
      %v2333 = vpop.f32.mrb[0].mxu0
      %2334 = vmatprep.mubr.f32.mxu0 0.0
      %2335 = vmatmul.mubr.f32.gmra.mrb[0].mxu0 %v2132
      %v2336 = vpop.f32.mrb[0].mxu0
      %v2337 = vadd.f32 %v2013, %v2336
      %v2338 = vpop.f32.mrb[0].mxu0
      %2339 = vmatprep.mubr.f32.mxu0 0.0
      %2340 = vmatmul.mubr.f32.gmra.mrb[0].mxu0 %v2135
      %v2341 = vpop.f32.mrb[0].mxu0
      %v2342 = vadd.f32 %v2018, %v2341
      %v2343 = vpop.f32.mrb[0].mxu0
      %2344 = vmatprep.mubr.f32.mxu0 0.0
      %2345 = vmatmul.mubr.f32.gmra.mrb[0].mxu0 %v2138
      %v2346 = vpop.f32.mrb[0].mxu0
      %v2347 = vadd.f32 %v2023, %v2346
      %v2348 = vpop.f32.mrb[0].mxu0
      %2349 = vmatprep.mubr.f32.mxu0 0.0
      %2350 = vmatmul.mubr.f32.gmra.mrb[0].mxu0 %v2141
      %v2351 = vpop.f32.mrb[0].mxu0
      %v2352 = vadd.f32 %v2028, %v2351
      %v2353 = vpop.f32.mrb[0].mxu0
      %2354 = vmatprep.mubr.f32.mxu0 0.0
      %2355 = vmatmul.mubr.f32.gmra.mrb[0].mxu0 %v2144
      %v2356 = vpop.f32.mrb[0].mxu0
      %v2357 = vadd.f32 %v2033, %v2356
      %v2358 = vpop.f32.mrb[0].mxu0
      %2359 = vmatprep.mubr.f32.mxu0 0.0
      %2360 = vmatmul.mubr.f32.gmra.mrb[0].mxu0 %v2147
      %v2361 = vpop.f32.mrb[0].mxu0
      %v2362 = vadd.f32 %v2038, %v2361
      %v2363 = vpop.f32.mrb[0].mxu0
      %2364 = vmatprep.mubr.f32.mxu0 0.0
      %2365 = vmatmul.mubr.f32.gmra.mrb[0].mxu0 %v2150
      %v2366 = vpop.f32.mrb[0].mxu0
      %v2367 = vadd.f32 %v2043, %v2366
      %v2368 = vpop.f32.mrb[0].mxu0
      %2369 = vmatprep.mubr.f32.mxu0 0.0
      %2370 = vmatmul.mubr.f32.gmra.mrb[0].mxu0 %v2153
      %v2371 = vpop.f32.mrb[0].mxu0
      %v2372 = vadd.f32 %v2048, %v2371
      %v2373 = vpop.f32.mrb[0].mxu0
      %2374 = vmatprep.mubr.f32.mxu0 0.0
      %2375 = vmatmul.mubr.f32.gmra.mrb[0].mxu0 %v2156
      %v2376 = vpop.f32.mrb[0].mxu0
      %v2377 = vadd.f32 %v2053, %v2376
      %v2378 = vpop.f32.mrb[0].mxu0
      %2379 = vmatprep.mubr.f32.mxu0 0.0
      %2380 = vmatmul.mubr.f32.gmra.mrb[0].mxu0 %v2159
      %v2381 = vpop.f32.mrb[0].mxu0
      %v2382 = vadd.f32 %v2058, %v2381
      %v2383 = vpop.f32.mrb[0].mxu0
      %2384 = vmatprep.mubr.f32.mxu0 0.0
      %2385 = vmatmul.mubr.f32.gmra.mrb[0].mxu0 %v2162
      %v2386 = vpop.f32.mrb[0].mxu0
      %v2387 = vadd.f32 %v2063, %v2386
      %v2388 = vpop.f32.mrb[0].mxu0
      %2389 = vmatprep.mubr.f32.mxu0 0.0
      %2390 = vmatmul.mubr.f32.gmra.mrb[0].mxu0 %v2165
      %v2391 = vpop.f32.mrb[0].mxu0
      %v2392 = vadd.f32 %v2068, %v2391
      %v2393 = vpop.f32.mrb[0].mxu0
      %2394 = vdwg.mxu0
      %2395 = vst.msk [vmem:[%s892] sm:$0xff] %vm802, %v1712
      %2396 = vst.msk [vmem:[%s892 + $0x8] sm:$0xff] %vm802, %v1713
      %2397 = vst.msk [vmem:[%s892 + $0x10] sm:$0xff] %vm802, %v1714
      %2398 = vst.msk [vmem:[%s892 + $0x18] sm:$0xff] %vm802, %v1715
      %2399 = vst.msk [vmem:[%s892 + $0x20] sm:$0xff] %vm802, %v1716
      %2400 = vst.msk [vmem:[%s892 + $0x28] sm:$0xff] %vm802, %v1717
      %2401 = vst.msk [vmem:[%s892 + $0x30] sm:$0xff] %vm802, %v1718
      %2402 = vst.msk [vmem:[%s892 + $0x38] sm:$0xff] %vm802, %v1719
      %2403 = vst.msk [vmem:[%s892 + $0x40] sm:$0xff] %vm802, %v1720
      %2404 = vst.msk [vmem:[%s892 + $0x48] sm:$0xff] %vm802, %v1721
      %2405 = vst.msk [vmem:[%s892 + $0x50] sm:$0xff] %vm802, %v1722
      %2406 = vst.msk [vmem:[%s892 + $0x58] sm:$0xff] %vm802, %v1723
      %2407 = vst.msk [vmem:[%s892 + $0x60] sm:$0xff] %vm802, %v1724
      %2408 = vst.msk [vmem:[%s892 + $0x68] sm:$0xff] %vm802, %v1725
      %2409 = vst.msk [vmem:[%s892 + $0x70] sm:$0xff] %vm802, %v1726
      %2410 = vst.msk [vmem:[%s892 + $0x78] sm:$0xff] %vm802, %v1727
      %2411 = vst.msk [vmem:[%s892 + $0x80] sm:$0xff] %vm802, %v1728
      %2412 = vst.msk [vmem:[%s892 + $0x88] sm:$0xff] %vm802, %v1729
      %2413 = vst.msk [vmem:[%s892 + $0x90] sm:$0xff] %vm802, %v1730
      %2414 = vst.msk [vmem:[%s892 + $0x98] sm:$0xff] %vm802, %v1731
      %2415 = vst.msk [vmem:[%s892 + $0xa0] sm:$0xff] %vm802, %v1732
      %2416 = vst.msk [vmem:[%s892 + $0xa8] sm:$0xff] %vm802, %v1733
      %2417 = vst.msk [vmem:[%s892 + $0xb0] sm:$0xff] %vm802, %v1734
      %2418 = vst.msk [vmem:[%s892 + $0xb8] sm:$0xff] %vm802, %v1735
      %2419 = vst.msk [vmem:[%s892 + $0xc0] sm:$0xff] %vm802, %v1736
      %2420 = vst.msk [vmem:[%s892 + $0xc8] sm:$0xff] %vm802, %v1737
      %2421 = vst.msk [vmem:[%s892 + $0xd0] sm:$0xff] %vm802, %v1738
      %2422 = vst.msk [vmem:[%s892 + $0xd8] sm:$0xff] %vm802, %v1739
      %2423 = vst.msk [vmem:[%s892 + $0xe0] sm:$0xff] %vm802, %v1740
      %2424 = vst.msk [vmem:[%s892 + $0xe8] sm:$0xff] %vm802, %v1741
      %2425 = vst.msk [vmem:[%s892 + $0xf0] sm:$0xff] %vm802, %v1742
      %2426 = vst.msk [vmem:[%s892 + $0xf8] sm:$0xff] %vm802, %v1743
      %v2427 = vld [vmem:[#allocation2] sm:$0xff]
      %v2428 = vld [vmem:[#allocation2 + $0x8] sm:$0xff]
      %v2429 = vld [vmem:[#allocation2 + $0x10] sm:$0xff]
      %v2430 = vld [vmem:[#allocation2 + $0x18] sm:$0xff]
      %v2431 = vld [vmem:[#allocation2 + $0x20] sm:$0xff]
      %v2432 = vld [vmem:[#allocation2 + $0x28] sm:$0xff]
      %v2433 = vld [vmem:[#allocation2 + $0x30] sm:$0xff]
      %v2434 = vld [vmem:[#allocation2 + $0x38] sm:$0xff]
      %v2435 = vld [vmem:[#allocation2 + $0x40] sm:$0xff]
      %v2436 = vld [vmem:[#allocation2 + $0x48] sm:$0xff]
      %v2437 = vld [vmem:[#allocation2 + $0x50] sm:$0xff]
      %v2438 = vld [vmem:[#allocation2 + $0x58] sm:$0xff]
      %v2439 = vld [vmem:[#allocation2 + $0x60] sm:$0xff]
      %v2440 = vld [vmem:[#allocation2 + $0x68] sm:$0xff]
      %v2441 = vld [vmem:[#allocation2 + $0x70] sm:$0xff]
      %v2442 = vld [vmem:[#allocation2 + $0x78] sm:$0xff]
      %v2443 = vld [vmem:[#allocation2 + $0x80] sm:$0xff]
      %v2444 = vld [vmem:[#allocation2 + $0x88] sm:$0xff]
      %v2445 = vld [vmem:[#allocation2 + $0x90] sm:$0xff]
      %v2446 = vld [vmem:[#allocation2 + $0x98] sm:$0xff]
      %v2447 = vld [vmem:[#allocation2 + $0xa0] sm:$0xff]
      %v2448 = vld [vmem:[#allocation2 + $0xa8] sm:$0xff]
      %v2449 = vld [vmem:[#allocation2 + $0xb0] sm:$0xff]
      %v2450 = vld [vmem:[#allocation2 + $0xb8] sm:$0xff]
      %v2451 = vld [vmem:[#allocation2 + $0xc0] sm:$0xff]
      %v2452 = vld [vmem:[#allocation2 + $0xc8] sm:$0xff]
      %v2453 = vld [vmem:[#allocation2 + $0xd0] sm:$0xff]
      %v2454 = vld [vmem:[#allocation2 + $0xd8] sm:$0xff]
      %v2455 = vld [vmem:[#allocation2 + $0xe0] sm:$0xff]
      %v2456 = vld [vmem:[#allocation2 + $0xe8] sm:$0xff]
      %v2457 = vld [vmem:[#allocation2 + $0xf0] sm:$0xff]
      %v2458 = vld [vmem:[#allocation2 + $0xf8] sm:$0xff]
      %v2459 = vld [vmem:[%s957] sm:$0xff]
      %v2460 = vld [vmem:[%s957 + $0x8] sm:$0xff]
      %v2461 = vld [vmem:[%s957 + $0x10] sm:$0xff]
      %v2462 = vld [vmem:[%s957 + $0x18] sm:$0xff]
      %v2463 = vld [vmem:[%s957 + $0x20] sm:$0xff]
      %v2464 = vld [vmem:[%s957 + $0x28] sm:$0xff]
      %v2465 = vld [vmem:[%s957 + $0x30] sm:$0xff]
      %v2466 = vld [vmem:[%s957 + $0x38] sm:$0xff]
      %v2467 = vld [vmem:[%s957 + $0x40] sm:$0xff]
      %v2468 = vld [vmem:[%s957 + $0x48] sm:$0xff]
      %v2469 = vld [vmem:[%s957 + $0x50] sm:$0xff]
      %v2470 = vld [vmem:[%s957 + $0x58] sm:$0xff]
      %v2471 = vld [vmem:[%s957 + $0x60] sm:$0xff]
      %v2472 = vld [vmem:[%s957 + $0x68] sm:$0xff]
      %v2473 = vld [vmem:[%s957 + $0x70] sm:$0xff]
      %v2474 = vld [vmem:[%s957 + $0x78] sm:$0xff]
      %v2475 = vld [vmem:[%s957 + $0x80] sm:$0xff]
      %v2476 = vld [vmem:[%s957 + $0x88] sm:$0xff]
      %v2477 = vld [vmem:[%s957 + $0x90] sm:$0xff]
      %v2478 = vld [vmem:[%s957 + $0x98] sm:$0xff]
      %v2479 = vld [vmem:[%s957 + $0xa0] sm:$0xff]
      %v2480 = vld [vmem:[%s957 + $0xa8] sm:$0xff]
      %v2481 = vld [vmem:[%s957 + $0xb0] sm:$0xff]
      %v2482 = vld [vmem:[%s957 + $0xb8] sm:$0xff]
      %v2483 = vld [vmem:[%s957 + $0xc0] sm:$0xff]
      %v2484 = vld [vmem:[%s957 + $0xc8] sm:$0xff]
      %v2485 = vld [vmem:[%s957 + $0xd0] sm:$0xff]
      %v2486 = vld [vmem:[%s957 + $0xd8] sm:$0xff]
      %v2487 = vld [vmem:[%s957 + $0xe0] sm:$0xff]
      %v2488 = vld [vmem:[%s957 + $0xe8] sm:$0xff]
      %v2489 = vld [vmem:[%s957 + $0xf0] sm:$0xff]
      %v2490 = vld [vmem:[%s957 + $0xf8] sm:$0xff]
      %v2491 = vmax.f32 %v2427, %v2459
      %v2492 = vmax.f32 %v2428, %v2460
      %v2493 = vmax.f32 %v2429, %v2461
      %v2494 = vmax.f32 %v2430, %v2462
      %v2495 = vmax.f32 %v2431, %v2463
      %v2496 = vmax.f32 %v2432, %v2464
      %v2497 = vmax.f32 %v2433, %v2465
      %v2498 = vmax.f32 %v2434, %v2466
      %v2499 = vmax.f32 %v2435, %v2467
      %v2500 = vmax.f32 %v2436, %v2468
      %v2501 = vmax.f32 %v2437, %v2469
      %v2502 = vmax.f32 %v2438, %v2470
      %v2503 = vmax.f32 %v2439, %v2471
      %v2504 = vmax.f32 %v2440, %v2472
      %v2505 = vmax.f32 %v2441, %v2473
      %v2506 = vmax.f32 %v2442, %v2474
      %v2507 = vmax.f32 %v2443, %v2475
      %v2508 = vmax.f32 %v2444, %v2476
      %v2509 = vmax.f32 %v2445, %v2477
      %v2510 = vmax.f32 %v2446, %v2478
      %v2511 = vmax.f32 %v2447, %v2479
      %v2512 = vmax.f32 %v2448, %v2480
      %v2513 = vmax.f32 %v2449, %v2481
      %v2514 = vmax.f32 %v2450, %v2482
      %v2515 = vmax.f32 %v2451, %v2483
      %v2516 = vmax.f32 %v2452, %v2484
      %v2517 = vmax.f32 %v2453, %v2485
      %v2518 = vmax.f32 %v2454, %v2486
      %v2519 = vmax.f32 %v2455, %v2487
      %v2520 = vmax.f32 %v2456, %v2488
      %v2521 = vmax.f32 %v2457, %v2489
      %v2522 = vmax.f32 %v2458, %v2490
      %v2523 = vld [vmem:[%s892] sm:$0xff]
      %v2524 = vld [vmem:[%s892 + $0x8] sm:$0xff]
      %v2525 = vld [vmem:[%s892 + $0x10] sm:$0xff]
      %v2526 = vld [vmem:[%s892 + $0x18] sm:$0xff]
      %v2527 = vld [vmem:[%s892 + $0x20] sm:$0xff]
      %v2528 = vld [vmem:[%s892 + $0x28] sm:$0xff]
      %v2529 = vld [vmem:[%s892 + $0x30] sm:$0xff]
      %v2530 = vld [vmem:[%s892 + $0x38] sm:$0xff]
      %v2531 = vld [vmem:[%s892 + $0x40] sm:$0xff]
      %v2532 = vld [vmem:[%s892 + $0x48] sm:$0xff]
      %v2533 = vld [vmem:[%s892 + $0x50] sm:$0xff]
      %v2534 = vld [vmem:[%s892 + $0x58] sm:$0xff]
      %v2535 = vld [vmem:[%s892 + $0x60] sm:$0xff]
      %v2536 = vld [vmem:[%s892 + $0x68] sm:$0xff]
      %v2537 = vld [vmem:[%s892 + $0x70] sm:$0xff]
      %v2538 = vld [vmem:[%s892 + $0x78] sm:$0xff]
      %v2539 = vld [vmem:[%s892 + $0x80] sm:$0xff]
      %v2540 = vld [vmem:[%s892 + $0x88] sm:$0xff]
      %v2541 = vld [vmem:[%s892 + $0x90] sm:$0xff]
      %v2542 = vld [vmem:[%s892 + $0x98] sm:$0xff]
      %v2543 = vld [vmem:[%s892 + $0xa0] sm:$0xff]
      %v2544 = vld [vmem:[%s892 + $0xa8] sm:$0xff]
      %v2545 = vld [vmem:[%s892 + $0xb0] sm:$0xff]
      %v2546 = vld [vmem:[%s892 + $0xb8] sm:$0xff]
      %v2547 = vld [vmem:[%s892 + $0xc0] sm:$0xff]
      %v2548 = vld [vmem:[%s892 + $0xc8] sm:$0xff]
      %v2549 = vld [vmem:[%s892 + $0xd0] sm:$0xff]
      %v2550 = vld [vmem:[%s892 + $0xd8] sm:$0xff]
      %v2551 = vld [vmem:[%s892 + $0xe0] sm:$0xff]
      %v2552 = vld [vmem:[%s892 + $0xe8] sm:$0xff]
      %v2553 = vld [vmem:[%s892 + $0xf0] sm:$0xff]
      %v2554 = vld [vmem:[%s892 + $0xf8] sm:$0xff]
      %v2555 = vmax.f32 %v2491, %v2523
      %v2556 = vmax.f32 %v2492, %v2524
      %v2557 = vmax.f32 %v2493, %v2525
      %v2558 = vmax.f32 %v2494, %v2526
      %v2559 = vmax.f32 %v2495, %v2527
      %v2560 = vmax.f32 %v2496, %v2528
      %v2561 = vmax.f32 %v2497, %v2529
      %v2562 = vmax.f32 %v2498, %v2530
      %v2563 = vmax.f32 %v2499, %v2531
      %v2564 = vmax.f32 %v2500, %v2532
      %v2565 = vmax.f32 %v2501, %v2533
      %v2566 = vmax.f32 %v2502, %v2534
      %v2567 = vmax.f32 %v2503, %v2535
      %v2568 = vmax.f32 %v2504, %v2536
      %v2569 = vmax.f32 %v2505, %v2537
      %v2570 = vmax.f32 %v2506, %v2538
      %v2571 = vmax.f32 %v2507, %v2539
      %v2572 = vmax.f32 %v2508, %v2540
      %v2573 = vmax.f32 %v2509, %v2541
      %v2574 = vmax.f32 %v2510, %v2542
      %v2575 = vmax.f32 %v2511, %v2543
      %v2576 = vmax.f32 %v2512, %v2544
      %v2577 = vmax.f32 %v2513, %v2545
      %v2578 = vmax.f32 %v2514, %v2546
      %v2579 = vmax.f32 %v2515, %v2547
      %v2580 = vmax.f32 %v2516, %v2548
      %v2581 = vmax.f32 %v2517, %v2549
      %v2582 = vmax.f32 %v2518, %v2550
      %v2583 = vmax.f32 %v2519, %v2551
      %v2584 = vmax.f32 %v2520, %v2552
      %v2585 = vmax.f32 %v2521, %v2553
      %v2586 = vmax.f32 %v2522, %v2554
      %v2587 = vld [vmem:[%s1086] sm:$0xff]
      %v2588 = vld [vmem:[%s1086 + $0x8] sm:$0xff]
      %v2589 = vld [vmem:[%s1086 + $0x10] sm:$0xff]
      %v2590 = vld [vmem:[%s1086 + $0x18] sm:$0xff]
      %v2591 = vld [vmem:[%s1086 + $0x20] sm:$0xff]
      %v2592 = vld [vmem:[%s1086 + $0x28] sm:$0xff]
      %v2593 = vld [vmem:[%s1086 + $0x30] sm:$0xff]
      %v2594 = vld [vmem:[%s1086 + $0x38] sm:$0xff]
      %v2595 = vld [vmem:[%s1086 + $0x40] sm:$0xff]
      %v2596 = vld [vmem:[%s1086 + $0x48] sm:$0xff]
      %v2597 = vld [vmem:[%s1086 + $0x50] sm:$0xff]
      %v2598 = vld [vmem:[%s1086 + $0x58] sm:$0xff]
      %v2599 = vld [vmem:[%s1086 + $0x60] sm:$0xff]
      %v2600 = vld [vmem:[%s1086 + $0x68] sm:$0xff]
      %v2601 = vld [vmem:[%s1086 + $0x70] sm:$0xff]
      %v2602 = vld [vmem:[%s1086 + $0x78] sm:$0xff]
      %v2603 = vld [vmem:[%s1086 + $0x80] sm:$0xff]
      %v2604 = vld [vmem:[%s1086 + $0x88] sm:$0xff]
      %v2605 = vld [vmem:[%s1086 + $0x90] sm:$0xff]
      %v2606 = vld [vmem:[%s1086 + $0x98] sm:$0xff]
      %v2607 = vld [vmem:[%s1086 + $0xa0] sm:$0xff]
      %v2608 = vld [vmem:[%s1086 + $0xa8] sm:$0xff]
      %v2609 = vld [vmem:[%s1086 + $0xb0] sm:$0xff]
      %v2610 = vld [vmem:[%s1086 + $0xb8] sm:$0xff]
      %v2611 = vld [vmem:[%s1086 + $0xc0] sm:$0xff]
      %v2612 = vld [vmem:[%s1086 + $0xc8] sm:$0xff]
      %v2613 = vld [vmem:[%s1086 + $0xd0] sm:$0xff]
      %v2614 = vld [vmem:[%s1086 + $0xd8] sm:$0xff]
      %v2615 = vld [vmem:[%s1086 + $0xe0] sm:$0xff]
      %v2616 = vld [vmem:[%s1086 + $0xe8] sm:$0xff]
      %v2617 = vld [vmem:[%s1086 + $0xf0] sm:$0xff]
      %v2618 = vld [vmem:[%s1086 + $0xf8] sm:$0xff]
      %v2619 = vmax.f32 %v2555, %v2587
      %v2620 = vmax.f32 %v2556, %v2588
      %v2621 = vmax.f32 %v2557, %v2589
      %v2622 = vmax.f32 %v2558, %v2590
      %v2623 = vmax.f32 %v2559, %v2591
      %v2624 = vmax.f32 %v2560, %v2592
      %v2625 = vmax.f32 %v2561, %v2593
      %v2626 = vmax.f32 %v2562, %v2594
      %v2627 = vmax.f32 %v2563, %v2595
      %v2628 = vmax.f32 %v2564, %v2596
      %v2629 = vmax.f32 %v2565, %v2597
      %v2630 = vmax.f32 %v2566, %v2598
      %v2631 = vmax.f32 %v2567, %v2599
      %v2632 = vmax.f32 %v2568, %v2600
      %v2633 = vmax.f32 %v2569, %v2601
      %v2634 = vmax.f32 %v2570, %v2602
      %v2635 = vmax.f32 %v2571, %v2603
      %v2636 = vmax.f32 %v2572, %v2604
      %v2637 = vmax.f32 %v2573, %v2605
      %v2638 = vmax.f32 %v2574, %v2606
      %v2639 = vmax.f32 %v2575, %v2607
      %v2640 = vmax.f32 %v2576, %v2608
      %v2641 = vmax.f32 %v2577, %v2609
      %v2642 = vmax.f32 %v2578, %v2610
      %v2643 = vmax.f32 %v2579, %v2611
      %v2644 = vmax.f32 %v2580, %v2612
      %v2645 = vmax.f32 %v2581, %v2613
      %v2646 = vmax.f32 %v2582, %v2614
      %v2647 = vmax.f32 %v2583, %v2615
      %v2648 = vmax.f32 %v2584, %v2616
      %v2649 = vmax.f32 %v2585, %v2617
      %v2650 = vmax.f32 %v2586, %v2618
      %v2651 = vld [vmem:[%s1151] sm:$0xff]
      %v2652 = vld [vmem:[%s1151 + $0x8] sm:$0xff]
      %v2653 = vld [vmem:[%s1151 + $0x10] sm:$0xff]
      %v2654 = vld [vmem:[%s1151 + $0x18] sm:$0xff]
      %v2655 = vld [vmem:[%s1151 + $0x20] sm:$0xff]
      %v2656 = vld [vmem:[%s1151 + $0x28] sm:$0xff]
      %v2657 = vld [vmem:[%s1151 + $0x30] sm:$0xff]
      %v2658 = vld [vmem:[%s1151 + $0x38] sm:$0xff]
      %v2659 = vld [vmem:[%s1151 + $0x40] sm:$0xff]
      %v2660 = vld [vmem:[%s1151 + $0x48] sm:$0xff]
      %v2661 = vld [vmem:[%s1151 + $0x50] sm:$0xff]
      %v2662 = vld [vmem:[%s1151 + $0x58] sm:$0xff]
      %v2663 = vld [vmem:[%s1151 + $0x60] sm:$0xff]
      %v2664 = vld [vmem:[%s1151 + $0x68] sm:$0xff]
      %v2665 = vld [vmem:[%s1151 + $0x70] sm:$0xff]
      %v2666 = vld [vmem:[%s1151 + $0x78] sm:$0xff]
      %v2667 = vld [vmem:[%s1151 + $0x80] sm:$0xff]
      %v2668 = vld [vmem:[%s1151 + $0x88] sm:$0xff]
      %v2669 = vld [vmem:[%s1151 + $0x90] sm:$0xff]
      %v2670 = vld [vmem:[%s1151 + $0x98] sm:$0xff]
      %v2671 = vld [vmem:[%s1151 + $0xa0] sm:$0xff]
      %v2672 = vld [vmem:[%s1151 + $0xa8] sm:$0xff]
      %v2673 = vld [vmem:[%s1151 + $0xb0] sm:$0xff]
      %v2674 = vld [vmem:[%s1151 + $0xb8] sm:$0xff]
      %v2675 = vld [vmem:[%s1151 + $0xc0] sm:$0xff]
      %v2676 = vld [vmem:[%s1151 + $0xc8] sm:$0xff]
      %v2677 = vld [vmem:[%s1151 + $0xd0] sm:$0xff]
      %v2678 = vld [vmem:[%s1151 + $0xd8] sm:$0xff]
      %v2679 = vld [vmem:[%s1151 + $0xe0] sm:$0xff]
      %v2680 = vld [vmem:[%s1151 + $0xe8] sm:$0xff]
      %v2681 = vld [vmem:[%s1151 + $0xf0] sm:$0xff]
      %v2682 = vld [vmem:[%s1151 + $0xf8] sm:$0xff]
      %v2683 = vmax.f32 %v2619, %v2651
      %v2684 = vmax.f32 %v2620, %v2652
      %v2685 = vmax.f32 %v2621, %v2653
      %v2686 = vmax.f32 %v2622, %v2654
      %v2687 = vmax.f32 %v2623, %v2655
      %v2688 = vmax.f32 %v2624, %v2656
      %v2689 = vmax.f32 %v2625, %v2657
      %v2690 = vmax.f32 %v2626, %v2658
      %v2691 = vmax.f32 %v2627, %v2659
      %v2692 = vmax.f32 %v2628, %v2660
      %v2693 = vmax.f32 %v2629, %v2661
      %v2694 = vmax.f32 %v2630, %v2662
      %v2695 = vmax.f32 %v2631, %v2663
      %v2696 = vmax.f32 %v2632, %v2664
      %v2697 = vmax.f32 %v2633, %v2665
      %v2698 = vmax.f32 %v2634, %v2666
      %v2699 = vmax.f32 %v2635, %v2667
      %v2700 = vmax.f32 %v2636, %v2668
      %v2701 = vmax.f32 %v2637, %v2669
      %v2702 = vmax.f32 %v2638, %v2670
      %v2703 = vmax.f32 %v2639, %v2671
      %v2704 = vmax.f32 %v2640, %v2672
      %v2705 = vmax.f32 %v2641, %v2673
      %v2706 = vmax.f32 %v2642, %v2674
      %v2707 = vmax.f32 %v2643, %v2675
      %v2708 = vmax.f32 %v2644, %v2676
      %v2709 = vmax.f32 %v2645, %v2677
      %v2710 = vmax.f32 %v2646, %v2678
      %v2711 = vmax.f32 %v2647, %v2679
      %v2712 = vmax.f32 %v2648, %v2680
      %v2713 = vmax.f32 %v2649, %v2681
      %v2714 = vmax.f32 %v2650, %v2682
      %v2715 = vrot.slane %v2683, 7
      %v2716 = vrot.slane %v2685, 7
      %v2717 = vrot.slane %v2687, 7
      %v2718 = vrot.slane %v2689, 7
      %v2719 = vrot.slane %v2691, 7
      %v2720 = vrot.slane %v2693, 7
      %v2721 = vrot.slane %v2695, 7
      %v2722 = vrot.slane %v2697, 7
      %v2723 = vrot.slane %v2699, 7
      %v2724 = vrot.slane %v2701, 7
      %v2725 = vrot.slane %v2703, 7
      %v2726 = vrot.slane %v2705, 7
      %v2727 = vrot.slane %v2707, 7
      %v2728 = vrot.slane %v2709, 7
      %v2729 = vrot.slane %v2711, 7
      %v2730 = vrot.slane %v2713, 7
      %v2731 = vrot.slane %v2684, 7
      %v2732 = vrot.slane %v2686, 7
      %v2733 = vrot.slane %v2688, 7
      %v2734 = vrot.slane %v2690, 7
      %v2735 = vrot.slane %v2692, 7
      %v2736 = vrot.slane %v2694, 7
      %v2737 = vrot.slane %v2696, 7
      %v2738 = vrot.slane %v2698, 7
      %v2739 = vrot.slane %v2700, 7
      %v2740 = vrot.slane %v2702, 7
      %v2741 = vrot.slane %v2704, 7
      %v2742 = vrot.slane %v2706, 7
      %v2743 = vrot.slane %v2708, 7
      %v2744 = vrot.slane %v2710, 7
      %v2745 = vrot.slane %v2712, 7
      %v2746 = vrot.slane %v2714, 7
      %v2747 = vsel %vm817, %v2715, %v2731
      %v2748 = vsel %vm817, %v2716, %v2732
      %v2749 = vsel %vm817, %v2717, %v2733
      %v2750 = vsel %vm817, %v2718, %v2734
      %v2751 = vsel %vm817, %v2719, %v2735
      %v2752 = vsel %vm817, %v2720, %v2736
      %v2753 = vsel %vm817, %v2721, %v2737
      %v2754 = vsel %vm817, %v2722, %v2738
      %v2755 = vsel %vm817, %v2723, %v2739
      %v2756 = vsel %vm817, %v2724, %v2740
      %v2757 = vsel %vm817, %v2725, %v2741
      %v2758 = vsel %vm817, %v2726, %v2742
      %v2759 = vsel %vm817, %v2727, %v2743
      %v2760 = vsel %vm817, %v2728, %v2744
      %v2761 = vsel %vm817, %v2729, %v2745
      %v2762 = vsel %vm817, %v2730, %v2746
      %v2763 = vsel %vm817, %v2731, %v2715
      %v2764 = vsel %vm817, %v2732, %v2716
      %v2765 = vsel %vm817, %v2733, %v2717
      %v2766 = vsel %vm817, %v2734, %v2718
      %v2767 = vsel %vm817, %v2735, %v2719
      %v2768 = vsel %vm817, %v2736, %v2720
      %v2769 = vsel %vm817, %v2737, %v2721
      %v2770 = vsel %vm817, %v2738, %v2722
      %v2771 = vsel %vm817, %v2739, %v2723
      %v2772 = vsel %vm817, %v2740, %v2724
      %v2773 = vsel %vm817, %v2741, %v2725
      %v2774 = vsel %vm817, %v2742, %v2726
      %v2775 = vsel %vm817, %v2743, %v2727
      %v2776 = vsel %vm817, %v2744, %v2728
      %v2777 = vsel %vm817, %v2745, %v2729
      %v2778 = vsel %vm817, %v2746, %v2730
      %v2779 = vsel %vm1282, %v2763, -inf
      %v2780 = vsel %vm1283, %v2747, -inf
      %v2781 = vsel %vm1282, %v2764, -inf
      %v2782 = vsel %vm1283, %v2748, -inf
      %v2783 = vsel %vm1282, %v2765, -inf
      %v2784 = vsel %vm1283, %v2749, -inf
      %v2785 = vsel %vm1282, %v2766, -inf
      %v2786 = vsel %vm1283, %v2750, -inf
      %v2787 = vsel %vm1282, %v2767, -inf
      %v2788 = vsel %vm1283, %v2751, -inf
      %v2789 = vsel %vm1282, %v2768, -inf
      %v2790 = vsel %vm1283, %v2752, -inf
      %v2791 = vsel %vm1282, %v2769, -inf
      %v2792 = vsel %vm1283, %v2753, -inf
      %v2793 = vsel %vm1282, %v2770, -inf
      %v2794 = vsel %vm1283, %v2754, -inf
      %v2795 = vsel %vm1282, %v2771, -inf
      %v2796 = vsel %vm1283, %v2755, -inf
      %v2797 = vsel %vm1282, %v2772, -inf
      %v2798 = vsel %vm1283, %v2756, -inf
      %v2799 = vsel %vm1282, %v2773, -inf
      %v2800 = vsel %vm1283, %v2757, -inf
      %v2801 = vsel %vm1282, %v2774, -inf
      %v2802 = vsel %vm1283, %v2758, -inf
      %v2803 = vsel %vm1282, %v2775, -inf
      %v2804 = vsel %vm1283, %v2759, -inf
      %v2805 = vsel %vm1282, %v2776, -inf
      %v2806 = vsel %vm1283, %v2760, -inf
      %v2807 = vsel %vm1282, %v2777, -inf
      %v2808 = vsel %vm1283, %v2761, -inf
      %v2809 = vsel %vm1282, %v2778, -inf
      %v2810 = vsel %vm1283, %v2762, -inf
      %v2811 = vmax.f32 %v2683, %v2779
      %v2812 = vmax.f32 %v2684, %v2780
      %v2813 = vmax.f32 %v2685, %v2781
      %v2814 = vmax.f32 %v2686, %v2782
      %v2815 = vmax.f32 %v2687, %v2783
      %v2816 = vmax.f32 %v2688, %v2784
      %v2817 = vmax.f32 %v2689, %v2785
      %v2818 = vmax.f32 %v2690, %v2786
      %v2819 = vmax.f32 %v2691, %v2787
      %v2820 = vmax.f32 %v2692, %v2788
      %v2821 = vmax.f32 %v2693, %v2789
      %v2822 = vmax.f32 %v2694, %v2790
      %v2823 = vmax.f32 %v2695, %v2791
      %v2824 = vmax.f32 %v2696, %v2792
      %v2825 = vmax.f32 %v2697, %v2793
      %v2826 = vmax.f32 %v2698, %v2794
      %v2827 = vmax.f32 %v2699, %v2795
      %v2828 = vmax.f32 %v2700, %v2796
      %v2829 = vmax.f32 %v2701, %v2797
      %v2830 = vmax.f32 %v2702, %v2798
      %v2831 = vmax.f32 %v2703, %v2799
      %v2832 = vmax.f32 %v2704, %v2800
      %v2833 = vmax.f32 %v2705, %v2801
      %v2834 = vmax.f32 %v2706, %v2802
      %v2835 = vmax.f32 %v2707, %v2803
      %v2836 = vmax.f32 %v2708, %v2804
      %v2837 = vmax.f32 %v2709, %v2805
      %v2838 = vmax.f32 %v2710, %v2806
      %v2839 = vmax.f32 %v2711, %v2807
      %v2840 = vmax.f32 %v2712, %v2808
      %v2841 = vmax.f32 %v2713, %v2809
      %v2842 = vmax.f32 %v2714, %v2810
      %v2843 = vrot.slane %v2683, 6
      %v2844 = vrot.slane %v2685, 6
      %v2845 = vrot.slane %v2687, 6
      %v2846 = vrot.slane %v2689, 6
      %v2847 = vrot.slane %v2691, 6
      %v2848 = vrot.slane %v2693, 6
      %v2849 = vrot.slane %v2695, 6
      %v2850 = vrot.slane %v2697, 6
      %v2851 = vrot.slane %v2699, 6
      %v2852 = vrot.slane %v2701, 6
      %v2853 = vrot.slane %v2703, 6
      %v2854 = vrot.slane %v2705, 6
      %v2855 = vrot.slane %v2707, 6
      %v2856 = vrot.slane %v2709, 6
      %v2857 = vrot.slane %v2711, 6
      %v2858 = vrot.slane %v2713, 6
      %v2859 = vrot.slane %v2684, 6
      %v2860 = vrot.slane %v2686, 6
      %v2861 = vrot.slane %v2688, 6
      %v2862 = vrot.slane %v2690, 6
      %v2863 = vrot.slane %v2692, 6
      %v2864 = vrot.slane %v2694, 6
      %v2865 = vrot.slane %v2696, 6
      %v2866 = vrot.slane %v2698, 6
      %v2867 = vrot.slane %v2700, 6
      %v2868 = vrot.slane %v2702, 6
      %v2869 = vrot.slane %v2704, 6
      %v2870 = vrot.slane %v2706, 6
      %v2871 = vrot.slane %v2708, 6
      %v2872 = vrot.slane %v2710, 6
      %v2873 = vrot.slane %v2712, 6
      %v2874 = vrot.slane %v2714, 6
      %v2875 = vsel %vm836, %v2843, %v2859
      %v2876 = vsel %vm836, %v2844, %v2860
      %v2877 = vsel %vm836, %v2845, %v2861
      %v2878 = vsel %vm836, %v2846, %v2862
      %v2879 = vsel %vm836, %v2847, %v2863
      %v2880 = vsel %vm836, %v2848, %v2864
      %v2881 = vsel %vm836, %v2849, %v2865
      %v2882 = vsel %vm836, %v2850, %v2866
      %v2883 = vsel %vm836, %v2851, %v2867
      %v2884 = vsel %vm836, %v2852, %v2868
      %v2885 = vsel %vm836, %v2853, %v2869
      %v2886 = vsel %vm836, %v2854, %v2870
      %v2887 = vsel %vm836, %v2855, %v2871
      %v2888 = vsel %vm836, %v2856, %v2872
      %v2889 = vsel %vm836, %v2857, %v2873
      %v2890 = vsel %vm836, %v2858, %v2874
      %v2891 = vsel %vm836, %v2859, %v2843
      %v2892 = vsel %vm836, %v2860, %v2844
      %v2893 = vsel %vm836, %v2861, %v2845
      %v2894 = vsel %vm836, %v2862, %v2846
      %v2895 = vsel %vm836, %v2863, %v2847
      %v2896 = vsel %vm836, %v2864, %v2848
      %v2897 = vsel %vm836, %v2865, %v2849
      %v2898 = vsel %vm836, %v2866, %v2850
      %v2899 = vsel %vm836, %v2867, %v2851
      %v2900 = vsel %vm836, %v2868, %v2852
      %v2901 = vsel %vm836, %v2869, %v2853
      %v2902 = vsel %vm836, %v2870, %v2854
      %v2903 = vsel %vm836, %v2871, %v2855
      %v2904 = vsel %vm836, %v2872, %v2856
      %v2905 = vsel %vm836, %v2873, %v2857
      %v2906 = vsel %vm836, %v2874, %v2858
      %v2907 = vsel %vm1414, %v2891, -inf
      %v2908 = vsel %vm1415, %v2875, -inf
      %v2909 = vsel %vm1414, %v2892, -inf
      %v2910 = vsel %vm1415, %v2876, -inf
      %v2911 = vsel %vm1414, %v2893, -inf
      %v2912 = vsel %vm1415, %v2877, -inf
      %v2913 = vsel %vm1414, %v2894, -inf
      %v2914 = vsel %vm1415, %v2878, -inf
      %v2915 = vsel %vm1414, %v2895, -inf
      %v2916 = vsel %vm1415, %v2879, -inf
      %v2917 = vsel %vm1414, %v2896, -inf
      %v2918 = vsel %vm1415, %v2880, -inf
      %v2919 = vsel %vm1414, %v2897, -inf
      %v2920 = vsel %vm1415, %v2881, -inf
      %v2921 = vsel %vm1414, %v2898, -inf
      %v2922 = vsel %vm1415, %v2882, -inf
      %v2923 = vsel %vm1414, %v2899, -inf
      %v2924 = vsel %vm1415, %v2883, -inf
      %v2925 = vsel %vm1414, %v2900, -inf
      %v2926 = vsel %vm1415, %v2884, -inf
      %v2927 = vsel %vm1414, %v2901, -inf
      %v2928 = vsel %vm1415, %v2885, -inf
      %v2929 = vsel %vm1414, %v2902, -inf
      %v2930 = vsel %vm1415, %v2886, -inf
      %v2931 = vsel %vm1414, %v2903, -inf
      %v2932 = vsel %vm1415, %v2887, -inf
      %v2933 = vsel %vm1414, %v2904, -inf
      %v2934 = vsel %vm1415, %v2888, -inf
      %v2935 = vsel %vm1414, %v2905, -inf
      %v2936 = vsel %vm1415, %v2889, -inf
      %v2937 = vsel %vm1414, %v2906, -inf
      %v2938 = vsel %vm1415, %v2890, -inf
      %v2939 = vmax.f32 %v2811, %v2907
      %v2940 = vmax.f32 %v2812, %v2908
      %v2941 = vmax.f32 %v2813, %v2909
      %v2942 = vmax.f32 %v2814, %v2910
      %v2943 = vmax.f32 %v2815, %v2911
      %v2944 = vmax.f32 %v2816, %v2912
      %v2945 = vmax.f32 %v2817, %v2913
      %v2946 = vmax.f32 %v2818, %v2914
      %v2947 = vmax.f32 %v2819, %v2915
      %v2948 = vmax.f32 %v2820, %v2916
      %v2949 = vmax.f32 %v2821, %v2917
      %v2950 = vmax.f32 %v2822, %v2918
      %v2951 = vmax.f32 %v2823, %v2919
      %v2952 = vmax.f32 %v2824, %v2920
      %v2953 = vmax.f32 %v2825, %v2921
      %v2954 = vmax.f32 %v2826, %v2922
      %v2955 = vmax.f32 %v2827, %v2923
      %v2956 = vmax.f32 %v2828, %v2924
      %v2957 = vmax.f32 %v2829, %v2925
      %v2958 = vmax.f32 %v2830, %v2926
      %v2959 = vmax.f32 %v2831, %v2927
      %v2960 = vmax.f32 %v2832, %v2928
      %v2961 = vmax.f32 %v2833, %v2929
      %v2962 = vmax.f32 %v2834, %v2930
      %v2963 = vmax.f32 %v2835, %v2931
      %v2964 = vmax.f32 %v2836, %v2932
      %v2965 = vmax.f32 %v2837, %v2933
      %v2966 = vmax.f32 %v2838, %v2934
      %v2967 = vmax.f32 %v2839, %v2935
      %v2968 = vmax.f32 %v2840, %v2936
      %v2969 = vmax.f32 %v2841, %v2937
      %v2970 = vmax.f32 %v2842, %v2938
      %v2971 = vrot.slane %v2683, 2
      %v2972 = vrot.slane %v2685, 2
      %v2973 = vrot.slane %v2687, 2
      %v2974 = vrot.slane %v2689, 2
      %v2975 = vrot.slane %v2691, 2
      %v2976 = vrot.slane %v2693, 2
      %v2977 = vrot.slane %v2695, 2
      %v2978 = vrot.slane %v2697, 2
      %v2979 = vrot.slane %v2699, 2
      %v2980 = vrot.slane %v2701, 2
      %v2981 = vrot.slane %v2703, 2
      %v2982 = vrot.slane %v2705, 2
      %v2983 = vrot.slane %v2707, 2
      %v2984 = vrot.slane %v2709, 2
      %v2985 = vrot.slane %v2711, 2
      %v2986 = vrot.slane %v2713, 2
      %v2987 = vrot.slane %v2684, 2
      %v2988 = vrot.slane %v2686, 2
      %v2989 = vrot.slane %v2688, 2
      %v2990 = vrot.slane %v2690, 2
      %v2991 = vrot.slane %v2692, 2
      %v2992 = vrot.slane %v2694, 2
      %v2993 = vrot.slane %v2696, 2
      %v2994 = vrot.slane %v2698, 2
      %v2995 = vrot.slane %v2700, 2
      %v2996 = vrot.slane %v2702, 2
      %v2997 = vrot.slane %v2704, 2
      %v2998 = vrot.slane %v2706, 2
      %v2999 = vrot.slane %v2708, 2
      %v3000 = vrot.slane %v2710, 2
      %v3001 = vrot.slane %v2712, 2
      %v3002 = vrot.slane %v2714, 2
      %v3003 = vsel %vm855, %v2971, %v2987
      %v3004 = vsel %vm855, %v2972, %v2988
      %v3005 = vsel %vm855, %v2973, %v2989
      %v3006 = vsel %vm855, %v2974, %v2990
      %v3007 = vsel %vm855, %v2975, %v2991
      %v3008 = vsel %vm855, %v2976, %v2992
      %v3009 = vsel %vm855, %v2977, %v2993
      %v3010 = vsel %vm855, %v2978, %v2994
      %v3011 = vsel %vm855, %v2979, %v2995
      %v3012 = vsel %vm855, %v2980, %v2996
      %v3013 = vsel %vm855, %v2981, %v2997
      %v3014 = vsel %vm855, %v2982, %v2998
      %v3015 = vsel %vm855, %v2983, %v2999
      %v3016 = vsel %vm855, %v2984, %v3000
      %v3017 = vsel %vm855, %v2985, %v3001
      %v3018 = vsel %vm855, %v2986, %v3002
      %v3019 = vsel %vm855, %v2987, %v2971
      %v3020 = vsel %vm855, %v2988, %v2972
      %v3021 = vsel %vm855, %v2989, %v2973
      %v3022 = vsel %vm855, %v2990, %v2974
      %v3023 = vsel %vm855, %v2991, %v2975
      %v3024 = vsel %vm855, %v2992, %v2976
      %v3025 = vsel %vm855, %v2993, %v2977
      %v3026 = vsel %vm855, %v2994, %v2978
      %v3027 = vsel %vm855, %v2995, %v2979
      %v3028 = vsel %vm855, %v2996, %v2980
      %v3029 = vsel %vm855, %v2997, %v2981
      %v3030 = vsel %vm855, %v2998, %v2982
      %v3031 = vsel %vm855, %v2999, %v2983
      %v3032 = vsel %vm855, %v3000, %v2984
      %v3033 = vsel %vm855, %v3001, %v2985
      %v3034 = vsel %vm855, %v3002, %v2986
      %v3035 = vsel %vm1546, %v3003, -inf
      %v3036 = vsel %vm1547, %v3019, -inf
      %v3037 = vsel %vm1546, %v3004, -inf
      %v3038 = vsel %vm1547, %v3020, -inf
      %v3039 = vsel %vm1546, %v3005, -inf
      %v3040 = vsel %vm1547, %v3021, -inf
      %v3041 = vsel %vm1546, %v3006, -inf
      %v3042 = vsel %vm1547, %v3022, -inf
      %v3043 = vsel %vm1546, %v3007, -inf
      %v3044 = vsel %vm1547, %v3023, -inf
      %v3045 = vsel %vm1546, %v3008, -inf
      %v3046 = vsel %vm1547, %v3024, -inf
      %v3047 = vsel %vm1546, %v3009, -inf
      %v3048 = vsel %vm1547, %v3025, -inf
      %v3049 = vsel %vm1546, %v3010, -inf
      %v3050 = vsel %vm1547, %v3026, -inf
      %v3051 = vsel %vm1546, %v3011, -inf
      %v3052 = vsel %vm1547, %v3027, -inf
      %v3053 = vsel %vm1546, %v3012, -inf
      %v3054 = vsel %vm1547, %v3028, -inf
      %v3055 = vsel %vm1546, %v3013, -inf
      %v3056 = vsel %vm1547, %v3029, -inf
      %v3057 = vsel %vm1546, %v3014, -inf
      %v3058 = vsel %vm1547, %v3030, -inf
      %v3059 = vsel %vm1546, %v3015, -inf
      %v3060 = vsel %vm1547, %v3031, -inf
      %v3061 = vsel %vm1546, %v3016, -inf
      %v3062 = vsel %vm1547, %v3032, -inf
      %v3063 = vsel %vm1546, %v3017, -inf
      %v3064 = vsel %vm1547, %v3033, -inf
      %v3065 = vsel %vm1546, %v3018, -inf
      %v3066 = vsel %vm1547, %v3034, -inf
      %v3067 = vmax.f32 %v2939, %v3035
      %v3068 = vmax.f32 %v2940, %v3036
      %v3069 = vmax.f32 %v2941, %v3037
      %v3070 = vmax.f32 %v2942, %v3038
      %v3071 = vmax.f32 %v2943, %v3039
      %v3072 = vmax.f32 %v2944, %v3040
      %v3073 = vmax.f32 %v2945, %v3041
      %v3074 = vmax.f32 %v2946, %v3042
      %v3075 = vmax.f32 %v2947, %v3043
      %v3076 = vmax.f32 %v2948, %v3044
      %v3077 = vmax.f32 %v2949, %v3045
      %v3078 = vmax.f32 %v2950, %v3046
      %v3079 = vmax.f32 %v2951, %v3047
      %v3080 = vmax.f32 %v2952, %v3048
      %v3081 = vmax.f32 %v2953, %v3049
      %v3082 = vmax.f32 %v2954, %v3050
      %v3083 = vmax.f32 %v2955, %v3051
      %v3084 = vmax.f32 %v2956, %v3052
      %v3085 = vmax.f32 %v2957, %v3053
      %v3086 = vmax.f32 %v2958, %v3054
      %v3087 = vmax.f32 %v2959, %v3055
      %v3088 = vmax.f32 %v2960, %v3056
      %v3089 = vmax.f32 %v2961, %v3057
      %v3090 = vmax.f32 %v2962, %v3058
      %v3091 = vmax.f32 %v2963, %v3059
      %v3092 = vmax.f32 %v2964, %v3060
      %v3093 = vmax.f32 %v2965, %v3061
      %v3094 = vmax.f32 %v2966, %v3062
      %v3095 = vmax.f32 %v2967, %v3063
      %v3096 = vmax.f32 %v2968, %v3064
      %v3097 = vmax.f32 %v2969, %v3065
      %v3098 = vmax.f32 %v2970, %v3066
      %v3099 = vrot.slane %v2683, 1
      %v3100 = vrot.slane %v2685, 1
      %v3101 = vrot.slane %v2687, 1
      %v3102 = vrot.slane %v2689, 1
      %v3103 = vrot.slane %v2691, 1
      %v3104 = vrot.slane %v2693, 1
      %v3105 = vrot.slane %v2695, 1
      %v3106 = vrot.slane %v2697, 1
      %v3107 = vrot.slane %v2699, 1
      %v3108 = vrot.slane %v2701, 1
      %v3109 = vrot.slane %v2703, 1
      %v3110 = vrot.slane %v2705, 1
      %v3111 = vrot.slane %v2707, 1
      %v3112 = vrot.slane %v2709, 1
      %v3113 = vrot.slane %v2711, 1
      %v3114 = vrot.slane %v2713, 1
      %v3115 = vrot.slane %v2684, 1
      %v3116 = vrot.slane %v2686, 1
      %v3117 = vrot.slane %v2688, 1
      %v3118 = vrot.slane %v2690, 1
      %v3119 = vrot.slane %v2692, 1
      %v3120 = vrot.slane %v2694, 1
      %v3121 = vrot.slane %v2696, 1
      %v3122 = vrot.slane %v2698, 1
      %v3123 = vrot.slane %v2700, 1
      %v3124 = vrot.slane %v2702, 1
      %v3125 = vrot.slane %v2704, 1
      %v3126 = vrot.slane %v2706, 1
      %v3127 = vrot.slane %v2708, 1
      %v3128 = vrot.slane %v2710, 1
      %v3129 = vrot.slane %v2712, 1
      %v3130 = vrot.slane %v2714, 1
      %v3131 = vsel %vm874, %v3099, %v3115
      %v3132 = vsel %vm874, %v3100, %v3116
      %v3133 = vsel %vm874, %v3101, %v3117
      %v3134 = vsel %vm874, %v3102, %v3118
      %v3135 = vsel %vm874, %v3103, %v3119
      %v3136 = vsel %vm874, %v3104, %v3120
      %v3137 = vsel %vm874, %v3105, %v3121
      %v3138 = vsel %vm874, %v3106, %v3122
      %v3139 = vsel %vm874, %v3107, %v3123
      %v3140 = vsel %vm874, %v3108, %v3124
      %v3141 = vsel %vm874, %v3109, %v3125
      %v3142 = vsel %vm874, %v3110, %v3126
      %v3143 = vsel %vm874, %v3111, %v3127
      %v3144 = vsel %vm874, %v3112, %v3128
      %v3145 = vsel %vm874, %v3113, %v3129
      %v3146 = vsel %vm874, %v3114, %v3130
      %v3147 = vsel %vm874, %v3115, %v3099
      %v3148 = vsel %vm874, %v3116, %v3100
      %v3149 = vsel %vm874, %v3117, %v3101
      %v3150 = vsel %vm874, %v3118, %v3102
      %v3151 = vsel %vm874, %v3119, %v3103
      %v3152 = vsel %vm874, %v3120, %v3104
      %v3153 = vsel %vm874, %v3121, %v3105
      %v3154 = vsel %vm874, %v3122, %v3106
      %v3155 = vsel %vm874, %v3123, %v3107
      %v3156 = vsel %vm874, %v3124, %v3108
      %v3157 = vsel %vm874, %v3125, %v3109
      %v3158 = vsel %vm874, %v3126, %v3110
      %v3159 = vsel %vm874, %v3127, %v3111
      %v3160 = vsel %vm874, %v3128, %v3112
      %v3161 = vsel %vm874, %v3129, %v3113
      %v3162 = vsel %vm874, %v3130, %v3114
      %v3163 = vsel %vm1678, %v3131, -inf
      %v3164 = vsel %vm1679, %v3147, -inf
      %v3165 = vsel %vm1678, %v3132, -inf
      %v3166 = vsel %vm1679, %v3148, -inf
      %v3167 = vsel %vm1678, %v3133, -inf
      %v3168 = vsel %vm1679, %v3149, -inf
      %v3169 = vsel %vm1678, %v3134, -inf
      %v3170 = vsel %vm1679, %v3150, -inf
      %v3171 = vsel %vm1678, %v3135, -inf
      %v3172 = vsel %vm1679, %v3151, -inf
      %v3173 = vsel %vm1678, %v3136, -inf
      %v3174 = vsel %vm1679, %v3152, -inf
      %v3175 = vsel %vm1678, %v3137, -inf
      %v3176 = vsel %vm1679, %v3153, -inf
      %v3177 = vsel %vm1678, %v3138, -inf
      %v3178 = vsel %vm1679, %v3154, -inf
      %v3179 = vsel %vm1678, %v3139, -inf
      %v3180 = vsel %vm1679, %v3155, -inf
      %v3181 = vsel %vm1678, %v3140, -inf
      %v3182 = vsel %vm1679, %v3156, -inf
      %v3183 = vsel %vm1678, %v3141, -inf
      %v3184 = vsel %vm1679, %v3157, -inf
      %v3185 = vsel %vm1678, %v3142, -inf
      %v3186 = vsel %vm1679, %v3158, -inf
      %v3187 = vsel %vm1678, %v3143, -inf
      %v3188 = vsel %vm1679, %v3159, -inf
      %v3189 = vsel %vm1678, %v3144, -inf
      %v3190 = vsel %vm1679, %v3160, -inf
      %v3191 = vsel %vm1678, %v3145, -inf
      %v3192 = vsel %vm1679, %v3161, -inf
      %v3193 = vsel %vm1678, %v3146, -inf
      %v3194 = vsel %vm1679, %v3162, -inf
      %v3195 = vmax.f32 %v3067, %v3163
      %v3196 = vmax.f32 %v3068, %v3164
      %v3197 = vmax.f32 %v3069, %v3165
      %v3198 = vmax.f32 %v3070, %v3166
      %v3199 = vmax.f32 %v3071, %v3167
      %v3200 = vmax.f32 %v3072, %v3168
      %v3201 = vmax.f32 %v3073, %v3169
      %v3202 = vmax.f32 %v3074, %v3170
      %v3203 = vmax.f32 %v3075, %v3171
      %v3204 = vmax.f32 %v3076, %v3172
      %v3205 = vmax.f32 %v3077, %v3173
      %v3206 = vmax.f32 %v3078, %v3174
      %v3207 = vmax.f32 %v3079, %v3175
      %v3208 = vmax.f32 %v3080, %v3176
      %v3209 = vmax.f32 %v3081, %v3177
      %v3210 = vmax.f32 %v3082, %v3178
      %v3211 = vmax.f32 %v3083, %v3179
      %v3212 = vmax.f32 %v3084, %v3180
      %v3213 = vmax.f32 %v3085, %v3181
      %v3214 = vmax.f32 %v3086, %v3182
      %v3215 = vmax.f32 %v3087, %v3183
      %v3216 = vmax.f32 %v3088, %v3184
      %v3217 = vmax.f32 %v3089, %v3185
      %v3218 = vmax.f32 %v3090, %v3186
      %v3219 = vmax.f32 %v3091, %v3187
      %v3220 = vmax.f32 %v3092, %v3188
      %v3221 = vmax.f32 %v3093, %v3189
      %v3222 = vmax.f32 %v3094, %v3190
      %v3223 = vmax.f32 %v3095, %v3191
      %v3224 = vmax.f32 %v3096, %v3192
      %v3225 = vmax.f32 %v3097, %v3193
      %v3226 = vmax.f32 %v3098, %v3194
      %s3227 = scalar_lea.vmem %s264, 4
      %v3228 = vld [vmem:[%s3227] sm:$0x3]
      %v3230 = vsel %vm802, %v3195, 0
      %v3233 = vsel %vm802, %v3196, 0
      %v3236 = vsel %vm802, %v3197, 0
      %v3239 = vsel %vm802, %v3198, 0
      %v3242 = vsel %vm802, %v3199, 0
      %v3245 = vsel %vm802, %v3200, 0
      %v3248 = vsel %vm802, %v3201, 0
      %v3251 = vsel %vm802, %v3202, 0
      %v3254 = vsel %vm802, %v3203, 0
      %v3257 = vsel %vm802, %v3204, 0
      %v3260 = vsel %vm802, %v3205, 0
      %v3263 = vsel %vm802, %v3206, 0
      %v3266 = vsel %vm802, %v3207, 0
      %v3269 = vsel %vm802, %v3208, 0
      %v3272 = vsel %vm802, %v3209, 0
      %v3275 = vsel %vm802, %v3210, 0
      %v3278 = vsel %vm802, %v3211, 0
      %v3281 = vsel %vm802, %v3212, 0
      %v3284 = vsel %vm802, %v3213, 0
      %v3287 = vsel %vm802, %v3214, 0
      %v3290 = vsel %vm802, %v3215, 0
      %v3293 = vsel %vm802, %v3216, 0
      %v3296 = vsel %vm802, %v3217, 0
      %v3299 = vsel %vm802, %v3218, 0
      %v3302 = vsel %vm802, %v3219, 0
      %v3305 = vsel %vm802, %v3220, 0
      %v3308 = vsel %vm802, %v3221, 0
      %v3311 = vsel %vm802, %v3222, 0
      %v3314 = vsel %vm802, %v3223, 0
      %v3317 = vsel %vm802, %v3224, 0
      %v3320 = vsel %vm802, %v3225, 0
      %v3323 = vsel %vm802, %v3226, 0
      %v3326 = vsel %vm1842, %v3228, 0
      %3328 = vmatprep.subr.mxu0 0.0
      %3329 = vmatpush1.msra.mxu0 %v3326
      %3330 = vmatprep.subr.mxu0 0.0
      %3331 = vmatpush1.msra.mxu0 0.0
      %3332 = vmatprep.subr.mxu0 0.0
      %3333 = vmatpush1.msra.mxu0 0.0
      %3334 = vmatprep.subr.mxu0 0.0
      %3335 = vmatpush1.msra.mxu0 0.0
      %3336 = vmatprep.subr.mxu0 0.0
      %3337 = vmatpush1.msra.mxu0 0.0
      %3338 = vmatprep.subr.mxu0 0.0
      %3339 = vmatpush1.msra.mxu0 0.0
      %3340 = vmatprep.subr.mxu0 0.0
      %3341 = vmatpush1.msra.mxu0 0.0
      %3342 = vmatprep.subr.mxu0 0.0
      %3343 = vmatpush1.msra.mxu0 0.0
      %3344 = vmatprep.subr.mxu0 0.0
      %3345 = vmatpush1.msra.mxu0 0.0
      %3346 = vmatprep.subr.mxu0 0.0
      %3347 = vmatpush1.msra.mxu0 0.0
      %3348 = vmatprep.subr.mxu0 0.0
      %3349 = vmatpush1.msra.mxu0 0.0
      %3350 = vmatprep.subr.mxu0 0.0
      %3351 = vmatpush1.msra.mxu0 0.0
      %3352 = vmatprep.subr.mxu0 0.0
      %3353 = vmatpush1.msra.mxu0 0.0
      %3354 = vmatprep.subr.mxu0 0.0
      %3355 = vmatpush1.msra.mxu0 0.0
      %3356 = vmatprep.subr.mxu0 0.0
      %3357 = vmatpush1.msra.mxu0 0.0
      %3358 = vmatprep.subr.mxu0 0.0
      %3359 = vmatpush1.msra.mxu0 0.0
      %3360 = vmatprep.subr.mxu0 0.0
      %3361 = vmatpush1.msra.mxu0 0.0
      %3362 = vmatprep.subr.mxu0 0.0
      %3363 = vmatpush1.msra.mxu0 0.0
      %3364 = vmatprep.subr.mxu0 0.0
      %3365 = vmatpush1.msra.mxu0 0.0
      %3366 = vmatprep.subr.mxu0 0.0
      %3367 = vmatpush1.msra.mxu0 0.0
      %3368 = vmatprep.subr.mxu0 0.0
      %3369 = vmatpush1.msra.mxu0 0.0
      %3370 = vmatprep.subr.mxu0 0.0
      %3371 = vmatpush1.msra.mxu0 0.0
      %3372 = vmatprep.subr.mxu0 0.0
      %3373 = vmatpush1.msra.mxu0 0.0
      %3374 = vmatprep.subr.mxu0 0.0
      %3375 = vmatpush1.msra.mxu0 0.0
      %3376 = vmatprep.subr.mxu0 0.0
      %3377 = vmatpush1.msra.mxu0 0.0
      %3378 = vmatprep.subr.mxu0 0.0
      %3379 = vmatpush1.msra.mxu0 0.0
      %3380 = vmatprep.subr.mxu0 0.0
      %3381 = vmatpush1.msra.mxu0 0.0
      %3382 = vmatprep.subr.mxu0 0.0
      %3383 = vmatpush1.msra.mxu0 0.0
      %3384 = vmatprep.subr.mxu0 0.0
      %3385 = vmatpush1.msra.mxu0 0.0
      %3386 = vmatprep.subr.mxu0 0.0
      %3387 = vmatpush1.msra.mxu0 0.0
      %3388 = vmatprep.subr.mxu0 0.0
      %3389 = vmatpush1.msra.mxu0 0.0
      %3390 = vmatprep.subr.mxu0 0.0
      %3391 = vmatpush1.msra.mxu0 0.0
      %3392 = vmatprep.mubr.f32.mxu0 0.0
      %3393 = vmatmul.mubr.f32.gmra.mrb[0].mxu0 %v3230
      %v3394 = vpop.f32.mrb[0].mxu0
      %v3395 = vadd.f32 0.0, %v3394
      %v3396 = vpop.f32.mrb[0].mxu0
      %3397 = vmatprep.mubr.f32.mxu0 0.0
      %3398 = vmatmul.mubr.f32.gmra.mrb[0].mxu0 %v3233
      %v3399 = vpop.f32.mrb[0].mxu0
      %v3400 = vadd.f32 0.0, %v3399
      %v3401 = vpop.f32.mrb[0].mxu0
      %3402 = vmatprep.mubr.f32.mxu0 0.0
      %3403 = vmatmul.mubr.f32.gmra.mrb[0].mxu0 %v3236
      %v3404 = vpop.f32.mrb[0].mxu0
      %v3405 = vadd.f32 0.0, %v3404
      %v3406 = vpop.f32.mrb[0].mxu0
      %3407 = vmatprep.mubr.f32.mxu0 0.0
      %3408 = vmatmul.mubr.f32.gmra.mrb[0].mxu0 %v3239
      %v3409 = vpop.f32.mrb[0].mxu0
      %v3410 = vadd.f32 0.0, %v3409
      %v3411 = vpop.f32.mrb[0].mxu0
      %3412 = vmatprep.mubr.f32.mxu0 0.0
      %3413 = vmatmul.mubr.f32.gmra.mrb[0].mxu0 %v3242
      %v3414 = vpop.f32.mrb[0].mxu0
      %v3415 = vadd.f32 0.0, %v3414
      %v3416 = vpop.f32.mrb[0].mxu0
      %3417 = vmatprep.mubr.f32.mxu0 0.0
      %3418 = vmatmul.mubr.f32.gmra.mrb[0].mxu0 %v3245
      %v3419 = vpop.f32.mrb[0].mxu0
      %v3420 = vadd.f32 0.0, %v3419
      %v3421 = vpop.f32.mrb[0].mxu0
      %3422 = vmatprep.mubr.f32.mxu0 0.0
      %3423 = vmatmul.mubr.f32.gmra.mrb[0].mxu0 %v3248
      %v3424 = vpop.f32.mrb[0].mxu0
      %v3425 = vadd.f32 0.0, %v3424
      %v3426 = vpop.f32.mrb[0].mxu0
      %3427 = vmatprep.mubr.f32.mxu0 0.0
      %3428 = vmatmul.mubr.f32.gmra.mrb[0].mxu0 %v3251
      %v3429 = vpop.f32.mrb[0].mxu0
      %v3430 = vadd.f32 0.0, %v3429
      %v3431 = vpop.f32.mrb[0].mxu0
      %3432 = vmatprep.mubr.f32.mxu0 0.0
      %3433 = vmatmul.mubr.f32.gmra.mrb[0].mxu0 %v3254
      %v3434 = vpop.f32.mrb[0].mxu0
      %v3435 = vadd.f32 0.0, %v3434
      %v3436 = vpop.f32.mrb[0].mxu0
      %3437 = vmatprep.mubr.f32.mxu0 0.0
      %3438 = vmatmul.mubr.f32.gmra.mrb[0].mxu0 %v3257
      %v3439 = vpop.f32.mrb[0].mxu0
      %v3440 = vadd.f32 0.0, %v3439
      %v3441 = vpop.f32.mrb[0].mxu0
      %3442 = vmatprep.mubr.f32.mxu0 0.0
      %3443 = vmatmul.mubr.f32.gmra.mrb[0].mxu0 %v3260
      %v3444 = vpop.f32.mrb[0].mxu0
      %v3445 = vadd.f32 0.0, %v3444
      %v3446 = vpop.f32.mrb[0].mxu0
      %3447 = vmatprep.mubr.f32.mxu0 0.0
      %3448 = vmatmul.mubr.f32.gmra.mrb[0].mxu0 %v3263
      %v3449 = vpop.f32.mrb[0].mxu0
      %v3450 = vadd.f32 0.0, %v3449
      %v3451 = vpop.f32.mrb[0].mxu0
      %3452 = vmatprep.mubr.f32.mxu0 0.0
      %3453 = vmatmul.mubr.f32.gmra.mrb[0].mxu0 %v3266
      %v3454 = vpop.f32.mrb[0].mxu0
      %v3455 = vadd.f32 0.0, %v3454
      %v3456 = vpop.f32.mrb[0].mxu0
      %3457 = vmatprep.mubr.f32.mxu0 0.0
      %3458 = vmatmul.mubr.f32.gmra.mrb[0].mxu0 %v3269
      %v3459 = vpop.f32.mrb[0].mxu0
      %v3460 = vadd.f32 0.0, %v3459
      %v3461 = vpop.f32.mrb[0].mxu0
      %3462 = vmatprep.mubr.f32.mxu0 0.0
      %3463 = vmatmul.mubr.f32.gmra.mrb[0].mxu0 %v3272
      %v3464 = vpop.f32.mrb[0].mxu0
      %v3465 = vadd.f32 0.0, %v3464
      %v3466 = vpop.f32.mrb[0].mxu0
      %3467 = vmatprep.mubr.f32.mxu0 0.0
      %3468 = vmatmul.mubr.f32.gmra.mrb[0].mxu0 %v3275
      %v3469 = vpop.f32.mrb[0].mxu0
      %v3470 = vadd.f32 0.0, %v3469
      %v3471 = vpop.f32.mrb[0].mxu0
      %3472 = vmatprep.mubr.f32.mxu0 0.0
      %3473 = vmatmul.mubr.f32.gmra.mrb[0].mxu0 %v3278
      %v3474 = vpop.f32.mrb[0].mxu0
      %v3475 = vadd.f32 0.0, %v3474
      %v3476 = vpop.f32.mrb[0].mxu0
      %3477 = vmatprep.mubr.f32.mxu0 0.0
      %3478 = vmatmul.mubr.f32.gmra.mrb[0].mxu0 %v3281
      %v3479 = vpop.f32.mrb[0].mxu0
      %v3480 = vadd.f32 0.0, %v3479
      %v3481 = vpop.f32.mrb[0].mxu0
      %3482 = vmatprep.mubr.f32.mxu0 0.0
      %3483 = vmatmul.mubr.f32.gmra.mrb[0].mxu0 %v3284
      %v3484 = vpop.f32.mrb[0].mxu0
      %v3485 = vadd.f32 0.0, %v3484
      %v3486 = vpop.f32.mrb[0].mxu0
      %3487 = vmatprep.mubr.f32.mxu0 0.0
      %3488 = vmatmul.mubr.f32.gmra.mrb[0].mxu0 %v3287
      %v3489 = vpop.f32.mrb[0].mxu0
      %v3490 = vadd.f32 0.0, %v3489
      %v3491 = vpop.f32.mrb[0].mxu0
      %3492 = vmatprep.mubr.f32.mxu0 0.0
      %3493 = vmatmul.mubr.f32.gmra.mrb[0].mxu0 %v3290
      %v3494 = vpop.f32.mrb[0].mxu0
      %v3495 = vadd.f32 0.0, %v3494
      %v3496 = vpop.f32.mrb[0].mxu0
      %3497 = vmatprep.mubr.f32.mxu0 0.0
      %3498 = vmatmul.mubr.f32.gmra.mrb[0].mxu0 %v3293
      %v3499 = vpop.f32.mrb[0].mxu0
      %v3500 = vadd.f32 0.0, %v3499
      %v3501 = vpop.f32.mrb[0].mxu0
      %3502 = vmatprep.mubr.f32.mxu0 0.0
      %3503 = vmatmul.mubr.f32.gmra.mrb[0].mxu0 %v3296
      %v3504 = vpop.f32.mrb[0].mxu0
      %v3505 = vadd.f32 0.0, %v3504
      %v3506 = vpop.f32.mrb[0].mxu0
      %3507 = vmatprep.mubr.f32.mxu0 0.0
      %3508 = vmatmul.mubr.f32.gmra.mrb[0].mxu0 %v3299
      %v3509 = vpop.f32.mrb[0].mxu0
      %v3510 = vadd.f32 0.0, %v3509
      %v3511 = vpop.f32.mrb[0].mxu0
      %3512 = vmatprep.mubr.f32.mxu0 0.0
      %3513 = vmatmul.mubr.f32.gmra.mrb[0].mxu0 %v3302
      %v3514 = vpop.f32.mrb[0].mxu0
      %v3515 = vadd.f32 0.0, %v3514
      %v3516 = vpop.f32.mrb[0].mxu0
      %3517 = vmatprep.mubr.f32.mxu0 0.0
      %3518 = vmatmul.mubr.f32.gmra.mrb[0].mxu0 %v3305
      %v3519 = vpop.f32.mrb[0].mxu0
      %v3520 = vadd.f32 0.0, %v3519
      %v3521 = vpop.f32.mrb[0].mxu0
      %3522 = vmatprep.mubr.f32.mxu0 0.0
      %3523 = vmatmul.mubr.f32.gmra.mrb[0].mxu0 %v3308
      %v3524 = vpop.f32.mrb[0].mxu0
      %v3525 = vadd.f32 0.0, %v3524
      %v3526 = vpop.f32.mrb[0].mxu0
      %3527 = vmatprep.mubr.f32.mxu0 0.0
      %3528 = vmatmul.mubr.f32.gmra.mrb[0].mxu0 %v3311
      %v3529 = vpop.f32.mrb[0].mxu0
      %v3530 = vadd.f32 0.0, %v3529
      %v3531 = vpop.f32.mrb[0].mxu0
      %3532 = vmatprep.mubr.f32.mxu0 0.0
      %3533 = vmatmul.mubr.f32.gmra.mrb[0].mxu0 %v3314
      %v3534 = vpop.f32.mrb[0].mxu0
      %v3535 = vadd.f32 0.0, %v3534
      %v3536 = vpop.f32.mrb[0].mxu0
      %3537 = vmatprep.mubr.f32.mxu0 0.0
      %3538 = vmatmul.mubr.f32.gmra.mrb[0].mxu0 %v3317
      %v3539 = vpop.f32.mrb[0].mxu0
      %v3540 = vadd.f32 0.0, %v3539
      %v3541 = vpop.f32.mrb[0].mxu0
      %3542 = vmatprep.mubr.f32.mxu0 0.0
      %3543 = vmatmul.mubr.f32.gmra.mrb[0].mxu0 %v3320
      %v3544 = vpop.f32.mrb[0].mxu0
      %v3545 = vadd.f32 0.0, %v3544
      %v3546 = vpop.f32.mrb[0].mxu0
      %3547 = vmatprep.mubr.f32.mxu0 0.0
      %3548 = vmatmul.mubr.f32.gmra.mrb[0].mxu0 %v3323
      %v3549 = vpop.f32.mrb[0].mxu0
      %v3550 = vadd.f32 0.0, %v3549
      %v3551 = vpop.f32.mrb[0].mxu0
      %3552 = vdwg.mxu0
      %v3553 = vadd.f32 %v2237, %v3395
      %v3554 = vadd.f32 %v2242, %v3400
      %v3555 = vadd.f32 %v2247, %v3405
      %v3556 = vadd.f32 %v2252, %v3410
      %v3557 = vadd.f32 %v2257, %v3415
      %v3558 = vadd.f32 %v2262, %v3420
      %v3559 = vadd.f32 %v2267, %v3425
      %v3560 = vadd.f32 %v2272, %v3430
      %v3561 = vadd.f32 %v2277, %v3435
      %v3562 = vadd.f32 %v2282, %v3440
      %v3563 = vadd.f32 %v2287, %v3445
      %v3564 = vadd.f32 %v2292, %v3450
      %v3565 = vadd.f32 %v2297, %v3455
      %v3566 = vadd.f32 %v2302, %v3460
      %v3567 = vadd.f32 %v2307, %v3465
      %v3568 = vadd.f32 %v2312, %v3470
      %v3569 = vadd.f32 %v2317, %v3475
      %v3570 = vadd.f32 %v2322, %v3480
      %v3571 = vadd.f32 %v2327, %v3485
      %v3572 = vadd.f32 %v2332, %v3490
      %v3573 = vadd.f32 %v2337, %v3495
      %v3574 = vadd.f32 %v2342, %v3500
      %v3575 = vadd.f32 %v2347, %v3505
      %v3576 = vadd.f32 %v2352, %v3510
      %v3577 = vadd.f32 %v2357, %v3515
      %v3578 = vadd.f32 %v2362, %v3520
      %v3579 = vadd.f32 %v2367, %v3525
      %v3580 = vadd.f32 %v2372, %v3530
      %v3581 = vadd.f32 %v2377, %v3535
      %v3582 = vadd.f32 %v2382, %v3540
      %v3583 = vadd.f32 %v2387, %v3545
      %v3584 = vadd.f32 %v2392, %v3550
      %3585 = vst.msk [vmem:[%s892] sm:$0xff] %vm802, %v3195
      %3586 = vst.msk [vmem:[%s892 + $0x8] sm:$0xff] %vm802, %v3196
      %3587 = vst.msk [vmem:[%s892 + $0x10] sm:$0xff] %vm802, %v3197
      %3588 = vst.msk [vmem:[%s892 + $0x18] sm:$0xff] %vm802, %v3198
      %3589 = vst.msk [vmem:[%s892 + $0x20] sm:$0xff] %vm802, %v3199
      %3590 = vst.msk [vmem:[%s892 + $0x28] sm:$0xff] %vm802, %v3200
      %3591 = vst.msk [vmem:[%s892 + $0x30] sm:$0xff] %vm802, %v3201
      %3592 = vst.msk [vmem:[%s892 + $0x38] sm:$0xff] %vm802, %v3202
      %3593 = vst.msk [vmem:[%s892 + $0x40] sm:$0xff] %vm802, %v3203
      %3594 = vst.msk [vmem:[%s892 + $0x48] sm:$0xff] %vm802, %v3204
      %3595 = vst.msk [vmem:[%s892 + $0x50] sm:$0xff] %vm802, %v3205
      %3596 = vst.msk [vmem:[%s892 + $0x58] sm:$0xff] %vm802, %v3206
      %3597 = vst.msk [vmem:[%s892 + $0x60] sm:$0xff] %vm802, %v3207
      %3598 = vst.msk [vmem:[%s892 + $0x68] sm:$0xff] %vm802, %v3208
      %3599 = vst.msk [vmem:[%s892 + $0x70] sm:$0xff] %vm802, %v3209
      %3600 = vst.msk [vmem:[%s892 + $0x78] sm:$0xff] %vm802, %v3210
      %3601 = vst.msk [vmem:[%s892 + $0x80] sm:$0xff] %vm802, %v3211
      %3602 = vst.msk [vmem:[%s892 + $0x88] sm:$0xff] %vm802, %v3212
      %3603 = vst.msk [vmem:[%s892 + $0x90] sm:$0xff] %vm802, %v3213
      %3604 = vst.msk [vmem:[%s892 + $0x98] sm:$0xff] %vm802, %v3214
      %3605 = vst.msk [vmem:[%s892 + $0xa0] sm:$0xff] %vm802, %v3215
      %3606 = vst.msk [vmem:[%s892 + $0xa8] sm:$0xff] %vm802, %v3216
      %3607 = vst.msk [vmem:[%s892 + $0xb0] sm:$0xff] %vm802, %v3217
      %3608 = vst.msk [vmem:[%s892 + $0xb8] sm:$0xff] %vm802, %v3218
      %3609 = vst.msk [vmem:[%s892 + $0xc0] sm:$0xff] %vm802, %v3219
      %3610 = vst.msk [vmem:[%s892 + $0xc8] sm:$0xff] %vm802, %v3220
      %3611 = vst.msk [vmem:[%s892 + $0xd0] sm:$0xff] %vm802, %v3221
      %3612 = vst.msk [vmem:[%s892 + $0xd8] sm:$0xff] %vm802, %v3222
      %3613 = vst.msk [vmem:[%s892 + $0xe0] sm:$0xff] %vm802, %v3223
      %3614 = vst.msk [vmem:[%s892 + $0xe8] sm:$0xff] %vm802, %v3224
      %3615 = vst.msk [vmem:[%s892 + $0xf0] sm:$0xff] %vm802, %v3225
      %3616 = vst.msk [vmem:[%s892 + $0xf8] sm:$0xff] %vm802, %v3226
      %v3617 = vld [vmem:[#allocation2] sm:$0xff]
      %v3618 = vld [vmem:[#allocation2 + $0x8] sm:$0xff]
      %v3619 = vld [vmem:[#allocation2 + $0x10] sm:$0xff]
      %v3620 = vld [vmem:[#allocation2 + $0x18] sm:$0xff]
      %v3621 = vld [vmem:[#allocation2 + $0x20] sm:$0xff]
      %v3622 = vld [vmem:[#allocation2 + $0x28] sm:$0xff]
      %v3623 = vld [vmem:[#allocation2 + $0x30] sm:$0xff]
      %v3624 = vld [vmem:[#allocation2 + $0x38] sm:$0xff]
      %v3625 = vld [vmem:[#allocation2 + $0x40] sm:$0xff]
      %v3626 = vld [vmem:[#allocation2 + $0x48] sm:$0xff]
      %v3627 = vld [vmem:[#allocation2 + $0x50] sm:$0xff]
      %v3628 = vld [vmem:[#allocation2 + $0x58] sm:$0xff]
      %v3629 = vld [vmem:[#allocation2 + $0x60] sm:$0xff]
      %v3630 = vld [vmem:[#allocation2 + $0x68] sm:$0xff]
      %v3631 = vld [vmem:[#allocation2 + $0x70] sm:$0xff]
      %v3632 = vld [vmem:[#allocation2 + $0x78] sm:$0xff]
      %v3633 = vld [vmem:[#allocation2 + $0x80] sm:$0xff]
      %v3634 = vld [vmem:[#allocation2 + $0x88] sm:$0xff]
      %v3635 = vld [vmem:[#allocation2 + $0x90] sm:$0xff]
      %v3636 = vld [vmem:[#allocation2 + $0x98] sm:$0xff]
      %v3637 = vld [vmem:[#allocation2 + $0xa0] sm:$0xff]
      %v3638 = vld [vmem:[#allocation2 + $0xa8] sm:$0xff]
      %v3639 = vld [vmem:[#allocation2 + $0xb0] sm:$0xff]
      %v3640 = vld [vmem:[#allocation2 + $0xb8] sm:$0xff]
      %v3641 = vld [vmem:[#allocation2 + $0xc0] sm:$0xff]
      %v3642 = vld [vmem:[#allocation2 + $0xc8] sm:$0xff]
      %v3643 = vld [vmem:[#allocation2 + $0xd0] sm:$0xff]
      %v3644 = vld [vmem:[#allocation2 + $0xd8] sm:$0xff]
      %v3645 = vld [vmem:[#allocation2 + $0xe0] sm:$0xff]
      %v3646 = vld [vmem:[#allocation2 + $0xe8] sm:$0xff]
      %v3647 = vld [vmem:[#allocation2 + $0xf0] sm:$0xff]
      %v3648 = vld [vmem:[#allocation2 + $0xf8] sm:$0xff]
      %v3649 = vld [vmem:[%s957] sm:$0xff]
      %v3650 = vld [vmem:[%s957 + $0x8] sm:$0xff]
      %v3651 = vld [vmem:[%s957 + $0x10] sm:$0xff]
      %v3652 = vld [vmem:[%s957 + $0x18] sm:$0xff]
      %v3653 = vld [vmem:[%s957 + $0x20] sm:$0xff]
      %v3654 = vld [vmem:[%s957 + $0x28] sm:$0xff]
      %v3655 = vld [vmem:[%s957 + $0x30] sm:$0xff]
      %v3656 = vld [vmem:[%s957 + $0x38] sm:$0xff]
      %v3657 = vld [vmem:[%s957 + $0x40] sm:$0xff]
      %v3658 = vld [vmem:[%s957 + $0x48] sm:$0xff]
      %v3659 = vld [vmem:[%s957 + $0x50] sm:$0xff]
      %v3660 = vld [vmem:[%s957 + $0x58] sm:$0xff]
      %v3661 = vld [vmem:[%s957 + $0x60] sm:$0xff]
      %v3662 = vld [vmem:[%s957 + $0x68] sm:$0xff]
      %v3663 = vld [vmem:[%s957 + $0x70] sm:$0xff]
      %v3664 = vld [vmem:[%s957 + $0x78] sm:$0xff]
      %v3665 = vld [vmem:[%s957 + $0x80] sm:$0xff]
      %v3666 = vld [vmem:[%s957 + $0x88] sm:$0xff]
      %v3667 = vld [vmem:[%s957 + $0x90] sm:$0xff]
      %v3668 = vld [vmem:[%s957 + $0x98] sm:$0xff]
      %v3669 = vld [vmem:[%s957 + $0xa0] sm:$0xff]
      %v3670 = vld [vmem:[%s957 + $0xa8] sm:$0xff]
      %v3671 = vld [vmem:[%s957 + $0xb0] sm:$0xff]
      %v3672 = vld [vmem:[%s957 + $0xb8] sm:$0xff]
      %v3673 = vld [vmem:[%s957 + $0xc0] sm:$0xff]
      %v3674 = vld [vmem:[%s957 + $0xc8] sm:$0xff]
      %v3675 = vld [vmem:[%s957 + $0xd0] sm:$0xff]
      %v3676 = vld [vmem:[%s957 + $0xd8] sm:$0xff]
      %v3677 = vld [vmem:[%s957 + $0xe0] sm:$0xff]
      %v3678 = vld [vmem:[%s957 + $0xe8] sm:$0xff]
      %v3679 = vld [vmem:[%s957 + $0xf0] sm:$0xff]
      %v3680 = vld [vmem:[%s957 + $0xf8] sm:$0xff]
      %v3681 = vmax.f32 %v3617, %v3649
      %v3682 = vmax.f32 %v3618, %v3650
      %v3683 = vmax.f32 %v3619, %v3651
      %v3684 = vmax.f32 %v3620, %v3652
      %v3685 = vmax.f32 %v3621, %v3653
      %v3686 = vmax.f32 %v3622, %v3654
      %v3687 = vmax.f32 %v3623, %v3655
      %v3688 = vmax.f32 %v3624, %v3656
      %v3689 = vmax.f32 %v3625, %v3657
      %v3690 = vmax.f32 %v3626, %v3658
      %v3691 = vmax.f32 %v3627, %v3659
      %v3692 = vmax.f32 %v3628, %v3660
      %v3693 = vmax.f32 %v3629, %v3661
      %v3694 = vmax.f32 %v3630, %v3662
      %v3695 = vmax.f32 %v3631, %v3663
      %v3696 = vmax.f32 %v3632, %v3664
      %v3697 = vmax.f32 %v3633, %v3665
      %v3698 = vmax.f32 %v3634, %v3666
      %v3699 = vmax.f32 %v3635, %v3667
      %v3700 = vmax.f32 %v3636, %v3668
      %v3701 = vmax.f32 %v3637, %v3669
      %v3702 = vmax.f32 %v3638, %v3670
      %v3703 = vmax.f32 %v3639, %v3671
      %v3704 = vmax.f32 %v3640, %v3672
      %v3705 = vmax.f32 %v3641, %v3673
      %v3706 = vmax.f32 %v3642, %v3674
      %v3707 = vmax.f32 %v3643, %v3675
      %v3708 = vmax.f32 %v3644, %v3676
      %v3709 = vmax.f32 %v3645, %v3677
      %v3710 = vmax.f32 %v3646, %v3678
      %v3711 = vmax.f32 %v3647, %v3679
      %v3712 = vmax.f32 %v3648, %v3680
      %v3713 = vld [vmem:[%s892] sm:$0xff]
      %v3714 = vld [vmem:[%s892 + $0x8] sm:$0xff]
      %v3715 = vld [vmem:[%s892 + $0x10] sm:$0xff]
      %v3716 = vld [vmem:[%s892 + $0x18] sm:$0xff]
      %v3717 = vld [vmem:[%s892 + $0x20] sm:$0xff]
      %v3718 = vld [vmem:[%s892 + $0x28] sm:$0xff]
      %v3719 = vld [vmem:[%s892 + $0x30] sm:$0xff]
      %v3720 = vld [vmem:[%s892 + $0x38] sm:$0xff]
      %v3721 = vld [vmem:[%s892 + $0x40] sm:$0xff]
      %v3722 = vld [vmem:[%s892 + $0x48] sm:$0xff]
      %v3723 = vld [vmem:[%s892 + $0x50] sm:$0xff]
      %v3724 = vld [vmem:[%s892 + $0x58] sm:$0xff]
      %v3725 = vld [vmem:[%s892 + $0x60] sm:$0xff]
      %v3726 = vld [vmem:[%s892 + $0x68] sm:$0xff]
      %v3727 = vld [vmem:[%s892 + $0x70] sm:$0xff]
      %v3728 = vld [vmem:[%s892 + $0x78] sm:$0xff]
      %v3729 = vld [vmem:[%s892 + $0x80] sm:$0xff]
      %v3730 = vld [vmem:[%s892 + $0x88] sm:$0xff]
      %v3731 = vld [vmem:[%s892 + $0x90] sm:$0xff]
      %v3732 = vld [vmem:[%s892 + $0x98] sm:$0xff]
      %v3733 = vld [vmem:[%s892 + $0xa0] sm:$0xff]
      %v3734 = vld [vmem:[%s892 + $0xa8] sm:$0xff]
      %v3735 = vld [vmem:[%s892 + $0xb0] sm:$0xff]
      %v3736 = vld [vmem:[%s892 + $0xb8] sm:$0xff]
      %v3737 = vld [vmem:[%s892 + $0xc0] sm:$0xff]
      %v3738 = vld [vmem:[%s892 + $0xc8] sm:$0xff]
      %v3739 = vld [vmem:[%s892 + $0xd0] sm:$0xff]
      %v3740 = vld [vmem:[%s892 + $0xd8] sm:$0xff]
      %v3741 = vld [vmem:[%s892 + $0xe0] sm:$0xff]
      %v3742 = vld [vmem:[%s892 + $0xe8] sm:$0xff]
      %v3743 = vld [vmem:[%s892 + $0xf0] sm:$0xff]
      %v3744 = vld [vmem:[%s892 + $0xf8] sm:$0xff]
      %v3745 = vmax.f32 %v3681, %v3713
      %v3746 = vmax.f32 %v3682, %v3714
      %v3747 = vmax.f32 %v3683, %v3715
      %v3748 = vmax.f32 %v3684, %v3716
      %v3749 = vmax.f32 %v3685, %v3717
      %v3750 = vmax.f32 %v3686, %v3718
      %v3751 = vmax.f32 %v3687, %v3719
      %v3752 = vmax.f32 %v3688, %v3720
      %v3753 = vmax.f32 %v3689, %v3721
      %v3754 = vmax.f32 %v3690, %v3722
      %v3755 = vmax.f32 %v3691, %v3723
      %v3756 = vmax.f32 %v3692, %v3724
      %v3757 = vmax.f32 %v3693, %v3725
      %v3758 = vmax.f32 %v3694, %v3726
      %v3759 = vmax.f32 %v3695, %v3727
      %v3760 = vmax.f32 %v3696, %v3728
      %v3761 = vmax.f32 %v3697, %v3729
      %v3762 = vmax.f32 %v3698, %v3730
      %v3763 = vmax.f32 %v3699, %v3731
      %v3764 = vmax.f32 %v3700, %v3732
      %v3765 = vmax.f32 %v3701, %v3733
      %v3766 = vmax.f32 %v3702, %v3734
      %v3767 = vmax.f32 %v3703, %v3735
      %v3768 = vmax.f32 %v3704, %v3736
      %v3769 = vmax.f32 %v3705, %v3737
      %v3770 = vmax.f32 %v3706, %v3738
      %v3771 = vmax.f32 %v3707, %v3739
      %v3772 = vmax.f32 %v3708, %v3740
      %v3773 = vmax.f32 %v3709, %v3741
      %v3774 = vmax.f32 %v3710, %v3742
      %v3775 = vmax.f32 %v3711, %v3743
      %v3776 = vmax.f32 %v3712, %v3744
      %v3777 = vld [vmem:[%s1086] sm:$0xff]
      %v3778 = vld [vmem:[%s1086 + $0x8] sm:$0xff]
      %v3779 = vld [vmem:[%s1086 + $0x10] sm:$0xff]
      %v3780 = vld [vmem:[%s1086 + $0x18] sm:$0xff]
      %v3781 = vld [vmem:[%s1086 + $0x20] sm:$0xff]
      %v3782 = vld [vmem:[%s1086 + $0x28] sm:$0xff]
      %v3783 = vld [vmem:[%s1086 + $0x30] sm:$0xff]
      %v3784 = vld [vmem:[%s1086 + $0x38] sm:$0xff]
      %v3785 = vld [vmem:[%s1086 + $0x40] sm:$0xff]
      %v3786 = vld [vmem:[%s1086 + $0x48] sm:$0xff]
      %v3787 = vld [vmem:[%s1086 + $0x50] sm:$0xff]
      %v3788 = vld [vmem:[%s1086 + $0x58] sm:$0xff]
      %v3789 = vld [vmem:[%s1086 + $0x60] sm:$0xff]
      %v3790 = vld [vmem:[%s1086 + $0x68] sm:$0xff]
      %v3791 = vld [vmem:[%s1086 + $0x70] sm:$0xff]
      %v3792 = vld [vmem:[%s1086 + $0x78] sm:$0xff]
      %v3793 = vld [vmem:[%s1086 + $0x80] sm:$0xff]
      %v3794 = vld [vmem:[%s1086 + $0x88] sm:$0xff]
      %v3795 = vld [vmem:[%s1086 + $0x90] sm:$0xff]
      %v3796 = vld [vmem:[%s1086 + $0x98] sm:$0xff]
      %v3797 = vld [vmem:[%s1086 + $0xa0] sm:$0xff]
      %v3798 = vld [vmem:[%s1086 + $0xa8] sm:$0xff]
      %v3799 = vld [vmem:[%s1086 + $0xb0] sm:$0xff]
      %v3800 = vld [vmem:[%s1086 + $0xb8] sm:$0xff]
      %v3801 = vld [vmem:[%s1086 + $0xc0] sm:$0xff]
      %v3802 = vld [vmem:[%s1086 + $0xc8] sm:$0xff]
      %v3803 = vld [vmem:[%s1086 + $0xd0] sm:$0xff]
      %v3804 = vld [vmem:[%s1086 + $0xd8] sm:$0xff]
      %v3805 = vld [vmem:[%s1086 + $0xe0] sm:$0xff]
      %v3806 = vld [vmem:[%s1086 + $0xe8] sm:$0xff]
      %v3807 = vld [vmem:[%s1086 + $0xf0] sm:$0xff]
      %v3808 = vld [vmem:[%s1086 + $0xf8] sm:$0xff]
      %v3809 = vmax.f32 %v3745, %v3777
      %v3810 = vmax.f32 %v3746, %v3778
      %v3811 = vmax.f32 %v3747, %v3779
      %v3812 = vmax.f32 %v3748, %v3780
      %v3813 = vmax.f32 %v3749, %v3781
      %v3814 = vmax.f32 %v3750, %v3782
      %v3815 = vmax.f32 %v3751, %v3783
      %v3816 = vmax.f32 %v3752, %v3784
      %v3817 = vmax.f32 %v3753, %v3785
      %v3818 = vmax.f32 %v3754, %v3786
      %v3819 = vmax.f32 %v3755, %v3787
      %v3820 = vmax.f32 %v3756, %v3788
      %v3821 = vmax.f32 %v3757, %v3789
      %v3822 = vmax.f32 %v3758, %v3790
      %v3823 = vmax.f32 %v3759, %v3791
      %v3824 = vmax.f32 %v3760, %v3792
      %v3825 = vmax.f32 %v3761, %v3793
      %v3826 = vmax.f32 %v3762, %v3794
      %v3827 = vmax.f32 %v3763, %v3795
      %v3828 = vmax.f32 %v3764, %v3796
      %v3829 = vmax.f32 %v3765, %v3797
      %v3830 = vmax.f32 %v3766, %v3798
      %v3831 = vmax.f32 %v3767, %v3799
      %v3832 = vmax.f32 %v3768, %v3800
      %v3833 = vmax.f32 %v3769, %v3801
      %v3834 = vmax.f32 %v3770, %v3802
      %v3835 = vmax.f32 %v3771, %v3803
      %v3836 = vmax.f32 %v3772, %v3804
      %v3837 = vmax.f32 %v3773, %v3805
      %v3838 = vmax.f32 %v3774, %v3806
      %v3839 = vmax.f32 %v3775, %v3807
      %v3840 = vmax.f32 %v3776, %v3808
      %v3841 = vld [vmem:[%s1151] sm:$0xff]
      %v3842 = vld [vmem:[%s1151 + $0x8] sm:$0xff]
      %v3843 = vld [vmem:[%s1151 + $0x10] sm:$0xff]
      %v3844 = vld [vmem:[%s1151 + $0x18] sm:$0xff]
      %v3845 = vld [vmem:[%s1151 + $0x20] sm:$0xff]
      %v3846 = vld [vmem:[%s1151 + $0x28] sm:$0xff]
      %v3847 = vld [vmem:[%s1151 + $0x30] sm:$0xff]
      %v3848 = vld [vmem:[%s1151 + $0x38] sm:$0xff]
      %v3849 = vld [vmem:[%s1151 + $0x40] sm:$0xff]
      %v3850 = vld [vmem:[%s1151 + $0x48] sm:$0xff]
      %v3851 = vld [vmem:[%s1151 + $0x50] sm:$0xff]
      %v3852 = vld [vmem:[%s1151 + $0x58] sm:$0xff]
      %v3853 = vld [vmem:[%s1151 + $0x60] sm:$0xff]
      %v3854 = vld [vmem:[%s1151 + $0x68] sm:$0xff]
      %v3855 = vld [vmem:[%s1151 + $0x70] sm:$0xff]
      %v3856 = vld [vmem:[%s1151 + $0x78] sm:$0xff]
      %v3857 = vld [vmem:[%s1151 + $0x80] sm:$0xff]
      %v3858 = vld [vmem:[%s1151 + $0x88] sm:$0xff]
      %v3859 = vld [vmem:[%s1151 + $0x90] sm:$0xff]
      %v3860 = vld [vmem:[%s1151 + $0x98] sm:$0xff]
      %v3861 = vld [vmem:[%s1151 + $0xa0] sm:$0xff]
      %v3862 = vld [vmem:[%s1151 + $0xa8] sm:$0xff]
      %v3863 = vld [vmem:[%s1151 + $0xb0] sm:$0xff]
      %v3864 = vld [vmem:[%s1151 + $0xb8] sm:$0xff]
      %v3865 = vld [vmem:[%s1151 + $0xc0] sm:$0xff]
      %v3866 = vld [vmem:[%s1151 + $0xc8] sm:$0xff]
      %v3867 = vld [vmem:[%s1151 + $0xd0] sm:$0xff]
      %v3868 = vld [vmem:[%s1151 + $0xd8] sm:$0xff]
      %v3869 = vld [vmem:[%s1151 + $0xe0] sm:$0xff]
      %v3870 = vld [vmem:[%s1151 + $0xe8] sm:$0xff]
      %v3871 = vld [vmem:[%s1151 + $0xf0] sm:$0xff]
      %v3872 = vld [vmem:[%s1151 + $0xf8] sm:$0xff]
      %v3873 = vmax.f32 %v3809, %v3841
      %v3874 = vmax.f32 %v3810, %v3842
      %v3875 = vmax.f32 %v3811, %v3843
      %v3876 = vmax.f32 %v3812, %v3844
      %v3877 = vmax.f32 %v3813, %v3845
      %v3878 = vmax.f32 %v3814, %v3846
      %v3879 = vmax.f32 %v3815, %v3847
      %v3880 = vmax.f32 %v3816, %v3848
      %v3881 = vmax.f32 %v3817, %v3849
      %v3882 = vmax.f32 %v3818, %v3850
      %v3883 = vmax.f32 %v3819, %v3851
      %v3884 = vmax.f32 %v3820, %v3852
      %v3885 = vmax.f32 %v3821, %v3853
      %v3886 = vmax.f32 %v3822, %v3854
      %v3887 = vmax.f32 %v3823, %v3855
      %v3888 = vmax.f32 %v3824, %v3856
      %v3889 = vmax.f32 %v3825, %v3857
      %v3890 = vmax.f32 %v3826, %v3858
      %v3891 = vmax.f32 %v3827, %v3859
      %v3892 = vmax.f32 %v3828, %v3860
      %v3893 = vmax.f32 %v3829, %v3861
      %v3894 = vmax.f32 %v3830, %v3862
      %v3895 = vmax.f32 %v3831, %v3863
      %v3896 = vmax.f32 %v3832, %v3864
      %v3897 = vmax.f32 %v3833, %v3865
      %v3898 = vmax.f32 %v3834, %v3866
      %v3899 = vmax.f32 %v3835, %v3867
      %v3900 = vmax.f32 %v3836, %v3868
      %v3901 = vmax.f32 %v3837, %v3869
      %v3902 = vmax.f32 %v3838, %v3870
      %v3903 = vmax.f32 %v3839, %v3871
      %v3904 = vmax.f32 %v3840, %v3872
      %v3905 = vrot.slane %v3873, 7
      %v3906 = vrot.slane %v3875, 7
      %v3907 = vrot.slane %v3877, 7
      %v3908 = vrot.slane %v3879, 7
      %v3909 = vrot.slane %v3881, 7
      %v3910 = vrot.slane %v3883, 7
      %v3911 = vrot.slane %v3885, 7
      %v3912 = vrot.slane %v3887, 7
      %v3913 = vrot.slane %v3889, 7
      %v3914 = vrot.slane %v3891, 7
      %v3915 = vrot.slane %v3893, 7
      %v3916 = vrot.slane %v3895, 7
      %v3917 = vrot.slane %v3897, 7
      %v3918 = vrot.slane %v3899, 7
      %v3919 = vrot.slane %v3901, 7
      %v3920 = vrot.slane %v3903, 7
      %v3921 = vrot.slane %v3874, 7
      %v3922 = vrot.slane %v3876, 7
      %v3923 = vrot.slane %v3878, 7
      %v3924 = vrot.slane %v3880, 7
      %v3925 = vrot.slane %v3882, 7
      %v3926 = vrot.slane %v3884, 7
      %v3927 = vrot.slane %v3886, 7
      %v3928 = vrot.slane %v3888, 7
      %v3929 = vrot.slane %v3890, 7
      %v3930 = vrot.slane %v3892, 7
      %v3931 = vrot.slane %v3894, 7
      %v3932 = vrot.slane %v3896, 7
      %v3933 = vrot.slane %v3898, 7
      %v3934 = vrot.slane %v3900, 7
      %v3935 = vrot.slane %v3902, 7
      %v3936 = vrot.slane %v3904, 7
      %v3937 = vsel %vm817, %v3905, %v3921
      %v3938 = vsel %vm817, %v3906, %v3922
      %v3939 = vsel %vm817, %v3907, %v3923
      %v3940 = vsel %vm817, %v3908, %v3924
      %v3941 = vsel %vm817, %v3909, %v3925
      %v3942 = vsel %vm817, %v3910, %v3926
      %v3943 = vsel %vm817, %v3911, %v3927
      %v3944 = vsel %vm817, %v3912, %v3928
      %v3945 = vsel %vm817, %v3913, %v3929
      %v3946 = vsel %vm817, %v3914, %v3930
      %v3947 = vsel %vm817, %v3915, %v3931
      %v3948 = vsel %vm817, %v3916, %v3932
      %v3949 = vsel %vm817, %v3917, %v3933
      %v3950 = vsel %vm817, %v3918, %v3934
      %v3951 = vsel %vm817, %v3919, %v3935
      %v3952 = vsel %vm817, %v3920, %v3936
      %v3953 = vsel %vm817, %v3921, %v3905
      %v3954 = vsel %vm817, %v3922, %v3906
      %v3955 = vsel %vm817, %v3923, %v3907
      %v3956 = vsel %vm817, %v3924, %v3908
      %v3957 = vsel %vm817, %v3925, %v3909
      %v3958 = vsel %vm817, %v3926, %v3910
      %v3959 = vsel %vm817, %v3927, %v3911
      %v3960 = vsel %vm817, %v3928, %v3912
      %v3961 = vsel %vm817, %v3929, %v3913
      %v3962 = vsel %vm817, %v3930, %v3914
      %v3963 = vsel %vm817, %v3931, %v3915
      %v3964 = vsel %vm817, %v3932, %v3916
      %v3965 = vsel %vm817, %v3933, %v3917
      %v3966 = vsel %vm817, %v3934, %v3918
      %v3967 = vsel %vm817, %v3935, %v3919
      %v3968 = vsel %vm817, %v3936, %v3920
      %v3969 = vsel %vm1282, %v3953, -inf
      %v3970 = vsel %vm1283, %v3937, -inf
      %v3971 = vsel %vm1282, %v3954, -inf
      %v3972 = vsel %vm1283, %v3938, -inf
      %v3973 = vsel %vm1282, %v3955, -inf
      %v3974 = vsel %vm1283, %v3939, -inf
      %v3975 = vsel %vm1282, %v3956, -inf
      %v3976 = vsel %vm1283, %v3940, -inf
      %v3977 = vsel %vm1282, %v3957, -inf
      %v3978 = vsel %vm1283, %v3941, -inf
      %v3979 = vsel %vm1282, %v3958, -inf
      %v3980 = vsel %vm1283, %v3942, -inf
      %v3981 = vsel %vm1282, %v3959, -inf
      %v3982 = vsel %vm1283, %v3943, -inf
      %v3983 = vsel %vm1282, %v3960, -inf
      %v3984 = vsel %vm1283, %v3944, -inf
      %v3985 = vsel %vm1282, %v3961, -inf
      %v3986 = vsel %vm1283, %v3945, -inf
      %v3987 = vsel %vm1282, %v3962, -inf
      %v3988 = vsel %vm1283, %v3946, -inf
      %v3989 = vsel %vm1282, %v3963, -inf
      %v3990 = vsel %vm1283, %v3947, -inf
      %v3991 = vsel %vm1282, %v3964, -inf
      %v3992 = vsel %vm1283, %v3948, -inf
      %v3993 = vsel %vm1282, %v3965, -inf
      %v3994 = vsel %vm1283, %v3949, -inf
      %v3995 = vsel %vm1282, %v3966, -inf
      %v3996 = vsel %vm1283, %v3950, -inf
      %v3997 = vsel %vm1282, %v3967, -inf
      %v3998 = vsel %vm1283, %v3951, -inf
      %v3999 = vsel %vm1282, %v3968, -inf
      %v4000 = vsel %vm1283, %v3952, -inf
      %v4001 = vmax.f32 %v3873, %v3969
      %v4002 = vmax.f32 %v3874, %v3970
      %v4003 = vmax.f32 %v3875, %v3971
      %v4004 = vmax.f32 %v3876, %v3972
      %v4005 = vmax.f32 %v3877, %v3973
      %v4006 = vmax.f32 %v3878, %v3974
      %v4007 = vmax.f32 %v3879, %v3975
      %v4008 = vmax.f32 %v3880, %v3976
      %v4009 = vmax.f32 %v3881, %v3977
      %v4010 = vmax.f32 %v3882, %v3978
      %v4011 = vmax.f32 %v3883, %v3979
      %v4012 = vmax.f32 %v3884, %v3980
      %v4013 = vmax.f32 %v3885, %v3981
      %v4014 = vmax.f32 %v3886, %v3982
      %v4015 = vmax.f32 %v3887, %v3983
      %v4016 = vmax.f32 %v3888, %v3984
      %v4017 = vmax.f32 %v3889, %v3985
      %v4018 = vmax.f32 %v3890, %v3986
      %v4019 = vmax.f32 %v3891, %v3987
      %v4020 = vmax.f32 %v3892, %v3988
      %v4021 = vmax.f32 %v3893, %v3989
      %v4022 = vmax.f32 %v3894, %v3990
      %v4023 = vmax.f32 %v3895, %v3991
      %v4024 = vmax.f32 %v3896, %v3992
      %v4025 = vmax.f32 %v3897, %v3993
      %v4026 = vmax.f32 %v3898, %v3994
      %v4027 = vmax.f32 %v3899, %v3995
      %v4028 = vmax.f32 %v3900, %v3996
      %v4029 = vmax.f32 %v3901, %v3997
      %v4030 = vmax.f32 %v3902, %v3998
      %v4031 = vmax.f32 %v3903, %v3999
      %v4032 = vmax.f32 %v3904, %v4000
      %v4033 = vrot.slane %v3873, 6
      %v4034 = vrot.slane %v3875, 6
      %v4035 = vrot.slane %v3877, 6
      %v4036 = vrot.slane %v3879, 6
      %v4037 = vrot.slane %v3881, 6
      %v4038 = vrot.slane %v3883, 6
      %v4039 = vrot.slane %v3885, 6
      %v4040 = vrot.slane %v3887, 6
      %v4041 = vrot.slane %v3889, 6
      %v4042 = vrot.slane %v3891, 6
      %v4043 = vrot.slane %v3893, 6
      %v4044 = vrot.slane %v3895, 6
      %v4045 = vrot.slane %v3897, 6
      %v4046 = vrot.slane %v3899, 6
      %v4047 = vrot.slane %v3901, 6
      %v4048 = vrot.slane %v3903, 6
      %v4049 = vrot.slane %v3874, 6
      %v4050 = vrot.slane %v3876, 6
      %v4051 = vrot.slane %v3878, 6
      %v4052 = vrot.slane %v3880, 6
      %v4053 = vrot.slane %v3882, 6
      %v4054 = vrot.slane %v3884, 6
      %v4055 = vrot.slane %v3886, 6
      %v4056 = vrot.slane %v3888, 6
      %v4057 = vrot.slane %v3890, 6
      %v4058 = vrot.slane %v3892, 6
      %v4059 = vrot.slane %v3894, 6
      %v4060 = vrot.slane %v3896, 6
      %v4061 = vrot.slane %v3898, 6
      %v4062 = vrot.slane %v3900, 6
      %v4063 = vrot.slane %v3902, 6
      %v4064 = vrot.slane %v3904, 6
      %v4065 = vsel %vm836, %v4033, %v4049
      %v4066 = vsel %vm836, %v4034, %v4050
      %v4067 = vsel %vm836, %v4035, %v4051
      %v4068 = vsel %vm836, %v4036, %v4052
      %v4069 = vsel %vm836, %v4037, %v4053
      %v4070 = vsel %vm836, %v4038, %v4054
      %v4071 = vsel %vm836, %v4039, %v4055
      %v4072 = vsel %vm836, %v4040, %v4056
      %v4073 = vsel %vm836, %v4041, %v4057
      %v4074 = vsel %vm836, %v4042, %v4058
      %v4075 = vsel %vm836, %v4043, %v4059
      %v4076 = vsel %vm836, %v4044, %v4060
      %v4077 = vsel %vm836, %v4045, %v4061
      %v4078 = vsel %vm836, %v4046, %v4062
      %v4079 = vsel %vm836, %v4047, %v4063
      %v4080 = vsel %vm836, %v4048, %v4064
      %v4081 = vsel %vm836, %v4049, %v4033
      %v4082 = vsel %vm836, %v4050, %v4034
      %v4083 = vsel %vm836, %v4051, %v4035
      %v4084 = vsel %vm836, %v4052, %v4036
      %v4085 = vsel %vm836, %v4053, %v4037
      %v4086 = vsel %vm836, %v4054, %v4038
      %v4087 = vsel %vm836, %v4055, %v4039
      %v4088 = vsel %vm836, %v4056, %v4040
      %v4089 = vsel %vm836, %v4057, %v4041
      %v4090 = vsel %vm836, %v4058, %v4042
      %v4091 = vsel %vm836, %v4059, %v4043
      %v4092 = vsel %vm836, %v4060, %v4044
      %v4093 = vsel %vm836, %v4061, %v4045
      %v4094 = vsel %vm836, %v4062, %v4046
      %v4095 = vsel %vm836, %v4063, %v4047
      %v4096 = vsel %vm836, %v4064, %v4048
      %v4097 = vsel %vm1414, %v4081, -inf
      %v4098 = vsel %vm1415, %v4065, -inf
      %v4099 = vsel %vm1414, %v4082, -inf
      %v4100 = vsel %vm1415, %v4066, -inf
      %v4101 = vsel %vm1414, %v4083, -inf
      %v4102 = vsel %vm1415, %v4067, -inf
      %v4103 = vsel %vm1414, %v4084, -inf
      %v4104 = vsel %vm1415, %v4068, -inf
      %v4105 = vsel %vm1414, %v4085, -inf
      %v4106 = vsel %vm1415, %v4069, -inf
      %v4107 = vsel %vm1414, %v4086, -inf
      %v4108 = vsel %vm1415, %v4070, -inf
      %v4109 = vsel %vm1414, %v4087, -inf
      %v4110 = vsel %vm1415, %v4071, -inf
      %v4111 = vsel %vm1414, %v4088, -inf
      %v4112 = vsel %vm1415, %v4072, -inf
      %v4113 = vsel %vm1414, %v4089, -inf
      %v4114 = vsel %vm1415, %v4073, -inf
      %v4115 = vsel %vm1414, %v4090, -inf
      %v4116 = vsel %vm1415, %v4074, -inf
      %v4117 = vsel %vm1414, %v4091, -inf
      %v4118 = vsel %vm1415, %v4075, -inf
      %v4119 = vsel %vm1414, %v4092, -inf
      %v4120 = vsel %vm1415, %v4076, -inf
      %v4121 = vsel %vm1414, %v4093, -inf
      %v4122 = vsel %vm1415, %v4077, -inf
      %v4123 = vsel %vm1414, %v4094, -inf
      %v4124 = vsel %vm1415, %v4078, -inf
      %v4125 = vsel %vm1414, %v4095, -inf
      %v4126 = vsel %vm1415, %v4079, -inf
      %v4127 = vsel %vm1414, %v4096, -inf
      %v4128 = vsel %vm1415, %v4080, -inf
      %v4129 = vmax.f32 %v4001, %v4097
      %v4130 = vmax.f32 %v4002, %v4098
      %v4131 = vmax.f32 %v4003, %v4099
      %v4132 = vmax.f32 %v4004, %v4100
      %v4133 = vmax.f32 %v4005, %v4101
      %v4134 = vmax.f32 %v4006, %v4102
      %v4135 = vmax.f32 %v4007, %v4103
      %v4136 = vmax.f32 %v4008, %v4104
      %v4137 = vmax.f32 %v4009, %v4105
      %v4138 = vmax.f32 %v4010, %v4106
      %v4139 = vmax.f32 %v4011, %v4107
      %v4140 = vmax.f32 %v4012, %v4108
      %v4141 = vmax.f32 %v4013, %v4109
      %v4142 = vmax.f32 %v4014, %v4110
      %v4143 = vmax.f32 %v4015, %v4111
      %v4144 = vmax.f32 %v4016, %v4112
      %v4145 = vmax.f32 %v4017, %v4113
      %v4146 = vmax.f32 %v4018, %v4114
      %v4147 = vmax.f32 %v4019, %v4115
      %v4148 = vmax.f32 %v4020, %v4116
      %v4149 = vmax.f32 %v4021, %v4117
      %v4150 = vmax.f32 %v4022, %v4118
      %v4151 = vmax.f32 %v4023, %v4119
      %v4152 = vmax.f32 %v4024, %v4120
      %v4153 = vmax.f32 %v4025, %v4121
      %v4154 = vmax.f32 %v4026, %v4122
      %v4155 = vmax.f32 %v4027, %v4123
      %v4156 = vmax.f32 %v4028, %v4124
      %v4157 = vmax.f32 %v4029, %v4125
      %v4158 = vmax.f32 %v4030, %v4126
      %v4159 = vmax.f32 %v4031, %v4127
      %v4160 = vmax.f32 %v4032, %v4128
      %v4161 = vrot.slane %v3873, 2
      %v4162 = vrot.slane %v3875, 2
      %v4163 = vrot.slane %v3877, 2
      %v4164 = vrot.slane %v3879, 2
      %v4165 = vrot.slane %v3881, 2
      %v4166 = vrot.slane %v3883, 2
      %v4167 = vrot.slane %v3885, 2
      %v4168 = vrot.slane %v3887, 2
      %v4169 = vrot.slane %v3889, 2
      %v4170 = vrot.slane %v3891, 2
      %v4171 = vrot.slane %v3893, 2
      %v4172 = vrot.slane %v3895, 2
      %v4173 = vrot.slane %v3897, 2
      %v4174 = vrot.slane %v3899, 2
      %v4175 = vrot.slane %v3901, 2
      %v4176 = vrot.slane %v3903, 2
      %v4177 = vrot.slane %v3874, 2
      %v4178 = vrot.slane %v3876, 2
      %v4179 = vrot.slane %v3878, 2
      %v4180 = vrot.slane %v3880, 2
      %v4181 = vrot.slane %v3882, 2
      %v4182 = vrot.slane %v3884, 2
      %v4183 = vrot.slane %v3886, 2
      %v4184 = vrot.slane %v3888, 2
      %v4185 = vrot.slane %v3890, 2
      %v4186 = vrot.slane %v3892, 2
      %v4187 = vrot.slane %v3894, 2
      %v4188 = vrot.slane %v3896, 2
      %v4189 = vrot.slane %v3898, 2
      %v4190 = vrot.slane %v3900, 2
      %v4191 = vrot.slane %v3902, 2
      %v4192 = vrot.slane %v3904, 2
      %v4193 = vsel %vm855, %v4161, %v4177
      %v4194 = vsel %vm855, %v4162, %v4178
      %v4195 = vsel %vm855, %v4163, %v4179
      %v4196 = vsel %vm855, %v4164, %v4180
      %v4197 = vsel %vm855, %v4165, %v4181
      %v4198 = vsel %vm855, %v4166, %v4182
      %v4199 = vsel %vm855, %v4167, %v4183
      %v4200 = vsel %vm855, %v4168, %v4184
      %v4201 = vsel %vm855, %v4169, %v4185
      %v4202 = vsel %vm855, %v4170, %v4186
      %v4203 = vsel %vm855, %v4171, %v4187
      %v4204 = vsel %vm855, %v4172, %v4188
      %v4205 = vsel %vm855, %v4173, %v4189
      %v4206 = vsel %vm855, %v4174, %v4190
      %v4207 = vsel %vm855, %v4175, %v4191
      %v4208 = vsel %vm855, %v4176, %v4192
      %v4209 = vsel %vm855, %v4177, %v4161
      %v4210 = vsel %vm855, %v4178, %v4162
      %v4211 = vsel %vm855, %v4179, %v4163
      %v4212 = vsel %vm855, %v4180, %v4164
      %v4213 = vsel %vm855, %v4181, %v4165
      %v4214 = vsel %vm855, %v4182, %v4166
      %v4215 = vsel %vm855, %v4183, %v4167
      %v4216 = vsel %vm855, %v4184, %v4168
      %v4217 = vsel %vm855, %v4185, %v4169
      %v4218 = vsel %vm855, %v4186, %v4170
      %v4219 = vsel %vm855, %v4187, %v4171
      %v4220 = vsel %vm855, %v4188, %v4172
      %v4221 = vsel %vm855, %v4189, %v4173
      %v4222 = vsel %vm855, %v4190, %v4174
      %v4223 = vsel %vm855, %v4191, %v4175
      %v4224 = vsel %vm855, %v4192, %v4176
      %v4225 = vsel %vm1546, %v4193, -inf
      %v4226 = vsel %vm1547, %v4209, -inf
      %v4227 = vsel %vm1546, %v4194, -inf
      %v4228 = vsel %vm1547, %v4210, -inf
      %v4229 = vsel %vm1546, %v4195, -inf
      %v4230 = vsel %vm1547, %v4211, -inf
      %v4231 = vsel %vm1546, %v4196, -inf
      %v4232 = vsel %vm1547, %v4212, -inf
      %v4233 = vsel %vm1546, %v4197, -inf
      %v4234 = vsel %vm1547, %v4213, -inf
      %v4235 = vsel %vm1546, %v4198, -inf
      %v4236 = vsel %vm1547, %v4214, -inf
      %v4237 = vsel %vm1546, %v4199, -inf
      %v4238 = vsel %vm1547, %v4215, -inf
      %v4239 = vsel %vm1546, %v4200, -inf
      %v4240 = vsel %vm1547, %v4216, -inf
      %v4241 = vsel %vm1546, %v4201, -inf
      %v4242 = vsel %vm1547, %v4217, -inf
      %v4243 = vsel %vm1546, %v4202, -inf
      %v4244 = vsel %vm1547, %v4218, -inf
      %v4245 = vsel %vm1546, %v4203, -inf
      %v4246 = vsel %vm1547, %v4219, -inf
      %v4247 = vsel %vm1546, %v4204, -inf
      %v4248 = vsel %vm1547, %v4220, -inf
      %v4249 = vsel %vm1546, %v4205, -inf
      %v4250 = vsel %vm1547, %v4221, -inf
      %v4251 = vsel %vm1546, %v4206, -inf
      %v4252 = vsel %vm1547, %v4222, -inf
      %v4253 = vsel %vm1546, %v4207, -inf
      %v4254 = vsel %vm1547, %v4223, -inf
      %v4255 = vsel %vm1546, %v4208, -inf
      %v4256 = vsel %vm1547, %v4224, -inf
      %v4257 = vmax.f32 %v4129, %v4225
      %v4258 = vmax.f32 %v4130, %v4226
      %v4259 = vmax.f32 %v4131, %v4227
      %v4260 = vmax.f32 %v4132, %v4228
      %v4261 = vmax.f32 %v4133, %v4229
      %v4262 = vmax.f32 %v4134, %v4230
      %v4263 = vmax.f32 %v4135, %v4231
      %v4264 = vmax.f32 %v4136, %v4232
      %v4265 = vmax.f32 %v4137, %v4233
      %v4266 = vmax.f32 %v4138, %v4234
      %v4267 = vmax.f32 %v4139, %v4235
      %v4268 = vmax.f32 %v4140, %v4236
      %v4269 = vmax.f32 %v4141, %v4237
      %v4270 = vmax.f32 %v4142, %v4238
      %v4271 = vmax.f32 %v4143, %v4239
      %v4272 = vmax.f32 %v4144, %v4240
      %v4273 = vmax.f32 %v4145, %v4241
      %v4274 = vmax.f32 %v4146, %v4242
      %v4275 = vmax.f32 %v4147, %v4243
      %v4276 = vmax.f32 %v4148, %v4244
      %v4277 = vmax.f32 %v4149, %v4245
      %v4278 = vmax.f32 %v4150, %v4246
      %v4279 = vmax.f32 %v4151, %v4247
      %v4280 = vmax.f32 %v4152, %v4248
      %v4281 = vmax.f32 %v4153, %v4249
      %v4282 = vmax.f32 %v4154, %v4250
      %v4283 = vmax.f32 %v4155, %v4251
      %v4284 = vmax.f32 %v4156, %v4252
      %v4285 = vmax.f32 %v4157, %v4253
      %v4286 = vmax.f32 %v4158, %v4254
      %v4287 = vmax.f32 %v4159, %v4255
      %v4288 = vmax.f32 %v4160, %v4256
      %v4289 = vrot.slane %v3873, 1
      %v4290 = vrot.slane %v3875, 1
      %v4291 = vrot.slane %v3877, 1
      %v4292 = vrot.slane %v3879, 1
      %v4293 = vrot.slane %v3881, 1
      %v4294 = vrot.slane %v3883, 1
      %v4295 = vrot.slane %v3885, 1
      %v4296 = vrot.slane %v3887, 1
      %v4297 = vrot.slane %v3889, 1
      %v4298 = vrot.slane %v3891, 1
      %v4299 = vrot.slane %v3893, 1
      %v4300 = vrot.slane %v3895, 1
      %v4301 = vrot.slane %v3897, 1
      %v4302 = vrot.slane %v3899, 1
      %v4303 = vrot.slane %v3901, 1
      %v4304 = vrot.slane %v3903, 1
      %v4305 = vrot.slane %v3874, 1
      %v4306 = vrot.slane %v3876, 1
      %v4307 = vrot.slane %v3878, 1
      %v4308 = vrot.slane %v3880, 1
      %v4309 = vrot.slane %v3882, 1
      %v4310 = vrot.slane %v3884, 1
      %v4311 = vrot.slane %v3886, 1
      %v4312 = vrot.slane %v3888, 1
      %v4313 = vrot.slane %v3890, 1
      %v4314 = vrot.slane %v3892, 1
      %v4315 = vrot.slane %v3894, 1
      %v4316 = vrot.slane %v3896, 1
      %v4317 = vrot.slane %v3898, 1
      %v4318 = vrot.slane %v3900, 1
      %v4319 = vrot.slane %v3902, 1
      %v4320 = vrot.slane %v3904, 1
      %v4321 = vsel %vm874, %v4289, %v4305
      %v4322 = vsel %vm874, %v4290, %v4306
      %v4323 = vsel %vm874, %v4291, %v4307
      %v4324 = vsel %vm874, %v4292, %v4308
      %v4325 = vsel %vm874, %v4293, %v4309
      %v4326 = vsel %vm874, %v4294, %v4310
      %v4327 = vsel %vm874, %v4295, %v4311
      %v4328 = vsel %vm874, %v4296, %v4312
      %v4329 = vsel %vm874, %v4297, %v4313
      %v4330 = vsel %vm874, %v4298, %v4314
      %v4331 = vsel %vm874, %v4299, %v4315
      %v4332 = vsel %vm874, %v4300, %v4316
      %v4333 = vsel %vm874, %v4301, %v4317
      %v4334 = vsel %vm874, %v4302, %v4318
      %v4335 = vsel %vm874, %v4303, %v4319
      %v4336 = vsel %vm874, %v4304, %v4320
      %v4337 = vsel %vm874, %v4305, %v4289
      %v4338 = vsel %vm874, %v4306, %v4290
      %v4339 = vsel %vm874, %v4307, %v4291
      %v4340 = vsel %vm874, %v4308, %v4292
      %v4341 = vsel %vm874, %v4309, %v4293
      %v4342 = vsel %vm874, %v4310, %v4294
      %v4343 = vsel %vm874, %v4311, %v4295
      %v4344 = vsel %vm874, %v4312, %v4296
      %v4345 = vsel %vm874, %v4313, %v4297
      %v4346 = vsel %vm874, %v4314, %v4298
      %v4347 = vsel %vm874, %v4315, %v4299
      %v4348 = vsel %vm874, %v4316, %v4300
      %v4349 = vsel %vm874, %v4317, %v4301
      %v4350 = vsel %vm874, %v4318, %v4302
      %v4351 = vsel %vm874, %v4319, %v4303
      %v4352 = vsel %vm874, %v4320, %v4304
      %v4353 = vsel %vm1678, %v4321, -inf
      %v4354 = vsel %vm1679, %v4337, -inf
      %v4355 = vsel %vm1678, %v4322, -inf
      %v4356 = vsel %vm1679, %v4338, -inf
      %v4357 = vsel %vm1678, %v4323, -inf
      %v4358 = vsel %vm1679, %v4339, -inf
      %v4359 = vsel %vm1678, %v4324, -inf
      %v4360 = vsel %vm1679, %v4340, -inf
      %v4361 = vsel %vm1678, %v4325, -inf
      %v4362 = vsel %vm1679, %v4341, -inf
      %v4363 = vsel %vm1678, %v4326, -inf
      %v4364 = vsel %vm1679, %v4342, -inf
      %v4365 = vsel %vm1678, %v4327, -inf
      %v4366 = vsel %vm1679, %v4343, -inf
      %v4367 = vsel %vm1678, %v4328, -inf
      %v4368 = vsel %vm1679, %v4344, -inf
      %v4369 = vsel %vm1678, %v4329, -inf
      %v4370 = vsel %vm1679, %v4345, -inf
      %v4371 = vsel %vm1678, %v4330, -inf
      %v4372 = vsel %vm1679, %v4346, -inf
      %v4373 = vsel %vm1678, %v4331, -inf
      %v4374 = vsel %vm1679, %v4347, -inf
      %v4375 = vsel %vm1678, %v4332, -inf
      %v4376 = vsel %vm1679, %v4348, -inf
      %v4377 = vsel %vm1678, %v4333, -inf
      %v4378 = vsel %vm1679, %v4349, -inf
      %v4379 = vsel %vm1678, %v4334, -inf
      %v4380 = vsel %vm1679, %v4350, -inf
      %v4381 = vsel %vm1678, %v4335, -inf
      %v4382 = vsel %vm1679, %v4351, -inf
      %v4383 = vsel %vm1678, %v4336, -inf
      %v4384 = vsel %vm1679, %v4352, -inf
      %v4385 = vmax.f32 %v4257, %v4353
      %v4386 = vmax.f32 %v4258, %v4354
      %v4387 = vmax.f32 %v4259, %v4355
      %v4388 = vmax.f32 %v4260, %v4356
      %v4389 = vmax.f32 %v4261, %v4357
      %v4390 = vmax.f32 %v4262, %v4358
      %v4391 = vmax.f32 %v4263, %v4359
      %v4392 = vmax.f32 %v4264, %v4360
      %v4393 = vmax.f32 %v4265, %v4361
      %v4394 = vmax.f32 %v4266, %v4362
      %v4395 = vmax.f32 %v4267, %v4363
      %v4396 = vmax.f32 %v4268, %v4364
      %v4397 = vmax.f32 %v4269, %v4365
      %v4398 = vmax.f32 %v4270, %v4366
      %v4399 = vmax.f32 %v4271, %v4367
      %v4400 = vmax.f32 %v4272, %v4368
      %v4401 = vmax.f32 %v4273, %v4369
      %v4402 = vmax.f32 %v4274, %v4370
      %v4403 = vmax.f32 %v4275, %v4371
      %v4404 = vmax.f32 %v4276, %v4372
      %v4405 = vmax.f32 %v4277, %v4373
      %v4406 = vmax.f32 %v4278, %v4374
      %v4407 = vmax.f32 %v4279, %v4375
      %v4408 = vmax.f32 %v4280, %v4376
      %v4409 = vmax.f32 %v4281, %v4377
      %v4410 = vmax.f32 %v4282, %v4378
      %v4411 = vmax.f32 %v4283, %v4379
      %v4412 = vmax.f32 %v4284, %v4380
      %v4413 = vmax.f32 %v4285, %v4381
      %v4414 = vmax.f32 %v4286, %v4382
      %v4415 = vmax.f32 %v4287, %v4383
      %v4416 = vmax.f32 %v4288, %v4384
      %s4417 = scalar_lea.vmem %s264, 6
      %v4418 = vld [vmem:[%s4417] sm:$0x3]
      %v4420 = vsel %vm802, %v4385, 0
      %v4423 = vsel %vm802, %v4386, 0
      %v4426 = vsel %vm802, %v4387, 0
      %v4429 = vsel %vm802, %v4388, 0
      %v4432 = vsel %vm802, %v4389, 0
      %v4435 = vsel %vm802, %v4390, 0
      %v4438 = vsel %vm802, %v4391, 0
      %v4441 = vsel %vm802, %v4392, 0
      %v4444 = vsel %vm802, %v4393, 0
      %v4447 = vsel %vm802, %v4394, 0
      %v4450 = vsel %vm802, %v4395, 0
      %v4453 = vsel %vm802, %v4396, 0
      %v4456 = vsel %vm802, %v4397, 0
      %v4459 = vsel %vm802, %v4398, 0
      %v4462 = vsel %vm802, %v4399, 0
      %v4465 = vsel %vm802, %v4400, 0
      %v4468 = vsel %vm802, %v4401, 0
      %v4471 = vsel %vm802, %v4402, 0
      %v4474 = vsel %vm802, %v4403, 0
      %v4477 = vsel %vm802, %v4404, 0
      %v4480 = vsel %vm802, %v4405, 0
      %v4483 = vsel %vm802, %v4406, 0
      %v4486 = vsel %vm802, %v4407, 0
      %v4489 = vsel %vm802, %v4408, 0
      %v4492 = vsel %vm802, %v4409, 0
      %v4495 = vsel %vm802, %v4410, 0
      %v4498 = vsel %vm802, %v4411, 0
      %v4501 = vsel %vm802, %v4412, 0
      %v4504 = vsel %vm802, %v4413, 0
      %v4507 = vsel %vm802, %v4414, 0
      %v4510 = vsel %vm802, %v4415, 0
      %v4513 = vsel %vm802, %v4416, 0
      %v4516 = vsel %vm1842, %v4418, 0
      %4518 = vmatprep.subr.mxu0 0.0
      %4519 = vmatpush1.msra.mxu0 %v4516
      %4520 = vmatprep.subr.mxu0 0.0
      %4521 = vmatpush1.msra.mxu0 0.0
      %4522 = vmatprep.subr.mxu0 0.0
      %4523 = vmatpush1.msra.mxu0 0.0
      %4524 = vmatprep.subr.mxu0 0.0
      %4525 = vmatpush1.msra.mxu0 0.0
      %4526 = vmatprep.subr.mxu0 0.0
      %4527 = vmatpush1.msra.mxu0 0.0
      %4528 = vmatprep.subr.mxu0 0.0
      %4529 = vmatpush1.msra.mxu0 0.0
      %4530 = vmatprep.subr.mxu0 0.0
      %4531 = vmatpush1.msra.mxu0 0.0
      %4532 = vmatprep.subr.mxu0 0.0
      %4533 = vmatpush1.msra.mxu0 0.0
      %4534 = vmatprep.subr.mxu0 0.0
      %4535 = vmatpush1.msra.mxu0 0.0
      %4536 = vmatprep.subr.mxu0 0.0
      %4537 = vmatpush1.msra.mxu0 0.0
      %4538 = vmatprep.subr.mxu0 0.0
      %4539 = vmatpush1.msra.mxu0 0.0
      %4540 = vmatprep.subr.mxu0 0.0
      %4541 = vmatpush1.msra.mxu0 0.0
      %4542 = vmatprep.subr.mxu0 0.0
      %4543 = vmatpush1.msra.mxu0 0.0
      %4544 = vmatprep.subr.mxu0 0.0
      %4545 = vmatpush1.msra.mxu0 0.0
      %4546 = vmatprep.subr.mxu0 0.0
      %4547 = vmatpush1.msra.mxu0 0.0
      %4548 = vmatprep.subr.mxu0 0.0
      %4549 = vmatpush1.msra.mxu0 0.0
      %4550 = vmatprep.subr.mxu0 0.0
      %4551 = vmatpush1.msra.mxu0 0.0
      %4552 = vmatprep.subr.mxu0 0.0
      %4553 = vmatpush1.msra.mxu0 0.0
      %4554 = vmatprep.subr.mxu0 0.0
      %4555 = vmatpush1.msra.mxu0 0.0
      %4556 = vmatprep.subr.mxu0 0.0
      %4557 = vmatpush1.msra.mxu0 0.0
      %4558 = vmatprep.subr.mxu0 0.0
      %4559 = vmatpush1.msra.mxu0 0.0
      %4560 = vmatprep.subr.mxu0 0.0
      %4561 = vmatpush1.msra.mxu0 0.0
      %4562 = vmatprep.subr.mxu0 0.0
      %4563 = vmatpush1.msra.mxu0 0.0
      %4564 = vmatprep.subr.mxu0 0.0
      %4565 = vmatpush1.msra.mxu0 0.0
      %4566 = vmatprep.subr.mxu0 0.0
      %4567 = vmatpush1.msra.mxu0 0.0
      %4568 = vmatprep.subr.mxu0 0.0
      %4569 = vmatpush1.msra.mxu0 0.0
      %4570 = vmatprep.subr.mxu0 0.0
      %4571 = vmatpush1.msra.mxu0 0.0
      %4572 = vmatprep.subr.mxu0 0.0
      %4573 = vmatpush1.msra.mxu0 0.0
      %4574 = vmatprep.subr.mxu0 0.0
      %4575 = vmatpush1.msra.mxu0 0.0
      %4576 = vmatprep.subr.mxu0 0.0
      %4577 = vmatpush1.msra.mxu0 0.0
      %4578 = vmatprep.subr.mxu0 0.0
      %4579 = vmatpush1.msra.mxu0 0.0
      %4580 = vmatprep.subr.mxu0 0.0
      %4581 = vmatpush1.msra.mxu0 0.0
      %4582 = vmatprep.mubr.f32.mxu0 0.0
      %4583 = vmatmul.mubr.f32.gmra.mrb[0].mxu0 %v4420
      %v4584 = vpop.f32.mrb[0].mxu0
      %v4585 = vadd.f32 0.0, %v4584
      %v4586 = vpop.f32.mrb[0].mxu0
      %4587 = vmatprep.mubr.f32.mxu0 0.0
      %4588 = vmatmul.mubr.f32.gmra.mrb[0].mxu0 %v4423
      %v4589 = vpop.f32.mrb[0].mxu0
      %v4590 = vadd.f32 0.0, %v4589
      %v4591 = vpop.f32.mrb[0].mxu0
      %4592 = vmatprep.mubr.f32.mxu0 0.0
      %4593 = vmatmul.mubr.f32.gmra.mrb[0].mxu0 %v4426
      %v4594 = vpop.f32.mrb[0].mxu0
      %v4595 = vadd.f32 0.0, %v4594
      %v4596 = vpop.f32.mrb[0].mxu0
      %4597 = vmatprep.mubr.f32.mxu0 0.0
      %4598 = vmatmul.mubr.f32.gmra.mrb[0].mxu0 %v4429
      %v4599 = vpop.f32.mrb[0].mxu0
      %v4600 = vadd.f32 0.0, %v4599
      %v4601 = vpop.f32.mrb[0].mxu0
      %4602 = vmatprep.mubr.f32.mxu0 0.0
      %4603 = vmatmul.mubr.f32.gmra.mrb[0].mxu0 %v4432
      %v4604 = vpop.f32.mrb[0].mxu0
      %v4605 = vadd.f32 0.0, %v4604
      %v4606 = vpop.f32.mrb[0].mxu0
      %4607 = vmatprep.mubr.f32.mxu0 0.0
      %4608 = vmatmul.mubr.f32.gmra.mrb[0].mxu0 %v4435
      %v4609 = vpop.f32.mrb[0].mxu0
      %v4610 = vadd.f32 0.0, %v4609
      %v4611 = vpop.f32.mrb[0].mxu0
      %4612 = vmatprep.mubr.f32.mxu0 0.0
      %4613 = vmatmul.mubr.f32.gmra.mrb[0].mxu0 %v4438
      %v4614 = vpop.f32.mrb[0].mxu0
      %v4615 = vadd.f32 0.0, %v4614
      %v4616 = vpop.f32.mrb[0].mxu0
      %4617 = vmatprep.mubr.f32.mxu0 0.0
      %4618 = vmatmul.mubr.f32.gmra.mrb[0].mxu0 %v4441
      %v4619 = vpop.f32.mrb[0].mxu0
      %v4620 = vadd.f32 0.0, %v4619
      %v4621 = vpop.f32.mrb[0].mxu0
      %4622 = vmatprep.mubr.f32.mxu0 0.0
      %4623 = vmatmul.mubr.f32.gmra.mrb[0].mxu0 %v4444
      %v4624 = vpop.f32.mrb[0].mxu0
      %v4625 = vadd.f32 0.0, %v4624
      %v4626 = vpop.f32.mrb[0].mxu0
      %4627 = vmatprep.mubr.f32.mxu0 0.0
      %4628 = vmatmul.mubr.f32.gmra.mrb[0].mxu0 %v4447
      %v4629 = vpop.f32.mrb[0].mxu0
      %v4630 = vadd.f32 0.0, %v4629
      %v4631 = vpop.f32.mrb[0].mxu0
      %4632 = vmatprep.mubr.f32.mxu0 0.0
      %4633 = vmatmul.mubr.f32.gmra.mrb[0].mxu0 %v4450
      %v4634 = vpop.f32.mrb[0].mxu0
      %v4635 = vadd.f32 0.0, %v4634
      %v4636 = vpop.f32.mrb[0].mxu0
      %4637 = vmatprep.mubr.f32.mxu0 0.0
      %4638 = vmatmul.mubr.f32.gmra.mrb[0].mxu0 %v4453
      %v4639 = vpop.f32.mrb[0].mxu0
      %v4640 = vadd.f32 0.0, %v4639
      %v4641 = vpop.f32.mrb[0].mxu0
      %4642 = vmatprep.mubr.f32.mxu0 0.0
      %4643 = vmatmul.mubr.f32.gmra.mrb[0].mxu0 %v4456
      %v4644 = vpop.f32.mrb[0].mxu0
      %v4645 = vadd.f32 0.0, %v4644
      %v4646 = vpop.f32.mrb[0].mxu0
      %4647 = vmatprep.mubr.f32.mxu0 0.0
      %4648 = vmatmul.mubr.f32.gmra.mrb[0].mxu0 %v4459
      %v4649 = vpop.f32.mrb[0].mxu0
      %v4650 = vadd.f32 0.0, %v4649
      %v4651 = vpop.f32.mrb[0].mxu0
      %4652 = vmatprep.mubr.f32.mxu0 0.0
      %4653 = vmatmul.mubr.f32.gmra.mrb[0].mxu0 %v4462
      %v4654 = vpop.f32.mrb[0].mxu0
      %v4655 = vadd.f32 0.0, %v4654
      %v4656 = vpop.f32.mrb[0].mxu0
      %4657 = vmatprep.mubr.f32.mxu0 0.0
      %4658 = vmatmul.mubr.f32.gmra.mrb[0].mxu0 %v4465
      %v4659 = vpop.f32.mrb[0].mxu0
      %v4660 = vadd.f32 0.0, %v4659
      %v4661 = vpop.f32.mrb[0].mxu0
      %4662 = vmatprep.mubr.f32.mxu0 0.0
      %4663 = vmatmul.mubr.f32.gmra.mrb[0].mxu0 %v4468
      %v4664 = vpop.f32.mrb[0].mxu0
      %v4665 = vadd.f32 0.0, %v4664
      %v4666 = vpop.f32.mrb[0].mxu0
      %4667 = vmatprep.mubr.f32.mxu0 0.0
      %4668 = vmatmul.mubr.f32.gmra.mrb[0].mxu0 %v4471
      %v4669 = vpop.f32.mrb[0].mxu0
      %v4670 = vadd.f32 0.0, %v4669
      %v4671 = vpop.f32.mrb[0].mxu0
      %4672 = vmatprep.mubr.f32.mxu0 0.0
      %4673 = vmatmul.mubr.f32.gmra.mrb[0].mxu0 %v4474
      %v4674 = vpop.f32.mrb[0].mxu0
      %v4675 = vadd.f32 0.0, %v4674
      %v4676 = vpop.f32.mrb[0].mxu0
      %4677 = vmatprep.mubr.f32.mxu0 0.0
      %4678 = vmatmul.mubr.f32.gmra.mrb[0].mxu0 %v4477
      %v4679 = vpop.f32.mrb[0].mxu0
      %v4680 = vadd.f32 0.0, %v4679
      %v4681 = vpop.f32.mrb[0].mxu0
      %4682 = vmatprep.mubr.f32.mxu0 0.0
      %4683 = vmatmul.mubr.f32.gmra.mrb[0].mxu0 %v4480
      %v4684 = vpop.f32.mrb[0].mxu0
      %v4685 = vadd.f32 0.0, %v4684
      %v4686 = vpop.f32.mrb[0].mxu0
      %4687 = vmatprep.mubr.f32.mxu0 0.0
      %4688 = vmatmul.mubr.f32.gmra.mrb[0].mxu0 %v4483
      %v4689 = vpop.f32.mrb[0].mxu0
      %v4690 = vadd.f32 0.0, %v4689
      %v4691 = vpop.f32.mrb[0].mxu0
      %4692 = vmatprep.mubr.f32.mxu0 0.0
      %4693 = vmatmul.mubr.f32.gmra.mrb[0].mxu0 %v4486
      %v4694 = vpop.f32.mrb[0].mxu0
      %v4695 = vadd.f32 0.0, %v4694
      %v4696 = vpop.f32.mrb[0].mxu0
      %4697 = vmatprep.mubr.f32.mxu0 0.0
      %4698 = vmatmul.mubr.f32.gmra.mrb[0].mxu0 %v4489
      %v4699 = vpop.f32.mrb[0].mxu0
      %v4700 = vadd.f32 0.0, %v4699
      %v4701 = vpop.f32.mrb[0].mxu0
      %4702 = vmatprep.mubr.f32.mxu0 0.0
      %4703 = vmatmul.mubr.f32.gmra.mrb[0].mxu0 %v4492
      %v4704 = vpop.f32.mrb[0].mxu0
      %v4705 = vadd.f32 0.0, %v4704
      %v4706 = vpop.f32.mrb[0].mxu0
      %4707 = vmatprep.mubr.f32.mxu0 0.0
      %4708 = vmatmul.mubr.f32.gmra.mrb[0].mxu0 %v4495
      %v4709 = vpop.f32.mrb[0].mxu0
      %v4710 = vadd.f32 0.0, %v4709
      %v4711 = vpop.f32.mrb[0].mxu0
      %4712 = vmatprep.mubr.f32.mxu0 0.0
      %4713 = vmatmul.mubr.f32.gmra.mrb[0].mxu0 %v4498
      %v4714 = vpop.f32.mrb[0].mxu0
      %v4715 = vadd.f32 0.0, %v4714
      %v4716 = vpop.f32.mrb[0].mxu0
      %4717 = vmatprep.mubr.f32.mxu0 0.0
      %4718 = vmatmul.mubr.f32.gmra.mrb[0].mxu0 %v4501
      %v4719 = vpop.f32.mrb[0].mxu0
      %v4720 = vadd.f32 0.0, %v4719
      %v4721 = vpop.f32.mrb[0].mxu0
      %4722 = vmatprep.mubr.f32.mxu0 0.0
      %4723 = vmatmul.mubr.f32.gmra.mrb[0].mxu0 %v4504
      %v4724 = vpop.f32.mrb[0].mxu0
      %v4725 = vadd.f32 0.0, %v4724
      %v4726 = vpop.f32.mrb[0].mxu0
      %4727 = vmatprep.mubr.f32.mxu0 0.0
      %4728 = vmatmul.mubr.f32.gmra.mrb[0].mxu0 %v4507
      %v4729 = vpop.f32.mrb[0].mxu0
      %v4730 = vadd.f32 0.0, %v4729
      %v4731 = vpop.f32.mrb[0].mxu0
      %4732 = vmatprep.mubr.f32.mxu0 0.0
      %4733 = vmatmul.mubr.f32.gmra.mrb[0].mxu0 %v4510
      %v4734 = vpop.f32.mrb[0].mxu0
      %v4735 = vadd.f32 0.0, %v4734
      %v4736 = vpop.f32.mrb[0].mxu0
      %4737 = vmatprep.mubr.f32.mxu0 0.0
      %4738 = vmatmul.mubr.f32.gmra.mrb[0].mxu0 %v4513
      %v4739 = vpop.f32.mrb[0].mxu0
      %v4740 = vadd.f32 0.0, %v4739
      %v4741 = vpop.f32.mrb[0].mxu0
      %4742 = vdwg.mxu0
      %v4743 = vadd.f32 %v3553, %v4585
      %v4744 = vadd.f32 %v3554, %v4590
      %v4745 = vadd.f32 %v3555, %v4595
      %v4746 = vadd.f32 %v3556, %v4600
      %v4747 = vadd.f32 %v3557, %v4605
      %v4748 = vadd.f32 %v3558, %v4610
      %v4749 = vadd.f32 %v3559, %v4615
      %v4750 = vadd.f32 %v3560, %v4620
      %v4751 = vadd.f32 %v3561, %v4625
      %v4752 = vadd.f32 %v3562, %v4630
      %v4753 = vadd.f32 %v3563, %v4635
      %v4754 = vadd.f32 %v3564, %v4640
      %v4755 = vadd.f32 %v3565, %v4645
      %v4756 = vadd.f32 %v3566, %v4650
      %v4757 = vadd.f32 %v3567, %v4655
      %v4758 = vadd.f32 %v3568, %v4660
      %v4759 = vadd.f32 %v3569, %v4665
      %v4760 = vadd.f32 %v3570, %v4670
      %v4761 = vadd.f32 %v3571, %v4675
      %v4762 = vadd.f32 %v3572, %v4680
      %v4763 = vadd.f32 %v3573, %v4685
      %v4764 = vadd.f32 %v3574, %v4690
      %v4765 = vadd.f32 %v3575, %v4695
      %v4766 = vadd.f32 %v3576, %v4700
      %v4767 = vadd.f32 %v3577, %v4705
      %v4768 = vadd.f32 %v3578, %v4710
      %v4769 = vadd.f32 %v3579, %v4715
      %v4770 = vadd.f32 %v3580, %v4720
      %v4771 = vadd.f32 %v3581, %v4725
      %v4772 = vadd.f32 %v3582, %v4730
      %v4773 = vadd.f32 %v3583, %v4735
      %v4774 = vadd.f32 %v3584, %v4740
      %v4775 = vld [vmem:[%s267] sm:$0x1]
      %v4777 = vlaneseq
      %v4778 = vshrl.u32 %v4777, 7
      %v4779 = vsub.s32 0, %v4778
      %v4780 = vrot.slane %v4775, %v4779
      %v4782 = vadd.f32 %v4743, %v4780
      %v4783 = vadd.f32 %v4744, %v4780
      %v4784 = vadd.f32 %v4745, %v4780
      %v4785 = vadd.f32 %v4746, %v4780
      %v4786 = vadd.f32 %v4747, %v4780
      %v4787 = vadd.f32 %v4748, %v4780
      %v4788 = vadd.f32 %v4749, %v4780
      %v4789 = vadd.f32 %v4750, %v4780
      %v4790 = vadd.f32 %v4751, %v4780
      %v4791 = vadd.f32 %v4752, %v4780
      %v4792 = vadd.f32 %v4753, %v4780
      %v4793 = vadd.f32 %v4754, %v4780
      %v4794 = vadd.f32 %v4755, %v4780
      %v4795 = vadd.f32 %v4756, %v4780
      %v4796 = vadd.f32 %v4757, %v4780
      %v4797 = vadd.f32 %v4758, %v4780
      %v4798 = vadd.f32 %v4759, %v4780
      %v4799 = vadd.f32 %v4760, %v4780
      %v4800 = vadd.f32 %v4761, %v4780
      %v4801 = vadd.f32 %v4762, %v4780
      %v4802 = vadd.f32 %v4763, %v4780
      %v4803 = vadd.f32 %v4764, %v4780
      %v4804 = vadd.f32 %v4765, %v4780
      %v4805 = vadd.f32 %v4766, %v4780
      %v4806 = vadd.f32 %v4767, %v4780
      %v4807 = vadd.f32 %v4768, %v4780
      %v4808 = vadd.f32 %v4769, %v4780
      %v4809 = vadd.f32 %v4770, %v4780
      %v4810 = vadd.f32 %v4771, %v4780
      %v4811 = vadd.f32 %v4772, %v4780
      %v4812 = vadd.f32 %v4773, %v4780
      %v4813 = vadd.f32 %v4774, %v4780
      %v4814 = vadd.f32 %v4782, 3.0
      %v4815 = vadd.f32 %v4783, 3.0
      %v4816 = vadd.f32 %v4784, 3.0
      %v4817 = vadd.f32 %v4785, 3.0
      %v4818 = vadd.f32 %v4786, 3.0
      %v4819 = vadd.f32 %v4787, 3.0
      %v4820 = vadd.f32 %v4788, 3.0
      %v4821 = vadd.f32 %v4789, 3.0
      %v4822 = vadd.f32 %v4790, 3.0
      %v4823 = vadd.f32 %v4791, 3.0
      %v4824 = vadd.f32 %v4792, 3.0
      %v4825 = vadd.f32 %v4793, 3.0
      %v4826 = vadd.f32 %v4794, 3.0
      %v4827 = vadd.f32 %v4795, 3.0
      %v4828 = vadd.f32 %v4796, 3.0
      %v4829 = vadd.f32 %v4797, 3.0
      %v4830 = vadd.f32 %v4798, 3.0
      %v4831 = vadd.f32 %v4799, 3.0
      %v4832 = vadd.f32 %v4800, 3.0
      %v4833 = vadd.f32 %v4801, 3.0
      %v4834 = vadd.f32 %v4802, 3.0
      %v4835 = vadd.f32 %v4803, 3.0
      %v4836 = vadd.f32 %v4804, 3.0
      %v4837 = vadd.f32 %v4805, 3.0
      %v4838 = vadd.f32 %v4806, 3.0
      %v4839 = vadd.f32 %v4807, 3.0
      %v4840 = vadd.f32 %v4808, 3.0
      %v4841 = vadd.f32 %v4809, 3.0
      %v4842 = vadd.f32 %v4810, 3.0
      %v4843 = vadd.f32 %v4811, 3.0
      %v4844 = vadd.f32 %v4812, 3.0
      %v4845 = vadd.f32 %v4813, 3.0
      %v4846 = vmax.f32 %v4814, 0.0
      %v4847 = vmax.f32 %v4815, 0.0
      %v4848 = vmax.f32 %v4816, 0.0
      %v4849 = vmax.f32 %v4817, 0.0
      %v4850 = vmax.f32 %v4818, 0.0
      %v4851 = vmax.f32 %v4819, 0.0
      %v4852 = vmax.f32 %v4820, 0.0
      %v4853 = vmax.f32 %v4821, 0.0
      %v4854 = vmax.f32 %v4822, 0.0
      %v4855 = vmax.f32 %v4823, 0.0
      %v4856 = vmax.f32 %v4824, 0.0
      %v4857 = vmax.f32 %v4825, 0.0
      %v4858 = vmax.f32 %v4826, 0.0
      %v4859 = vmax.f32 %v4827, 0.0
      %v4860 = vmax.f32 %v4828, 0.0
      %v4861 = vmax.f32 %v4829, 0.0
      %v4862 = vmax.f32 %v4830, 0.0
      %v4863 = vmax.f32 %v4831, 0.0
      %v4864 = vmax.f32 %v4832, 0.0
      %v4865 = vmax.f32 %v4833, 0.0
      %v4866 = vmax.f32 %v4834, 0.0
      %v4867 = vmax.f32 %v4835, 0.0
      %v4868 = vmax.f32 %v4836, 0.0
      %v4869 = vmax.f32 %v4837, 0.0
      %v4870 = vmax.f32 %v4838, 0.0
      %v4871 = vmax.f32 %v4839, 0.0
      %v4872 = vmax.f32 %v4840, 0.0
      %v4873 = vmax.f32 %v4841, 0.0
      %v4874 = vmax.f32 %v4842, 0.0
      %v4875 = vmax.f32 %v4843, 0.0
      %v4876 = vmax.f32 %v4844, 0.0
      %v4877 = vmax.f32 %v4845, 0.0
      %v4878 = vmin.f32 %v4846, 6.0
      %v4879 = vmin.f32 %v4847, 6.0
      %v4880 = vmin.f32 %v4848, 6.0
      %v4881 = vmin.f32 %v4849, 6.0
      %v4882 = vmin.f32 %v4850, 6.0
      %v4883 = vmin.f32 %v4851, 6.0
      %v4884 = vmin.f32 %v4852, 6.0
      %v4885 = vmin.f32 %v4853, 6.0
      %v4886 = vmin.f32 %v4854, 6.0
      %v4887 = vmin.f32 %v4855, 6.0
      %v4888 = vmin.f32 %v4856, 6.0
      %v4889 = vmin.f32 %v4857, 6.0
      %v4890 = vmin.f32 %v4858, 6.0
      %v4891 = vmin.f32 %v4859, 6.0
      %v4892 = vmin.f32 %v4860, 6.0
      %v4893 = vmin.f32 %v4861, 6.0
      %v4894 = vmin.f32 %v4862, 6.0
      %v4895 = vmin.f32 %v4863, 6.0
      %v4896 = vmin.f32 %v4864, 6.0
      %v4897 = vmin.f32 %v4865, 6.0
      %v4898 = vmin.f32 %v4866, 6.0
      %v4899 = vmin.f32 %v4867, 6.0
      %v4900 = vmin.f32 %v4868, 6.0
      %v4901 = vmin.f32 %v4869, 6.0
      %v4902 = vmin.f32 %v4870, 6.0
      %v4903 = vmin.f32 %v4871, 6.0
      %v4904 = vmin.f32 %v4872, 6.0
      %v4905 = vmin.f32 %v4873, 6.0
      %v4906 = vmin.f32 %v4874, 6.0
      %v4907 = vmin.f32 %v4875, 6.0
      %v4908 = vmin.f32 %v4876, 6.0
      %v4909 = vmin.f32 %v4877, 6.0
      %v4910 = vmul.f32 %v4782, %v4878
      %v4911 = vmul.f32 %v4783, %v4879
      %v4912 = vmul.f32 %v4784, %v4880
      %v4913 = vmul.f32 %v4785, %v4881
      %v4914 = vmul.f32 %v4786, %v4882
      %v4915 = vmul.f32 %v4787, %v4883
      %v4916 = vmul.f32 %v4788, %v4884
      %v4917 = vmul.f32 %v4789, %v4885
      %v4918 = vmul.f32 %v4790, %v4886
      %v4919 = vmul.f32 %v4791, %v4887
      %v4920 = vmul.f32 %v4792, %v4888
      %v4921 = vmul.f32 %v4793, %v4889
      %v4922 = vmul.f32 %v4794, %v4890
      %v4923 = vmul.f32 %v4795, %v4891
      %v4924 = vmul.f32 %v4796, %v4892
      %v4925 = vmul.f32 %v4797, %v4893
      %v4926 = vmul.f32 %v4798, %v4894
      %v4927 = vmul.f32 %v4799, %v4895
      %v4928 = vmul.f32 %v4800, %v4896
      %v4929 = vmul.f32 %v4801, %v4897
      %v4930 = vmul.f32 %v4802, %v4898
      %v4931 = vmul.f32 %v4803, %v4899
      %v4932 = vmul.f32 %v4804, %v4900
      %v4933 = vmul.f32 %v4805, %v4901
      %v4934 = vmul.f32 %v4806, %v4902
      %v4935 = vmul.f32 %v4807, %v4903
      %v4936 = vmul.f32 %v4808, %v4904
      %v4937 = vmul.f32 %v4809, %v4905
      %v4938 = vmul.f32 %v4810, %v4906
      %v4939 = vmul.f32 %v4811, %v4907
      %v4940 = vmul.f32 %v4812, %v4908
      %v4941 = vmul.f32 %v4813, %v4909
      %v4942 = vmul.f32 %v4910, 0.16666667
      %v4943 = vmul.f32 %v4911, 0.16666667
      %v4944 = vmul.f32 %v4912, 0.16666667
      %v4945 = vmul.f32 %v4913, 0.16666667
      %v4946 = vmul.f32 %v4914, 0.16666667
      %v4947 = vmul.f32 %v4915, 0.16666667
      %v4948 = vmul.f32 %v4916, 0.16666667
      %v4949 = vmul.f32 %v4917, 0.16666667
      %v4950 = vmul.f32 %v4918, 0.16666667
      %v4951 = vmul.f32 %v4919, 0.16666667
      %v4952 = vmul.f32 %v4920, 0.16666667
      %v4953 = vmul.f32 %v4921, 0.16666667
      %v4954 = vmul.f32 %v4922, 0.16666667
      %v4955 = vmul.f32 %v4923, 0.16666667
      %v4956 = vmul.f32 %v4924, 0.16666667
      %v4957 = vmul.f32 %v4925, 0.16666667
      %v4958 = vmul.f32 %v4926, 0.16666667
      %v4959 = vmul.f32 %v4927, 0.16666667
      %v4960 = vmul.f32 %v4928, 0.16666667
      %v4961 = vmul.f32 %v4929, 0.16666667
      %v4962 = vmul.f32 %v4930, 0.16666667
      %v4963 = vmul.f32 %v4931, 0.16666667
      %v4964 = vmul.f32 %v4932, 0.16666667
      %v4965 = vmul.f32 %v4933, 0.16666667
      %v4966 = vmul.f32 %v4934, 0.16666667
      %v4967 = vmul.f32 %v4935, 0.16666667
      %v4968 = vmul.f32 %v4936, 0.16666667
      %v4969 = vmul.f32 %v4937, 0.16666667
      %v4970 = vmul.f32 %v4938, 0.16666667
      %v4971 = vmul.f32 %v4939, 0.16666667
      %v4972 = vmul.f32 %v4940, 0.16666667
      %v4973 = vmul.f32 %v4941, 0.16666667
      %vm4974 = vcmask 64512
      %4975 = vst.msk [vmem:[%s275] sm:$0xff] %vm4974, %v4942
      %4976 = vst.msk [vmem:[%s275 + $0x8] sm:$0xff] %vm4974, %v4943
      %4977 = vst.msk [vmem:[%s275 + $0x10] sm:$0xff] %vm4974, %v4944
      %4978 = vst.msk [vmem:[%s275 + $0x18] sm:$0xff] %vm4974, %v4945
      %4979 = vst.msk [vmem:[%s275 + $0x20] sm:$0xff] %vm4974, %v4946
      %4980 = vst.msk [vmem:[%s275 + $0x28] sm:$0xff] %vm4974, %v4947
      %4981 = vst.msk [vmem:[%s275 + $0x30] sm:$0xff] %vm4974, %v4948
      %4982 = vst.msk [vmem:[%s275 + $0x38] sm:$0xff] %vm4974, %v4949
      %4983 = vst.msk [vmem:[%s275 + $0x40] sm:$0xff] %vm4974, %v4950
      %4984 = vst.msk [vmem:[%s275 + $0x48] sm:$0xff] %vm4974, %v4951
      %4985 = vst.msk [vmem:[%s275 + $0x50] sm:$0xff] %vm4974, %v4952
      %4986 = vst.msk [vmem:[%s275 + $0x58] sm:$0xff] %vm4974, %v4953
      %4987 = vst.msk [vmem:[%s275 + $0x60] sm:$0xff] %vm4974, %v4954
      %4988 = vst.msk [vmem:[%s275 + $0x68] sm:$0xff] %vm4974, %v4955
      %4989 = vst.msk [vmem:[%s275 + $0x70] sm:$0xff] %vm4974, %v4956
      %4990 = vst.msk [vmem:[%s275 + $0x78] sm:$0xff] %vm4974, %v4957
      %4991 = vst.msk [vmem:[%s275 + $0x80] sm:$0xff] %vm4974, %v4958
      %4992 = vst.msk [vmem:[%s275 + $0x88] sm:$0xff] %vm4974, %v4959
      %4993 = vst.msk [vmem:[%s275 + $0x90] sm:$0xff] %vm4974, %v4960
      %4994 = vst.msk [vmem:[%s275 + $0x98] sm:$0xff] %vm4974, %v4961
      %4995 = vst.msk [vmem:[%s275 + $0xa0] sm:$0xff] %vm4974, %v4962
      %4996 = vst.msk [vmem:[%s275 + $0xa8] sm:$0xff] %vm4974, %v4963
      %4997 = vst.msk [vmem:[%s275 + $0xb0] sm:$0xff] %vm4974, %v4964
      %4998 = vst.msk [vmem:[%s275 + $0xb8] sm:$0xff] %vm4974, %v4965
      %4999 = vst.msk [vmem:[%s275 + $0xc0] sm:$0xff] %vm4974, %v4966
      %5000 = vst.msk [vmem:[%s275 + $0xc8] sm:$0xff] %vm4974, %v4967
      %5001 = vst.msk [vmem:[%s275 + $0xd0] sm:$0xff] %vm4974, %v4968
      %5002 = vst.msk [vmem:[%s275 + $0xd8] sm:$0xff] %vm4974, %v4969
      %5003 = vst.msk [vmem:[%s275 + $0xe0] sm:$0xff] %vm4974, %v4970
      %5004 = vst.msk [vmem:[%s275 + $0xe8] sm:$0xff] %vm4974, %v4971
      %5005 = vst.msk [vmem:[%s275 + $0xf0] sm:$0xff] %vm4974, %v4972
      %5006 = vst.msk [vmem:[%s275 + $0xf8] sm:$0xff] %vm4974, %v4973
      %p5007 = scmp.lt.s32.totalorder %s20, 1
      %s5008 = scalar_select %p5007, %s20, 1
      %p5009 = scmp.lt.s32.totalorder %s21, 0
      %s5010 = scalar_select %p5009, %s21, 0
      %s5011 = smul.addr %s5008, 32
      %s5012 = sadd.s32 %s5010, %s5011
      %s5013 = smul.addr %s5012, 8
      %s5014 = scalar_lea.vmem %s5, %s5013
      // Predicated region
      $region41: #{tpu_custom_call.1} parent=39 // pred_check
        %p5015 = pneg %p168
      $region42: #{tpu_custom_call.1} parent=39 // pred_check_branch
        %5017 = sbr.rel (%p5015) target = $region44
      $region43: #{tpu_custom_call.1} parent=39 // pred_region
        _
      $region44: #{tpu_custom_call.1} parent=39 // pred_fallthru
        _
    $region40: #{tpu_custom_call.1} parent=5 // pred_fallthru
      _
    %p5018 = scmp.le.s32.totalorder 2, %s11
    // Predicated region
    $region45: #{tpu_custom_call.1} parent=5 // pred_check
      %p5019 = pneg %p5018
    $region46: #{tpu_custom_call.1} parent=5 // pred_check_branch
      %5021 = sbr.rel (%p5019) target = $region48
    $region47: #{tpu_custom_call.1} parent=5 // pred_region
      %s5022 = ssub.s32 %s11, 2
      // Predicated region
      $region49: #{tpu_custom_call.1} parent=47 // pred_check
        %p5023 = pneg %p174
      $region50: #{tpu_custom_call.1} parent=47 // pred_check_branch
        %5025 = sbr.rel (%p5023) target = $region52
      $region51: #{tpu_custom_call.1} parent=47 // pred_region
        %p5026 = scmp.lt.s32.totalorder %s22, 1
        %s5027 = scalar_select %p5026, %s22, 1
        %p5028 = scmp.lt.s32.totalorder %s23, 0
        %s5029 = scalar_select %p5028, %s23, 0
        %s5030 = smul.addr %s5027, 32
        %s5031 = sadd.s32 %s5029, %s5030
        %s5032 = smul.addr %s5031, 8
        %s5033 = scalar_lea.vmem %s5, %s5032
      $region52: #{tpu_custom_call.1} parent=47 // pred_fallthru
        _
    $region48: #{tpu_custom_call.1} parent=5 // pred_fallthru
      _
  $region6: #{tpu_custom_call.1} parent=0 // loop_footer
    %s15 = sadd.s32 1, %s11
  $region7: #{tpu_custom_call.1} parent=0 // loop_footer_branch
    %10 = sbr.rel target = $region3
  $region8: #{tpu_custom_call.1} parent=0 // loop_exit
    _

</llo_original>
